<compile_context>
chip_gen: v7x
topology: tpu7x:2x2x1
jax: 0.10.0
libtpu: 0.0.40
codegen_flags: <defaults>
</compile_context>

<pallas_src>
import functools

import jax
import jax.numpy as jnp
from jax.experimental import pallas as pl
from jax.experimental.pallas import tpu as pltpu


def _round_up(x, m):
    return ((x + m - 1) // m) * m


# ----------------------------------------------------------------------------
# Fused Pallas kernel: all GRU layers + FC head
# ----------------------------------------------------------------------------
def fused_gru_fc_kernel(*refs, num_layers, seq_len, hidden_pad):
    """refs = [x_flat, (w_ih, w_hh, b_fold, b_hhn) * L, fc_w, fc_b, out, y_scratch]."""
    T, Hp = seq_len, hidden_pad
    x_ref = refs[0]
    fc_w_ref = refs[1 + 4 * num_layers]
    fc_b_ref = refs[2 + 4 * num_layers]
    out_ref = refs[3 + 4 * num_layers]
    y_scratch = refs[4 + 4 * num_layers]

    B = x_ref.shape[0] // T

    h = None
    for layer in range(num_layers):
        w_ih = refs[1 + 4 * layer][...]    # (d_in, 3*Hp)
        w_hh = refs[2 + 4 * layer][...]    # (Hp, 3*Hp)
        b_fold = refs[3 + 4 * layer][...]  # (1, 3*Hp)  = b_ih + [b_hh_r, b_hh_z, 0]
        b_hhn = refs[4 + 4 * layer][...]   # (1, Hp)    = b_hh_n (must stay inside r*(...))

        layer_in = x_ref[...] if layer == 0 else y_scratch[...]
        # Hoisted input projection for ALL timesteps at once (off the serial
        # recurrence); every bias except b_hh_n folds in here.
        gi_all = jnp.dot(layer_in, w_ih,
                         preferred_element_type=jnp.float32) + b_fold  # (T*B, 3*Hp)

        h = jnp.zeros((B, Hp), jnp.float32)
        for t in range(T):  # T is small: fully unrolled, static indices only
            gi = gi_all[t * B:(t + 1) * B, :]
            gh = jnp.dot(h, w_hh, preferred_element_type=jnp.float32)
            # Gate slices fall exactly on 128-lane tile boundaries (Hp = k*128).
            r = jax.nn.sigmoid(gi[:, 0:Hp] + gh[:, 0:Hp])
            z = jax.nn.sigmoid(gi[:, Hp:2 * Hp] + gh[:, Hp:2 * Hp])
            n = jnp.tanh(gi[:, 2 * Hp:3 * Hp] + r * (gh[:, 2 * Hp:3 * Hp] + b_hhn))
            h = n + z * (h - n)  # == (1 - z) * n + z * h
            if layer + 1 < num_layers:
                y_scratch[t * B:(t + 1) * B, :] = h

    # FC head on the last timestep of the last layer (== out[:, -1, :] @ W + b).
    out = jnp.dot(h, fc_w_ref[...],
                  preferred_element_type=jnp.float32) + fc_b_ref[...]
    out_ref[...] = out.astype(out_ref.dtype)


def run_fused_gru_fc(x_flat, padded_layers, fc_w, fc_b, *, seq_len, hidden_pad):
    """x_flat: (T*B, D_in) time-major.  Returns (B, out_pad)."""
    num_layers = len(padded_layers)
    TB, _ = x_flat.shape
    B = TB // seq_len
    out_pad = fc_w.shape[1]

    inputs = [x_flat]
    for lp in padded_layers:
        inputs.extend(lp)
    inputs.extend([fc_w, fc_b])

    in_specs = [pl.BlockSpec(a.shape, lambda i: (0, 0)) for a in inputs]

    kernel = functools.partial(fused_gru_fc_kernel, num_layers=num_layers,
                               seq_len=seq_len, hidden_pad=hidden_pad)
    return pl.pallas_call(
        kernel,
        out_shape=jax.ShapeDtypeStruct((B, out_pad), jnp.float32),
        grid_spec=pltpu.PrefetchScalarGridSpec(
            num_scalar_prefetch=0,
            grid=(1,),
            in_specs=in_specs,
            out_specs=pl.BlockSpec((B, out_pad), lambda i: (0, 0)),
            scratch_shapes=[pltpu.VMEM((TB, hidden_pad), jnp.float32)],
        ),
        compiler_params=pltpu.CompilerParams(
            dimension_semantics=("arbitrary",)),
    )(*inputs)


# ----------------------------------------------------------------------------
# Parameters (PyTorch-style init, pre-transposed for right-multiplication)
# ----------------------------------------------------------------------------
def init_params(key, input_dim, hidden_dim, num_layers, output_dim):
    bound = 1.0 / jnp.sqrt(jnp.float32(hidden_dim))
    params = {"layers": []}
    for layer in range(num_layers):
        d_in = input_dim if layer == 0 else hidden_dim
        key, k1, k2, k3, k4 = jax.random.split(key, 5)
        w_ih = jax.random.uniform(k1, (d_in, 3 * hidden_dim), jnp.float32,
                                  -bound, bound)
        w_hh = jax.random.uniform(k2, (hidden_dim, 3 * hidden_dim), jnp.float32,
                                  -bound, bound)
        b_ih = jax.random.uniform(k3, (1, 3 * hidden_dim), jnp.float32,
                                  -bound, bound)
        b_hh = jax.random.uniform(k4, (1, 3 * hidden_dim), jnp.float32,
                                  -bound, bound)
        params["layers"].append((w_ih, w_hh, b_ih, b_hh))
    key, k5, k6 = jax.random.split(key, 3)
    params["fc_w"] = jax.random.uniform(k5, (hidden_dim, output_dim),
                                        jnp.float32, -bound, bound)
    params["fc_b"] = jax.random.uniform(k6, (1, output_dim),
                                        jnp.float32, -bound, bound)
    return params


def _pad_gate_cols(w, H, Hp):
    """(rows, 3H) -> (rows, 3*Hp), zero-padding each gate block separately."""
    rows = w.shape[0]
    w3 = jnp.pad(w.reshape(rows, 3, H), ((0, 0), (0, 0), (0, Hp - H)))
    return w3.reshape(rows, 3 * Hp)


def pad_params(params, hidden_dim, Hp, Op):
    """Pad to lane multiples and pre-fold biases off the serial recurrence."""
    H = hidden_dim
    layers = []
    for layer_idx, (w_ih, w_hh, b_ih, b_hh) in enumerate(params["layers"]):
        w_ih_p = _pad_gate_cols(w_ih, H, Hp)
        if layer_idx > 0:  # layers >= 1 consume the padded hidden state
            w_ih_p = jnp.pad(w_ih_p, ((0, Hp - H), (0, 0)))
        w_hh_p = jnp.pad(_pad_gate_cols(w_hh, H, Hp), ((0, Hp - H), (0, 0)))
        # b_ih (all gates) + b_hh for r,z fold into the hoisted projection;
        # b_hh_n must stay inside the r-gated term, so it is kept separate.
        b_hh_rz = jnp.concatenate(
            [b_hh[:, :2 * H], jnp.zeros((1, H), jnp.float32)], axis=1)
        b_fold_p = _pad_gate_cols(b_ih + b_hh_rz, H, Hp)
        b_hhn_p = jnp.pad(b_hh[:, 2 * H:3 * H], ((0, 0), (0, Hp - H)))
        layers.append((w_ih_p, w_hh_p, b_fold_p, b_hhn_p))
    Hf, O = params["fc_w"].shape
    fc_w_p = jnp.pad(params["fc_w"], ((0, Hp - Hf), (0, Op - O)))
    fc_b_p = jnp.pad(params["fc_b"], ((0, 0), (0, Op - O)))
    return layers, fc_w_p, fc_b_p


def gru_forward(params, x_btd, hidden_dim, output_dim):
    """Mirrors GRU.forward: x (B, T, D_in), batch_first -> (B, output_dim)."""
    B, T, D = x_btd.shape
    Hp = _round_up(hidden_dim, 128)
    Op = _round_up(output_dim, 128)
    padded_layers, fc_w_p, fc_b_p = pad_params(params, hidden_dim, Hp, Op)
    # Time-major, flattened rows: row t*B + b == (t, b).
    x_flat = jnp.transpose(x_btd, (1, 0, 2)).reshape(T * B, D)
    out_p = run_fused_gru_fc(x_flat, padded_layers, fc_w_p, fc_b_p,
                             seq_len=T, hidden_pad=Hp)
    return out_p[:, :output_dim]


# ----------------------------------------------------------------------------
# Pure-JAX reference (unpadded) for a correctness check
# ----------------------------------------------------------------------------
def gru_forward_ref(params, x_btd, hidden_dim):
    x = jnp.transpose(x_btd, (1, 0, 2))
    for (w_ih, w_hh, b_ih, b_hh) in params["layers"]:
        T, B, _ = x.shape
        h = jnp.zeros((B, hidden_dim), jnp.float32)
        outs = []
        for t in range(T):
            gi = x[t] @ w_ih + b_ih
            gh = h @ w_hh + b_hh
            H = hidden_dim
            r = jax.nn.sigmoid(gi[:, :H] + gh[:, :H])
            z = jax.nn.sigmoid(gi[:, H:2 * H] + gh[:, H:2 * H])
            n = jnp.tanh(gi[:, 2 * H:] + r * gh[:, 2 * H:])
            h = (1.0 - z) * n + z * h
            outs.append(h)
        x = jnp.stack(outs, axis=0)
    return x[-1] @ params["fc_w"] + params["fc_b"]


if __name__ == "__main__":
    # Shapes consistent with the module's forward:
    # x: (batch=2, seq=8, input_dim=4); hidden_dim=32, num_layers=2, output_dim=3
    batch, seq, input_dim = 2, 8, 4
    hidden_dim, num_layers, output_dim = 32, 2, 3

    key = jax.random.PRNGKey(0)
    k_param, k_x = jax.random.split(key)
    params = init_params(k_param, input_dim, hidden_dim, num_layers, output_dim)
    x = jax.random.normal(k_x, (batch, seq, input_dim), jnp.float32)

    out = gru_forward(params, x, hidden_dim, output_dim)
    out = jax.block_until_ready(out)

    ref = gru_forward_ref(params, x, hidden_dim)
    assert out.shape == (batch, output_dim)
    assert jnp.allclose(out, ref, atol=1e-5, rtol=1e-5), "mismatch vs reference"

    print("KERNEL_OK")
</pallas_src>

<mosaic_0001>
module attributes {stable_mosaic.version = 11 : i64} {
  func.func @fused_gru_fc_kernel(%arg0: i32, %arg1: memref<16x4xf32, #tpu.memory_space<vmem>>, %arg2: memref<4x384xf32, #tpu.memory_space<vmem>>, %arg3: memref<128x384xf32, #tpu.memory_space<vmem>>, %arg4: memref<1x384xf32, #tpu.memory_space<vmem>>, %arg5: memref<1x128xf32, #tpu.memory_space<vmem>>, %arg6: memref<128x384xf32, #tpu.memory_space<vmem>>, %arg7: memref<128x384xf32, #tpu.memory_space<vmem>>, %arg8: memref<1x384xf32, #tpu.memory_space<vmem>>, %arg9: memref<1x128xf32, #tpu.memory_space<vmem>>, %arg10: memref<128x128xf32, #tpu.memory_space<vmem>>, %arg11: memref<1x128xf32, #tpu.memory_space<vmem>>, %arg12: memref<2x128xf32, #tpu.memory_space<vmem>>, %arg13: memref<16x128xf32, #tpu.memory_space<vmem>>) attributes {dimension_semantics = [#tpu.dimension_semantics<arbitrary>], iteration_bounds = array<i64: 1>, scalar_prefetch = 0 : i64, scratch_operands = 1 : i64, tpu.core_type = #tpu.core_type<tc>, window_params = [{pipeline_mode = #tpu.pipeline_mode<synchronous>, transform_indices = @transform_0, window_bounds = array<i64: 16, 4>}, {pipeline_mode = #tpu.pipeline_mode<synchronous>, transform_indices = @transform_1, window_bounds = array<i64: 4, 384>}, {pipeline_mode = #tpu.pipeline_mode<synchronous>, transform_indices = @transform_2, window_bounds = array<i64: 128, 384>}, {pipeline_mode = #tpu.pipeline_mode<synchronous>, transform_indices = @transform_3, window_bounds = array<i64: 1, 384>}, {pipeline_mode = #tpu.pipeline_mode<synchronous>, transform_indices = @transform_4, window_bounds = array<i64: 1, 128>}, {pipeline_mode = #tpu.pipeline_mode<synchronous>, transform_indices = @transform_5, window_bounds = array<i64: 128, 384>}, {pipeline_mode = #tpu.pipeline_mode<synchronous>, transform_indices = @transform_6, window_bounds = array<i64: 128, 384>}, {pipeline_mode = #tpu.pipeline_mode<synchronous>, transform_indices = @transform_7, window_bounds = array<i64: 1, 384>}, {pipeline_mode = #tpu.pipeline_mode<synchronous>, transform_indices = @transform_8, window_bounds = array<i64: 1, 128>}, {pipeline_mode = #tpu.pipeline_mode<synchronous>, transform_indices = @transform_9, window_bounds = array<i64: 128, 128>}, {pipeline_mode = #tpu.pipeline_mode<synchronous>, transform_indices = @transform_10, window_bounds = array<i64: 1, 128>}, {pipeline_mode = #tpu.pipeline_mode<synchronous>, transform_indices = @transform_11, window_bounds = array<i64: 2, 128>}]} {
    %c0 = arith.constant 0 : index
    %c0_0 = arith.constant 0 : index
    %0 = vector.load %arg2[%c0, %c0_0] : memref<4x384xf32, #tpu.memory_space<vmem>>, vector<4x384xf32>
    %c0_1 = arith.constant 0 : index
    %c0_2 = arith.constant 0 : index
    %1 = vector.load %arg3[%c0_1, %c0_2] : memref<128x384xf32, #tpu.memory_space<vmem>>, vector<128x384xf32>
    %c0_3 = arith.constant 0 : index
    %c0_4 = arith.constant 0 : index
    %2 = vector.load %arg4[%c0_3, %c0_4] : memref<1x384xf32, #tpu.memory_space<vmem>>, vector<1x384xf32>
    %c0_5 = arith.constant 0 : index
    %c0_6 = arith.constant 0 : index
    %3 = vector.load %arg5[%c0_5, %c0_6] : memref<1x128xf32, #tpu.memory_space<vmem>>, vector<1x128xf32>
    %c0_7 = arith.constant 0 : index
    %c0_8 = arith.constant 0 : index
    %4 = vector.load %arg1[%c0_7, %c0_8] : memref<16x4xf32, #tpu.memory_space<vmem>>, vector<16x4xf32>
    %cst = arith.constant dense<0.000000e+00> : vector<16x384xf32>
    %5 = tpu.matmul %4, %0, %cst {dimension_numbers = #tpu.dot_dimension_numbers<[1], [0], [0], [1], [0, 0, 1, 1], [], []>} : vector<16x4xf32>, vector<4x384xf32>, vector<16x384xf32> -> vector<16x384xf32>
    %6 = vector.broadcast %2 : vector<1x384xf32> to vector<16x384xf32>
    %7 = arith.addf %5, %6 : vector<16x384xf32>
    %cst_9 = arith.constant 0.000000e+00 : f32
    %8 = vector.broadcast %cst_9 : f32 to vector<2x128xf32>
    %9 = vector.extract_strided_slice %7 {offsets = [0, 0], sizes = [2, 384], strides = [1, 1]} : vector<16x384xf32> to vector<2x384xf32>
    %cst_10 = arith.constant dense<0.000000e+00> : vector<2x384xf32>
    %10 = tpu.matmul %8, %1, %cst_10 {dimension_numbers = #tpu.dot_dimension_numbers<[1], [0], [0], [1], [0, 0, 1, 1], [], []>} : vector<2x128xf32>, vector<128x384xf32>, vector<2x384xf32> -> vector<2x384xf32>
    %11 = vector.extract_strided_slice %9 {offsets = [0, 0], sizes = [2, 128], strides = [1, 1]} : vector<2x384xf32> to vector<2x128xf32>
    %12 = vector.extract_strided_slice %10 {offsets = [0, 0], sizes = [2, 128], strides = [1, 1]} : vector<2x384xf32> to vector<2x128xf32>
    %13 = arith.addf %11, %12 : vector<2x128xf32>
    %14 = arith.negf %13 : vector<2x128xf32>
    %15 = math.exp %14 : vector<2x128xf32>
    %cst_11 = arith.constant 1.000000e+00 : f32
    %16 = vector.broadcast %cst_11 : f32 to vector<2x128xf32>
    %17 = arith.addf %16, %15 : vector<2x128xf32>
    %18 = arith.divf %16, %17 : vector<2x128xf32>
    %19 = vector.extract_strided_slice %9 {offsets = [0, 128], sizes = [2, 128], strides = [1, 1]} : vector<2x384xf32> to vector<2x128xf32>
    %20 = vector.extract_strided_slice %10 {offsets = [0, 128], sizes = [2, 128], strides = [1, 1]} : vector<2x384xf32> to vector<2x128xf32>
    %21 = arith.addf %19, %20 : vector<2x128xf32>
    %22 = arith.negf %21 : vector<2x128xf32>
    %23 = math.exp %22 : vector<2x128xf32>
    %cst_12 = arith.constant 1.000000e+00 : f32
    %24 = vector.broadcast %cst_12 : f32 to vector<2x128xf32>
    %25 = arith.addf %24, %23 : vector<2x128xf32>
    %26 = arith.divf %24, %25 : vector<2x128xf32>
    %27 = vector.extract_strided_slice %9 {offsets = [0, 256], sizes = [2, 128], strides = [1, 1]} : vector<2x384xf32> to vector<2x128xf32>
    %28 = vector.extract_strided_slice %10 {offsets = [0, 256], sizes = [2, 128], strides = [1, 1]} : vector<2x384xf32> to vector<2x128xf32>
    %29 = vector.broadcast %3 : vector<1x128xf32> to vector<2x128xf32>
    %30 = arith.addf %28, %29 : vector<2x128xf32>
    %31 = arith.mulf %18, %30 : vector<2x128xf32>
    %32 = arith.addf %27, %31 : vector<2x128xf32>
    %33 = math.tanh %32 : vector<2x128xf32>
    %34 = arith.subf %8, %33 : vector<2x128xf32>
    %35 = arith.mulf %26, %34 : vector<2x128xf32>
    %36 = arith.addf %33, %35 : vector<2x128xf32>
    %c0_13 = arith.constant 0 : index
    %c0_14 = arith.constant 0 : index
    %37 = vector.load %arg13[%c0_13, %c0_14] : memref<16x128xf32, #tpu.memory_space<vmem>>, vector<2x128xf32>
    tpu.vector_store %arg13[%c0_13, %c0_14], %36 {strides = array<i32>} : memref<16x128xf32, #tpu.memory_space<vmem>>, vector<2x128xf32>,
    %38 = vector.extract_strided_slice %7 {offsets = [2, 0], sizes = [2, 384], strides = [1, 1]} : vector<16x384xf32> to vector<2x384xf32>
    %cst_15 = arith.constant dense<0.000000e+00> : vector<2x384xf32>
    %39 = tpu.matmul %36, %1, %cst_15 {dimension_numbers = #tpu.dot_dimension_numbers<[1], [0], [0], [1], [0, 0, 1, 1], [], []>} : vector<2x128xf32>, vector<128x384xf32>, vector<2x384xf32> -> vector<2x384xf32>
    %40 = vector.extract_strided_slice %38 {offsets = [0, 0], sizes = [2, 128], strides = [1, 1]} : vector<2x384xf32> to vector<2x128xf32>
    %41 = vector.extract_strided_slice %39 {offsets = [0, 0], sizes = [2, 128], strides = [1, 1]} : vector<2x384xf32> to vector<2x128xf32>
    %42 = arith.addf %40, %41 : vector<2x128xf32>
    %43 = arith.negf %42 : vector<2x128xf32>
    %44 = math.exp %43 : vector<2x128xf32>
    %cst_16 = arith.constant 1.000000e+00 : f32
    %45 = vector.broadcast %cst_16 : f32 to vector<2x128xf32>
    %46 = arith.addf %45, %44 : vector<2x128xf32>
    %47 = arith.divf %45, %46 : vector<2x128xf32>
    %48 = vector.extract_strided_slice %38 {offsets = [0, 128], sizes = [2, 128], strides = [1, 1]} : vector<2x384xf32> to vector<2x128xf32>
    %49 = vector.extract_strided_slice %39 {offsets = [0, 128], sizes = [2, 128], strides = [1, 1]} : vector<2x384xf32> to vector<2x128xf32>
    %50 = arith.addf %48, %49 : vector<2x128xf32>
    %51 = arith.negf %50 : vector<2x128xf32>
    %52 = math.exp %51 : vector<2x128xf32>
    %cst_17 = arith.constant 1.000000e+00 : f32
    %53 = vector.broadcast %cst_17 : f32 to vector<2x128xf32>
    %54 = arith.addf %53, %52 : vector<2x128xf32>
    %55 = arith.divf %53, %54 : vector<2x128xf32>
    %56 = vector.extract_strided_slice %38 {offsets = [0, 256], sizes = [2, 128], strides = [1, 1]} : vector<2x384xf32> to vector<2x128xf32>
    %57 = vector.extract_strided_slice %39 {offsets = [0, 256], sizes = [2, 128], strides = [1, 1]} : vector<2x384xf32> to vector<2x128xf32>
    %58 = vector.broadcast %3 : vector<1x128xf32> to vector<2x128xf32>
    %59 = arith.addf %57, %58 : vector<2x128xf32>
    %60 = arith.mulf %47, %59 : vector<2x128xf32>
    %61 = arith.addf %56, %60 : vector<2x128xf32>
    %62 = math.tanh %61 : vector<2x128xf32>
    %63 = arith.subf %36, %62 : vector<2x128xf32>
    %64 = arith.mulf %55, %63 : vector<2x128xf32>
    %65 = arith.addf %62, %64 : vector<2x128xf32>
    %c2 = arith.constant 2 : index
    %c0_18 = arith.constant 0 : index
    %66 = vector.load %arg13[%c2, %c0_18] : memref<16x128xf32, #tpu.memory_space<vmem>>, vector<2x128xf32>
    tpu.vector_store %arg13[%c2, %c0_18], %65 {strides = array<i32>} : memref<16x128xf32, #tpu.memory_space<vmem>>, vector<2x128xf32>,
    %67 = vector.extract_strided_slice %7 {offsets = [4, 0], sizes = [2, 384], strides = [1, 1]} : vector<16x384xf32> to vector<2x384xf32>
    %cst_19 = arith.constant dense<0.000000e+00> : vector<2x384xf32>
    %68 = tpu.matmul %65, %1, %cst_19 {dimension_numbers = #tpu.dot_dimension_numbers<[1], [0], [0], [1], [0, 0, 1, 1], [], []>} : vector<2x128xf32>, vector<128x384xf32>, vector<2x384xf32> -> vector<2x384xf32>
    %69 = vector.extract_strided_slice %67 {offsets = [0, 0], sizes = [2, 128], strides = [1, 1]} : vector<2x384xf32> to vector<2x128xf32>
    %70 = vector.extract_strided_slice %68 {offsets = [0, 0], sizes = [2, 128], strides = [1, 1]} : vector<2x384xf32> to vector<2x128xf32>
    %71 = arith.addf %69, %70 : vector<2x128xf32>
    %72 = arith.negf %71 : vector<2x128xf32>
    %73 = math.exp %72 : vector<2x128xf32>
    %cst_20 = arith.constant 1.000000e+00 : f32
    %74 = vector.broadcast %cst_20 : f32 to vector<2x128xf32>
    %75 = arith.addf %74, %73 : vector<2x128xf32>
    %76 = arith.divf %74, %75 : vector<2x128xf32>
    %77 = vector.extract_strided_slice %67 {offsets = [0, 128], sizes = [2, 128], strides = [1, 1]} : vector<2x384xf32> to vector<2x128xf32>
    %78 = vector.extract_strided_slice %68 {offsets = [0, 128], sizes = [2, 128], strides = [1, 1]} : vector<2x384xf32> to vector<2x128xf32>
    %79 = arith.addf %77, %78 : vector<2x128xf32>
    %80 = arith.negf %79 : vector<2x128xf32>
    %81 = math.exp %80 : vector<2x128xf32>
    %cst_21 = arith.constant 1.000000e+00 : f32
    %82 = vector.broadcast %cst_21 : f32 to vector<2x128xf32>
    %83 = arith.addf %82, %81 : vector<2x128xf32>
    %84 = arith.divf %82, %83 : vector<2x128xf32>
    %85 = vector.extract_strided_slice %67 {offsets = [0, 256], sizes = [2, 128], strides = [1, 1]} : vector<2x384xf32> to vector<2x128xf32>
    %86 = vector.extract_strided_slice %68 {offsets = [0, 256], sizes = [2, 128], strides = [1, 1]} : vector<2x384xf32> to vector<2x128xf32>
    %87 = vector.broadcast %3 : vector<1x128xf32> to vector<2x128xf32>
    %88 = arith.addf %86, %87 : vector<2x128xf32>
    %89 = arith.mulf %76, %88 : vector<2x128xf32>
    %90 = arith.addf %85, %89 : vector<2x128xf32>
    %91 = math.tanh %90 : vector<2x128xf32>
    %92 = arith.subf %65, %91 : vector<2x128xf32>
    %93 = arith.mulf %84, %92 : vector<2x128xf32>
    %94 = arith.addf %91, %93 : vector<2x128xf32>
    %c4 = arith.constant 4 : index
    %c0_22 = arith.constant 0 : index
    %95 = vector.load %arg13[%c4, %c0_22] : memref<16x128xf32, #tpu.memory_space<vmem>>, vector<2x128xf32>
    tpu.vector_store %arg13[%c4, %c0_22], %94 {strides = array<i32>} : memref<16x128xf32, #tpu.memory_space<vmem>>, vector<2x128xf32>,
    %96 = vector.extract_strided_slice %7 {offsets = [6, 0], sizes = [2, 384], strides = [1, 1]} : vector<16x384xf32> to vector<2x384xf32>
    %cst_23 = arith.constant dense<0.000000e+00> : vector<2x384xf32>
    %97 = tpu.matmul %94, %1, %cst_23 {dimension_numbers = #tpu.dot_dimension_numbers<[1], [0], [0], [1], [0, 0, 1, 1], [], []>} : vector<2x128xf32>, vector<128x384xf32>, vector<2x384xf32> -> vector<2x384xf32>
    %98 = vector.extract_strided_slice %96 {offsets = [0, 0], sizes = [2, 128], strides = [1, 1]} : vector<2x384xf32> to vector<2x128xf32>
    %99 = vector.extract_strided_slice %97 {offsets = [0, 0], sizes = [2, 128], strides = [1, 1]} : vector<2x384xf32> to vector<2x128xf32>
    %100 = arith.addf %98, %99 : vector<2x128xf32>
    %101 = arith.negf %100 : vector<2x128xf32>
    %102 = math.exp %101 : vector<2x128xf32>
    %cst_24 = arith.constant 1.000000e+00 : f32
    %103 = vector.broadcast %cst_24 : f32 to vector<2x128xf32>
    %104 = arith.addf %103, %102 : vector<2x128xf32>
    %105 = arith.divf %103, %104 : vector<2x128xf32>
    %106 = vector.extract_strided_slice %96 {offsets = [0, 128], sizes = [2, 128], strides = [1, 1]} : vector<2x384xf32> to vector<2x128xf32>
    %107 = vector.extract_strided_slice %97 {offsets = [0, 128], sizes = [2, 128], strides = [1, 1]} : vector<2x384xf32> to vector<2x128xf32>
    %108 = arith.addf %106, %107 : vector<2x128xf32>
    %109 = arith.negf %108 : vector<2x128xf32>
    %110 = math.exp %109 : vector<2x128xf32>
    %cst_25 = arith.constant 1.000000e+00 : f32
    %111 = vector.broadcast %cst_25 : f32 to vector<2x128xf32>
    %112 = arith.addf %111, %110 : vector<2x128xf32>
    %113 = arith.divf %111, %112 : vector<2x128xf32>
    %114 = vector.extract_strided_slice %96 {offsets = [0, 256], sizes = [2, 128], strides = [1, 1]} : vector<2x384xf32> to vector<2x128xf32>
    %115 = vector.extract_strided_slice %97 {offsets = [0, 256], sizes = [2, 128], strides = [1, 1]} : vector<2x384xf32> to vector<2x128xf32>
    %116 = vector.broadcast %3 : vector<1x128xf32> to vector<2x128xf32>
    %117 = arith.addf %115, %116 : vector<2x128xf32>
    %118 = arith.mulf %105, %117 : vector<2x128xf32>
    %119 = arith.addf %114, %118 : vector<2x128xf32>
    %120 = math.tanh %119 : vector<2x128xf32>
    %121 = arith.subf %94, %120 : vector<2x128xf32>
    %122 = arith.mulf %113, %121 : vector<2x128xf32>
    %123 = arith.addf %120, %122 : vector<2x128xf32>
    %c6 = arith.constant 6 : index
    %c0_26 = arith.constant 0 : index
    %124 = vector.load %arg13[%c6, %c0_26] : memref<16x128xf32, #tpu.memory_space<vmem>>, vector<2x128xf32>
    tpu.vector_store %arg13[%c6, %c0_26], %123 {strides = array<i32>} : memref<16x128xf32, #tpu.memory_space<vmem>>, vector<2x128xf32>,
    %125 = vector.extract_strided_slice %7 {offsets = [8, 0], sizes = [2, 384], strides = [1, 1]} : vector<16x384xf32> to vector<2x384xf32>
    %cst_27 = arith.constant dense<0.000000e+00> : vector<2x384xf32>
    %126 = tpu.matmul %123, %1, %cst_27 {dimension_numbers = #tpu.dot_dimension_numbers<[1], [0], [0], [1], [0, 0, 1, 1], [], []>} : vector<2x128xf32>, vector<128x384xf32>, vector<2x384xf32> -> vector<2x384xf32>
    %127 = vector.extract_strided_slice %125 {offsets = [0, 0], sizes = [2, 128], strides = [1, 1]} : vector<2x384xf32> to vector<2x128xf32>
    %128 = vector.extract_strided_slice %126 {offsets = [0, 0], sizes = [2, 128], strides = [1, 1]} : vector<2x384xf32> to vector<2x128xf32>
    %129 = arith.addf %127, %128 : vector<2x128xf32>
    %130 = arith.negf %129 : vector<2x128xf32>
    %131 = math.exp %130 : vector<2x128xf32>
    %cst_28 = arith.constant 1.000000e+00 : f32
    %132 = vector.broadcast %cst_28 : f32 to vector<2x128xf32>
    %133 = arith.addf %132, %131 : vector<2x128xf32>
    %134 = arith.divf %132, %133 : vector<2x128xf32>
    %135 = vector.extract_strided_slice %125 {offsets = [0, 128], sizes = [2, 128], strides = [1, 1]} : vector<2x384xf32> to vector<2x128xf32>
    %136 = vector.extract_strided_slice %126 {offsets = [0, 128], sizes = [2, 128], strides = [1, 1]} : vector<2x384xf32> to vector<2x128xf32>
    %137 = arith.addf %135, %136 : vector<2x128xf32>
    %138 = arith.negf %137 : vector<2x128xf32>
    %139 = math.exp %138 : vector<2x128xf32>
    %cst_29 = arith.constant 1.000000e+00 : f32
    %140 = vector.broadcast %cst_29 : f32 to vector<2x128xf32>
    %141 = arith.addf %140, %139 : vector<2x128xf32>
    %142 = arith.divf %140, %141 : vector<2x128xf32>
    %143 = vector.extract_strided_slice %125 {offsets = [0, 256], sizes = [2, 128], strides = [1, 1]} : vector<2x384xf32> to vector<2x128xf32>
    %144 = vector.extract_strided_slice %126 {offsets = [0, 256], sizes = [2, 128], strides = [1, 1]} : vector<2x384xf32> to vector<2x128xf32>
    %145 = vector.broadcast %3 : vector<1x128xf32> to vector<2x128xf32>
    %146 = arith.addf %144, %145 : vector<2x128xf32>
    %147 = arith.mulf %134, %146 : vector<2x128xf32>
    %148 = arith.addf %143, %147 : vector<2x128xf32>
    %149 = math.tanh %148 : vector<2x128xf32>
    %150 = arith.subf %123, %149 : vector<2x128xf32>
    %151 = arith.mulf %142, %150 : vector<2x128xf32>
    %152 = arith.addf %149, %151 : vector<2x128xf32>
    %c8 = arith.constant 8 : index
    %c0_30 = arith.constant 0 : index
    %153 = vector.load %arg13[%c8, %c0_30] : memref<16x128xf32, #tpu.memory_space<vmem>>, vector<2x128xf32>
    tpu.vector_store %arg13[%c8, %c0_30], %152 {strides = array<i32>} : memref<16x128xf32, #tpu.memory_space<vmem>>, vector<2x128xf32>,
    %154 = vector.extract_strided_slice %7 {offsets = [10, 0], sizes = [2, 384], strides = [1, 1]} : vector<16x384xf32> to vector<2x384xf32>
    %cst_31 = arith.constant dense<0.000000e+00> : vector<2x384xf32>
    %155 = tpu.matmul %152, %1, %cst_31 {dimension_numbers = #tpu.dot_dimension_numbers<[1], [0], [0], [1], [0, 0, 1, 1], [], []>} : vector<2x128xf32>, vector<128x384xf32>, vector<2x384xf32> -> vector<2x384xf32>
    %156 = vector.extract_strided_slice %154 {offsets = [0, 0], sizes = [2, 128], strides = [1, 1]} : vector<2x384xf32> to vector<2x128xf32>
    %157 = vector.extract_strided_slice %155 {offsets = [0, 0], sizes = [2, 128], strides = [1, 1]} : vector<2x384xf32> to vector<2x128xf32>
    %158 = arith.addf %156, %157 : vector<2x128xf32>
    %159 = arith.negf %158 : vector<2x128xf32>
    %160 = math.exp %159 : vector<2x128xf32>
    %cst_32 = arith.constant 1.000000e+00 : f32
    %161 = vector.broadcast %cst_32 : f32 to vector<2x128xf32>
    %162 = arith.addf %161, %160 : vector<2x128xf32>
    %163 = arith.divf %161, %162 : vector<2x128xf32>
    %164 = vector.extract_strided_slice %154 {offsets = [0, 128], sizes = [2, 128], strides = [1, 1]} : vector<2x384xf32> to vector<2x128xf32>
    %165 = vector.extract_strided_slice %155 {offsets = [0, 128], sizes = [2, 128], strides = [1, 1]} : vector<2x384xf32> to vector<2x128xf32>
    %166 = arith.addf %164, %165 : vector<2x128xf32>
    %167 = arith.negf %166 : vector<2x128xf32>
    %168 = math.exp %167 : vector<2x128xf32>
    %cst_33 = arith.constant 1.000000e+00 : f32
    %169 = vector.broadcast %cst_33 : f32 to vector<2x128xf32>
    %170 = arith.addf %169, %168 : vector<2x128xf32>
    %171 = arith.divf %169, %170 : vector<2x128xf32>
    %172 = vector.extract_strided_slice %154 {offsets = [0, 256], sizes = [2, 128], strides = [1, 1]} : vector<2x384xf32> to vector<2x128xf32>
    %173 = vector.extract_strided_slice %155 {offsets = [0, 256], sizes = [2, 128], strides = [1, 1]} : vector<2x384xf32> to vector<2x128xf32>
    %174 = vector.broadcast %3 : vector<1x128xf32> to vector<2x128xf32>
    %175 = arith.addf %173, %174 : vector<2x128xf32>
    %176 = arith.mulf %163, %175 : vector<2x128xf32>
    %177 = arith.addf %172, %176 : vector<2x128xf32>
    %178 = math.tanh %177 : vector<2x128xf32>
    %179 = arith.subf %152, %178 : vector<2x128xf32>
    %180 = arith.mulf %171, %179 : vector<2x128xf32>
    %181 = arith.addf %178, %180 : vector<2x128xf32>
    %c10 = arith.constant 10 : index
    %c0_34 = arith.constant 0 : index
    %182 = vector.load %arg13[%c10, %c0_34] : memref<16x128xf32, #tpu.memory_space<vmem>>, vector<2x128xf32>
    tpu.vector_store %arg13[%c10, %c0_34], %181 {strides = array<i32>} : memref<16x128xf32, #tpu.memory_space<vmem>>, vector<2x128xf32>,
    %183 = vector.extract_strided_slice %7 {offsets = [12, 0], sizes = [2, 384], strides = [1, 1]} : vector<16x384xf32> to vector<2x384xf32>
    %cst_35 = arith.constant dense<0.000000e+00> : vector<2x384xf32>
    %184 = tpu.matmul %181, %1, %cst_35 {dimension_numbers = #tpu.dot_dimension_numbers<[1], [0], [0], [1], [0, 0, 1, 1], [], []>} : vector<2x128xf32>, vector<128x384xf32>, vector<2x384xf32> -> vector<2x384xf32>
    %185 = vector.extract_strided_slice %183 {offsets = [0, 0], sizes = [2, 128], strides = [1, 1]} : vector<2x384xf32> to vector<2x128xf32>
    %186 = vector.extract_strided_slice %184 {offsets = [0, 0], sizes = [2, 128], strides = [1, 1]} : vector<2x384xf32> to vector<2x128xf32>
    %187 = arith.addf %185, %186 : vector<2x128xf32>
    %188 = arith.negf %187 : vector<2x128xf32>
    %189 = math.exp %188 : vector<2x128xf32>
    %cst_36 = arith.constant 1.000000e+00 : f32
    %190 = vector.broadcast %cst_36 : f32 to vector<2x128xf32>
    %191 = arith.addf %190, %189 : vector<2x128xf32>
    %192 = arith.divf %190, %191 : vector<2x128xf32>
    %193 = vector.extract_strided_slice %183 {offsets = [0, 128], sizes = [2, 128], strides = [1, 1]} : vector<2x384xf32> to vector<2x128xf32>
    %194 = vector.extract_strided_slice %184 {offsets = [0, 128], sizes = [2, 128], strides = [1, 1]} : vector<2x384xf32> to vector<2x128xf32>
    %195 = arith.addf %193, %194 : vector<2x128xf32>
    %196 = arith.negf %195 : vector<2x128xf32>
    %197 = math.exp %196 : vector<2x128xf32>
    %cst_37 = arith.constant 1.000000e+00 : f32
    %198 = vector.broadcast %cst_37 : f32 to vector<2x128xf32>
    %199 = arith.addf %198, %197 : vector<2x128xf32>
    %200 = arith.divf %198, %199 : vector<2x128xf32>
    %201 = vector.extract_strided_slice %183 {offsets = [0, 256], sizes = [2, 128], strides = [1, 1]} : vector<2x384xf32> to vector<2x128xf32>
    %202 = vector.extract_strided_slice %184 {offsets = [0, 256], sizes = [2, 128], strides = [1, 1]} : vector<2x384xf32> to vector<2x128xf32>
    %203 = vector.broadcast %3 : vector<1x128xf32> to vector<2x128xf32>
    %204 = arith.addf %202, %203 : vector<2x128xf32>
    %205 = arith.mulf %192, %204 : vector<2x128xf32>
    %206 = arith.addf %201, %205 : vector<2x128xf32>
    %207 = math.tanh %206 : vector<2x128xf32>
    %208 = arith.subf %181, %207 : vector<2x128xf32>
    %209 = arith.mulf %200, %208 : vector<2x128xf32>
    %210 = arith.addf %207, %209 : vector<2x128xf32>
    %c12 = arith.constant 12 : index
    %c0_38 = arith.constant 0 : index
    %211 = vector.load %arg13[%c12, %c0_38] : memref<16x128xf32, #tpu.memory_space<vmem>>, vector<2x128xf32>
    tpu.vector_store %arg13[%c12, %c0_38], %210 {strides = array<i32>} : memref<16x128xf32, #tpu.memory_space<vmem>>, vector<2x128xf32>,
    %212 = vector.extract_strided_slice %7 {offsets = [14, 0], sizes = [2, 384], strides = [1, 1]} : vector<16x384xf32> to vector<2x384xf32>
    %cst_39 = arith.constant dense<0.000000e+00> : vector<2x384xf32>
    %213 = tpu.matmul %210, %1, %cst_39 {dimension_numbers = #tpu.dot_dimension_numbers<[1], [0], [0], [1], [0, 0, 1, 1], [], []>} : vector<2x128xf32>, vector<128x384xf32>, vector<2x384xf32> -> vector<2x384xf32>
    %214 = vector.extract_strided_slice %212 {offsets = [0, 0], sizes = [2, 128], strides = [1, 1]} : vector<2x384xf32> to vector<2x128xf32>
    %215 = vector.extract_strided_slice %213 {offsets = [0, 0], sizes = [2, 128], strides = [1, 1]} : vector<2x384xf32> to vector<2x128xf32>
    %216 = arith.addf %214, %215 : vector<2x128xf32>
    %217 = arith.negf %216 : vector<2x128xf32>
    %218 = math.exp %217 : vector<2x128xf32>
    %cst_40 = arith.constant 1.000000e+00 : f32
    %219 = vector.broadcast %cst_40 : f32 to vector<2x128xf32>
    %220 = arith.addf %219, %218 : vector<2x128xf32>
    %221 = arith.divf %219, %220 : vector<2x128xf32>
    %222 = vector.extract_strided_slice %212 {offsets = [0, 128], sizes = [2, 128], strides = [1, 1]} : vector<2x384xf32> to vector<2x128xf32>
    %223 = vector.extract_strided_slice %213 {offsets = [0, 128], sizes = [2, 128], strides = [1, 1]} : vector<2x384xf32> to vector<2x128xf32>
    %224 = arith.addf %222, %223 : vector<2x128xf32>
    %225 = arith.negf %224 : vector<2x128xf32>
    %226 = math.exp %225 : vector<2x128xf32>
    %cst_41 = arith.constant 1.000000e+00 : f32
    %227 = vector.broadcast %cst_41 : f32 to vector<2x128xf32>
    %228 = arith.addf %227, %226 : vector<2x128xf32>
    %229 = arith.divf %227, %228 : vector<2x128xf32>
    %230 = vector.extract_strided_slice %212 {offsets = [0, 256], sizes = [2, 128], strides = [1, 1]} : vector<2x384xf32> to vector<2x128xf32>
    %231 = vector.extract_strided_slice %213 {offsets = [0, 256], sizes = [2, 128], strides = [1, 1]} : vector<2x384xf32> to vector<2x128xf32>
    %232 = vector.broadcast %3 : vector<1x128xf32> to vector<2x128xf32>
    %233 = arith.addf %231, %232 : vector<2x128xf32>
    %234 = arith.mulf %221, %233 : vector<2x128xf32>
    %235 = arith.addf %230, %234 : vector<2x128xf32>
    %236 = math.tanh %235 : vector<2x128xf32>
    %237 = arith.subf %210, %236 : vector<2x128xf32>
    %238 = arith.mulf %229, %237 : vector<2x128xf32>
    %239 = arith.addf %236, %238 : vector<2x128xf32>
    %c14 = arith.constant 14 : index
    %c0_42 = arith.constant 0 : index
    %240 = vector.load %arg13[%c14, %c0_42] : memref<16x128xf32, #tpu.memory_space<vmem>>, vector<2x128xf32>
    tpu.vector_store %arg13[%c14, %c0_42], %239 {strides = array<i32>} : memref<16x128xf32, #tpu.memory_space<vmem>>, vector<2x128xf32>,
    %c0_43 = arith.constant 0 : index
    %c0_44 = arith.constant 0 : index
    %241 = vector.load %arg6[%c0_43, %c0_44] : memref<128x384xf32, #tpu.memory_space<vmem>>, vector<128x384xf32>
    %c0_45 = arith.constant 0 : index
    %c0_46 = arith.constant 0 : index
    %242 = vector.load %arg7[%c0_45, %c0_46] : memref<128x384xf32, #tpu.memory_space<vmem>>, vector<128x384xf32>
    %c0_47 = arith.constant 0 : index
    %c0_48 = arith.constant 0 : index
    %243 = vector.load %arg8[%c0_47, %c0_48] : memref<1x384xf32, #tpu.memory_space<vmem>>, vector<1x384xf32>
    %c0_49 = arith.constant 0 : index
    %c0_50 = arith.constant 0 : index
    %244 = vector.load %arg9[%c0_49, %c0_50] : memref<1x128xf32, #tpu.memory_space<vmem>>, vector<1x128xf32>
    %c0_51 = arith.constant 0 : index
    %c0_52 = arith.constant 0 : index
    %245 = vector.load %arg13[%c0_51, %c0_52] : memref<16x128xf32, #tpu.memory_space<vmem>>, vector<16x128xf32>
    %cst_53 = arith.constant dense<0.000000e+00> : vector<16x384xf32>
    %246 = tpu.matmul %245, %241, %cst_53 {dimension_numbers = #tpu.dot_dimension_numbers<[1], [0], [0], [1], [0, 0, 1, 1], [], []>} : vector<16x128xf32>, vector<128x384xf32>, vector<16x384xf32> -> vector<16x384xf32>
    %247 = vector.broadcast %243 : vector<1x384xf32> to vector<16x384xf32>
    %248 = arith.addf %246, %247 : vector<16x384xf32>
    %cst_54 = arith.constant 0.000000e+00 : f32
    %249 = vector.broadcast %cst_54 : f32 to vector<2x128xf32>
    %250 = vector.extract_strided_slice %248 {offsets = [0, 0], sizes = [2, 384], strides = [1, 1]} : vector<16x384xf32> to vector<2x384xf32>
    %cst_55 = arith.constant dense<0.000000e+00> : vector<2x384xf32>
    %251 = tpu.matmul %249, %242, %cst_55 {dimension_numbers = #tpu.dot_dimension_numbers<[1], [0], [0], [1], [0, 0, 1, 1], [], []>} : vector<2x128xf32>, vector<128x384xf32>, vector<2x384xf32> -> vector<2x384xf32>
    %252 = vector.extract_strided_slice %250 {offsets = [0, 0], sizes = [2, 128], strides = [1, 1]} : vector<2x384xf32> to vector<2x128xf32>
    %253 = vector.extract_strided_slice %251 {offsets = [0, 0], sizes = [2, 128], strides = [1, 1]} : vector<2x384xf32> to vector<2x128xf32>
    %254 = arith.addf %252, %253 : vector<2x128xf32>
    %255 = arith.negf %254 : vector<2x128xf32>
    %256 = math.exp %255 : vector<2x128xf32>
    %cst_56 = arith.constant 1.000000e+00 : f32
    %257 = vector.broadcast %cst_56 : f32 to vector<2x128xf32>
    %258 = arith.addf %257, %256 : vector<2x128xf32>
    %259 = arith.divf %257, %258 : vector<2x128xf32>
    %260 = vector.extract_strided_slice %250 {offsets = [0, 128], sizes = [2, 128], strides = [1, 1]} : vector<2x384xf32> to vector<2x128xf32>
    %261 = vector.extract_strided_slice %251 {offsets = [0, 128], sizes = [2, 128], strides = [1, 1]} : vector<2x384xf32> to vector<2x128xf32>
    %262 = arith.addf %260, %261 : vector<2x128xf32>
    %263 = arith.negf %262 : vector<2x128xf32>
    %264 = math.exp %263 : vector<2x128xf32>
    %cst_57 = arith.constant 1.000000e+00 : f32
    %265 = vector.broadcast %cst_57 : f32 to vector<2x128xf32>
    %266 = arith.addf %265, %264 : vector<2x128xf32>
    %267 = arith.divf %265, %266 : vector<2x128xf32>
    %268 = vector.extract_strided_slice %250 {offsets = [0, 256], sizes = [2, 128], strides = [1, 1]} : vector<2x384xf32> to vector<2x128xf32>
    %269 = vector.extract_strided_slice %251 {offsets = [0, 256], sizes = [2, 128], strides = [1, 1]} : vector<2x384xf32> to vector<2x128xf32>
    %270 = vector.broadcast %244 : vector<1x128xf32> to vector<2x128xf32>
    %271 = arith.addf %269, %270 : vector<2x128xf32>
    %272 = arith.mulf %259, %271 : vector<2x128xf32>
    %273 = arith.addf %268, %272 : vector<2x128xf32>
    %274 = math.tanh %273 : vector<2x128xf32>
    %275 = arith.subf %249, %274 : vector<2x128xf32>
    %276 = arith.mulf %267, %275 : vector<2x128xf32>
    %277 = arith.addf %274, %276 : vector<2x128xf32>
    %278 = vector.extract_strided_slice %248 {offsets = [2, 0], sizes = [2, 384], strides = [1, 1]} : vector<16x384xf32> to vector<2x384xf32>
    %cst_58 = arith.constant dense<0.000000e+00> : vector<2x384xf32>
    %279 = tpu.matmul %277, %242, %cst_58 {dimension_numbers = #tpu.dot_dimension_numbers<[1], [0], [0], [1], [0, 0, 1, 1], [], []>} : vector<2x128xf32>, vector<128x384xf32>, vector<2x384xf32> -> vector<2x384xf32>
    %280 = vector.extract_strided_slice %278 {offsets = [0, 0], sizes = [2, 128], strides = [1, 1]} : vector<2x384xf32> to vector<2x128xf32>
    %281 = vector.extract_strided_slice %279 {offsets = [0, 0], sizes = [2, 128], strides = [1, 1]} : vector<2x384xf32> to vector<2x128xf32>
    %282 = arith.addf %280, %281 : vector<2x128xf32>
    %283 = arith.negf %282 : vector<2x128xf32>
    %284 = math.exp %283 : vector<2x128xf32>
    %cst_59 = arith.constant 1.000000e+00 : f32
    %285 = vector.broadcast %cst_59 : f32 to vector<2x128xf32>
    %286 = arith.addf %285, %284 : vector<2x128xf32>
    %287 = arith.divf %285, %286 : vector<2x128xf32>
    %288 = vector.extract_strided_slice %278 {offsets = [0, 128], sizes = [2, 128], strides = [1, 1]} : vector<2x384xf32> to vector<2x128xf32>
    %289 = vector.extract_strided_slice %279 {offsets = [0, 128], sizes = [2, 128], strides = [1, 1]} : vector<2x384xf32> to vector<2x128xf32>
    %290 = arith.addf %288, %289 : vector<2x128xf32>
    %291 = arith.negf %290 : vector<2x128xf32>
    %292 = math.exp %291 : vector<2x128xf32>
    %cst_60 = arith.constant 1.000000e+00 : f32
    %293 = vector.broadcast %cst_60 : f32 to vector<2x128xf32>
    %294 = arith.addf %293, %292 : vector<2x128xf32>
    %295 = arith.divf %293, %294 : vector<2x128xf32>
    %296 = vector.extract_strided_slice %278 {offsets = [0, 256], sizes = [2, 128], strides = [1, 1]} : vector<2x384xf32> to vector<2x128xf32>
    %297 = vector.extract_strided_slice %279 {offsets = [0, 256], sizes = [2, 128], strides = [1, 1]} : vector<2x384xf32> to vector<2x128xf32>
    %298 = vector.broadcast %244 : vector<1x128xf32> to vector<2x128xf32>
    %299 = arith.addf %297, %298 : vector<2x128xf32>
    %300 = arith.mulf %287, %299 : vector<2x128xf32>
    %301 = arith.addf %296, %300 : vector<2x128xf32>
    %302 = math.tanh %301 : vector<2x128xf32>
    %303 = arith.subf %277, %302 : vector<2x128xf32>
    %304 = arith.mulf %295, %303 : vector<2x128xf32>
    %305 = arith.addf %302, %304 : vector<2x128xf32>
    %306 = vector.extract_strided_slice %248 {offsets = [4, 0], sizes = [2, 384], strides = [1, 1]} : vector<16x384xf32> to vector<2x384xf32>
    %cst_61 = arith.constant dense<0.000000e+00> : vector<2x384xf32>
    %307 = tpu.matmul %305, %242, %cst_61 {dimension_numbers = #tpu.dot_dimension_numbers<[1], [0], [0], [1], [0, 0, 1, 1], [], []>} : vector<2x128xf32>, vector<128x384xf32>, vector<2x384xf32> -> vector<2x384xf32>
    %308 = vector.extract_strided_slice %306 {offsets = [0, 0], sizes = [2, 128], strides = [1, 1]} : vector<2x384xf32> to vector<2x128xf32>
    %309 = vector.extract_strided_slice %307 {offsets = [0, 0], sizes = [2, 128], strides = [1, 1]} : vector<2x384xf32> to vector<2x128xf32>
    %310 = arith.addf %308, %309 : vector<2x128xf32>
    %311 = arith.negf %310 : vector<2x128xf32>
    %312 = math.exp %311 : vector<2x128xf32>
    %cst_62 = arith.constant 1.000000e+00 : f32
    %313 = vector.broadcast %cst_62 : f32 to vector<2x128xf32>
    %314 = arith.addf %313, %312 : vector<2x128xf32>
    %315 = arith.divf %313, %314 : vector<2x128xf32>
    %316 = vector.extract_strided_slice %306 {offsets = [0, 128], sizes = [2, 128], strides = [1, 1]} : vector<2x384xf32> to vector<2x128xf32>
    %317 = vector.extract_strided_slice %307 {offsets = [0, 128], sizes = [2, 128], strides = [1, 1]} : vector<2x384xf32> to vector<2x128xf32>
    %318 = arith.addf %316, %317 : vector<2x128xf32>
    %319 = arith.negf %318 : vector<2x128xf32>
    %320 = math.exp %319 : vector<2x128xf32>
    %cst_63 = arith.constant 1.000000e+00 : f32
    %321 = vector.broadcast %cst_63 : f32 to vector<2x128xf32>
    %322 = arith.addf %321, %320 : vector<2x128xf32>
    %323 = arith.divf %321, %322 : vector<2x128xf32>
    %324 = vector.extract_strided_slice %306 {offsets = [0, 256], sizes = [2, 128], strides = [1, 1]} : vector<2x384xf32> to vector<2x128xf32>
    %325 = vector.extract_strided_slice %307 {offsets = [0, 256], sizes = [2, 128], strides = [1, 1]} : vector<2x384xf32> to vector<2x128xf32>
    %326 = vector.broadcast %244 : vector<1x128xf32> to vector<2x128xf32>
    %327 = arith.addf %325, %326 : vector<2x128xf32>
    %328 = arith.mulf %315, %327 : vector<2x128xf32>
    %329 = arith.addf %324, %328 : vector<2x128xf32>
    %330 = math.tanh %329 : vector<2x128xf32>
    %331 = arith.subf %305, %330 : vector<2x128xf32>
    %332 = arith.mulf %323, %331 : vector<2x128xf32>
    %333 = arith.addf %330, %332 : vector<2x128xf32>
    %334 = vector.extract_strided_slice %248 {offsets = [6, 0], sizes = [2, 384], strides = [1, 1]} : vector<16x384xf32> to vector<2x384xf32>
    %cst_64 = arith.constant dense<0.000000e+00> : vector<2x384xf32>
    %335 = tpu.matmul %333, %242, %cst_64 {dimension_numbers = #tpu.dot_dimension_numbers<[1], [0], [0], [1], [0, 0, 1, 1], [], []>} : vector<2x128xf32>, vector<128x384xf32>, vector<2x384xf32> -> vector<2x384xf32>
    %336 = vector.extract_strided_slice %334 {offsets = [0, 0], sizes = [2, 128], strides = [1, 1]} : vector<2x384xf32> to vector<2x128xf32>
    %337 = vector.extract_strided_slice %335 {offsets = [0, 0], sizes = [2, 128], strides = [1, 1]} : vector<2x384xf32> to vector<2x128xf32>
    %338 = arith.addf %336, %337 : vector<2x128xf32>
    %339 = arith.negf %338 : vector<2x128xf32>
    %340 = math.exp %339 : vector<2x128xf32>
    %cst_65 = arith.constant 1.000000e+00 : f32
    %341 = vector.broadcast %cst_65 : f32 to vector<2x128xf32>
    %342 = arith.addf %341, %340 : vector<2x128xf32>
    %343 = arith.divf %341, %342 : vector<2x128xf32>
    %344 = vector.extract_strided_slice %334 {offsets = [0, 128], sizes = [2, 128], strides = [1, 1]} : vector<2x384xf32> to vector<2x128xf32>
    %345 = vector.extract_strided_slice %335 {offsets = [0, 128], sizes = [2, 128], strides = [1, 1]} : vector<2x384xf32> to vector<2x128xf32>
    %346 = arith.addf %344, %345 : vector<2x128xf32>
    %347 = arith.negf %346 : vector<2x128xf32>
    %348 = math.exp %347 : vector<2x128xf32>
    %cst_66 = arith.constant 1.000000e+00 : f32
    %349 = vector.broadcast %cst_66 : f32 to vector<2x128xf32>
    %350 = arith.addf %349, %348 : vector<2x128xf32>
    %351 = arith.divf %349, %350 : vector<2x128xf32>
    %352 = vector.extract_strided_slice %334 {offsets = [0, 256], sizes = [2, 128], strides = [1, 1]} : vector<2x384xf32> to vector<2x128xf32>
    %353 = vector.extract_strided_slice %335 {offsets = [0, 256], sizes = [2, 128], strides = [1, 1]} : vector<2x384xf32> to vector<2x128xf32>
    %354 = vector.broadcast %244 : vector<1x128xf32> to vector<2x128xf32>
    %355 = arith.addf %353, %354 : vector<2x128xf32>
    %356 = arith.mulf %343, %355 : vector<2x128xf32>
    %357 = arith.addf %352, %356 : vector<2x128xf32>
    %358 = math.tanh %357 : vector<2x128xf32>
    %359 = arith.subf %333, %358 : vector<2x128xf32>
    %360 = arith.mulf %351, %359 : vector<2x128xf32>
    %361 = arith.addf %358, %360 : vector<2x128xf32>
    %362 = vector.extract_strided_slice %248 {offsets = [8, 0], sizes = [2, 384], strides = [1, 1]} : vector<16x384xf32> to vector<2x384xf32>
    %cst_67 = arith.constant dense<0.000000e+00> : vector<2x384xf32>
    %363 = tpu.matmul %361, %242, %cst_67 {dimension_numbers = #tpu.dot_dimension_numbers<[1], [0], [0], [1], [0, 0, 1, 1], [], []>} : vector<2x128xf32>, vector<128x384xf32>, vector<2x384xf32> -> vector<2x384xf32>
    %364 = vector.extract_strided_slice %362 {offsets = [0, 0], sizes = [2, 128], strides = [1, 1]} : vector<2x384xf32> to vector<2x128xf32>
    %365 = vector.extract_strided_slice %363 {offsets = [0, 0], sizes = [2, 128], strides = [1, 1]} : vector<2x384xf32> to vector<2x128xf32>
    %366 = arith.addf %364, %365 : vector<2x128xf32>
    %367 = arith.negf %366 : vector<2x128xf32>
    %368 = math.exp %367 : vector<2x128xf32>
    %cst_68 = arith.constant 1.000000e+00 : f32
    %369 = vector.broadcast %cst_68 : f32 to vector<2x128xf32>
    %370 = arith.addf %369, %368 : vector<2x128xf32>
    %371 = arith.divf %369, %370 : vector<2x128xf32>
    %372 = vector.extract_strided_slice %362 {offsets = [0, 128], sizes = [2, 128], strides = [1, 1]} : vector<2x384xf32> to vector<2x128xf32>
    %373 = vector.extract_strided_slice %363 {offsets = [0, 128], sizes = [2, 128], strides = [1, 1]} : vector<2x384xf32> to vector<2x128xf32>
    %374 = arith.addf %372, %373 : vector<2x128xf32>
    %375 = arith.negf %374 : vector<2x128xf32>
    %376 = math.exp %375 : vector<2x128xf32>
    %cst_69 = arith.constant 1.000000e+00 : f32
    %377 = vector.broadcast %cst_69 : f32 to vector<2x128xf32>
    %378 = arith.addf %377, %376 : vector<2x128xf32>
    %379 = arith.divf %377, %378 : vector<2x128xf32>
    %380 = vector.extract_strided_slice %362 {offsets = [0, 256], sizes = [2, 128], strides = [1, 1]} : vector<2x384xf32> to vector<2x128xf32>
    %381 = vector.extract_strided_slice %363 {offsets = [0, 256], sizes = [2, 128], strides = [1, 1]} : vector<2x384xf32> to vector<2x128xf32>
    %382 = vector.broadcast %244 : vector<1x128xf32> to vector<2x128xf32>
    %383 = arith.addf %381, %382 : vector<2x128xf32>
    %384 = arith.mulf %371, %383 : vector<2x128xf32>
    %385 = arith.addf %380, %384 : vector<2x128xf32>
    %386 = math.tanh %385 : vector<2x128xf32>
    %387 = arith.subf %361, %386 : vector<2x128xf32>
    %388 = arith.mulf %379, %387 : vector<2x128xf32>
    %389 = arith.addf %386, %388 : vector<2x128xf32>
    %390 = vector.extract_strided_slice %248 {offsets = [10, 0], sizes = [2, 384], strides = [1, 1]} : vector<16x384xf32> to vector<2x384xf32>
    %cst_70 = arith.constant dense<0.000000e+00> : vector<2x384xf32>
    %391 = tpu.matmul %389, %242, %cst_70 {dimension_numbers = #tpu.dot_dimension_numbers<[1], [0], [0], [1], [0, 0, 1, 1], [], []>} : vector<2x128xf32>, vector<128x384xf32>, vector<2x384xf32> -> vector<2x384xf32>
    %392 = vector.extract_strided_slice %390 {offsets = [0, 0], sizes = [2, 128], strides = [1, 1]} : vector<2x384xf32> to vector<2x128xf32>
    %393 = vector.extract_strided_slice %391 {offsets = [0, 0], sizes = [2, 128], strides = [1, 1]} : vector<2x384xf32> to vector<2x128xf32>
    %394 = arith.addf %392, %393 : vector<2x128xf32>
    %395 = arith.negf %394 : vector<2x128xf32>
    %396 = math.exp %395 : vector<2x128xf32>
    %cst_71 = arith.constant 1.000000e+00 : f32
    %397 = vector.broadcast %cst_71 : f32 to vector<2x128xf32>
    %398 = arith.addf %397, %396 : vector<2x128xf32>
    %399 = arith.divf %397, %398 : vector<2x128xf32>
    %400 = vector.extract_strided_slice %390 {offsets = [0, 128], sizes = [2, 128], strides = [1, 1]} : vector<2x384xf32> to vector<2x128xf32>
    %401 = vector.extract_strided_slice %391 {offsets = [0, 128], sizes = [2, 128], strides = [1, 1]} : vector<2x384xf32> to vector<2x128xf32>
    %402 = arith.addf %400, %401 : vector<2x128xf32>
    %403 = arith.negf %402 : vector<2x128xf32>
    %404 = math.exp %403 : vector<2x128xf32>
    %cst_72 = arith.constant 1.000000e+00 : f32
    %405 = vector.broadcast %cst_72 : f32 to vector<2x128xf32>
    %406 = arith.addf %405, %404 : vector<2x128xf32>
    %407 = arith.divf %405, %406 : vector<2x128xf32>
    %408 = vector.extract_strided_slice %390 {offsets = [0, 256], sizes = [2, 128], strides = [1, 1]} : vector<2x384xf32> to vector<2x128xf32>
    %409 = vector.extract_strided_slice %391 {offsets = [0, 256], sizes = [2, 128], strides = [1, 1]} : vector<2x384xf32> to vector<2x128xf32>
    %410 = vector.broadcast %244 : vector<1x128xf32> to vector<2x128xf32>
    %411 = arith.addf %409, %410 : vector<2x128xf32>
    %412 = arith.mulf %399, %411 : vector<2x128xf32>
    %413 = arith.addf %408, %412 : vector<2x128xf32>
    %414 = math.tanh %413 : vector<2x128xf32>
    %415 = arith.subf %389, %414 : vector<2x128xf32>
    %416 = arith.mulf %407, %415 : vector<2x128xf32>
    %417 = arith.addf %414, %416 : vector<2x128xf32>
    %418 = vector.extract_strided_slice %248 {offsets = [12, 0], sizes = [2, 384], strides = [1, 1]} : vector<16x384xf32> to vector<2x384xf32>
    %cst_73 = arith.constant dense<0.000000e+00> : vector<2x384xf32>
    %419 = tpu.matmul %417, %242, %cst_73 {dimension_numbers = #tpu.dot_dimension_numbers<[1], [0], [0], [1], [0, 0, 1, 1], [], []>} : vector<2x128xf32>, vector<128x384xf32>, vector<2x384xf32> -> vector<2x384xf32>
    %420 = vector.extract_strided_slice %418 {offsets = [0, 0], sizes = [2, 128], strides = [1, 1]} : vector<2x384xf32> to vector<2x128xf32>
    %421 = vector.extract_strided_slice %419 {offsets = [0, 0], sizes = [2, 128], strides = [1, 1]} : vector<2x384xf32> to vector<2x128xf32>
    %422 = arith.addf %420, %421 : vector<2x128xf32>
    %423 = arith.negf %422 : vector<2x128xf32>
    %424 = math.exp %423 : vector<2x128xf32>
    %cst_74 = arith.constant 1.000000e+00 : f32
    %425 = vector.broadcast %cst_74 : f32 to vector<2x128xf32>
    %426 = arith.addf %425, %424 : vector<2x128xf32>
    %427 = arith.divf %425, %426 : vector<2x128xf32>
    %428 = vector.extract_strided_slice %418 {offsets = [0, 128], sizes = [2, 128], strides = [1, 1]} : vector<2x384xf32> to vector<2x128xf32>
    %429 = vector.extract_strided_slice %419 {offsets = [0, 128], sizes = [2, 128], strides = [1, 1]} : vector<2x384xf32> to vector<2x128xf32>
    %430 = arith.addf %428, %429 : vector<2x128xf32>
    %431 = arith.negf %430 : vector<2x128xf32>
    %432 = math.exp %431 : vector<2x128xf32>
    %cst_75 = arith.constant 1.000000e+00 : f32
    %433 = vector.broadcast %cst_75 : f32 to vector<2x128xf32>
    %434 = arith.addf %433, %432 : vector<2x128xf32>
    %435 = arith.divf %433, %434 : vector<2x128xf32>
    %436 = vector.extract_strided_slice %418 {offsets = [0, 256], sizes = [2, 128], strides = [1, 1]} : vector<2x384xf32> to vector<2x128xf32>
    %437 = vector.extract_strided_slice %419 {offsets = [0, 256], sizes = [2, 128], strides = [1, 1]} : vector<2x384xf32> to vector<2x128xf32>
    %438 = vector.broadcast %244 : vector<1x128xf32> to vector<2x128xf32>
    %439 = arith.addf %437, %438 : vector<2x128xf32>
    %440 = arith.mulf %427, %439 : vector<2x128xf32>
    %441 = arith.addf %436, %440 : vector<2x128xf32>
    %442 = math.tanh %441 : vector<2x128xf32>
    %443 = arith.subf %417, %442 : vector<2x128xf32>
    %444 = arith.mulf %435, %443 : vector<2x128xf32>
    %445 = arith.addf %442, %444 : vector<2x128xf32>
    %446 = vector.extract_strided_slice %248 {offsets = [14, 0], sizes = [2, 384], strides = [1, 1]} : vector<16x384xf32> to vector<2x384xf32>
    %cst_76 = arith.constant dense<0.000000e+00> : vector<2x384xf32>
    %447 = tpu.matmul %445, %242, %cst_76 {dimension_numbers = #tpu.dot_dimension_numbers<[1], [0], [0], [1], [0, 0, 1, 1], [], []>} : vector<2x128xf32>, vector<128x384xf32>, vector<2x384xf32> -> vector<2x384xf32>
    %448 = vector.extract_strided_slice %446 {offsets = [0, 0], sizes = [2, 128], strides = [1, 1]} : vector<2x384xf32> to vector<2x128xf32>
    %449 = vector.extract_strided_slice %447 {offsets = [0, 0], sizes = [2, 128], strides = [1, 1]} : vector<2x384xf32> to vector<2x128xf32>
    %450 = arith.addf %448, %449 : vector<2x128xf32>
    %451 = arith.negf %450 : vector<2x128xf32>
    %452 = math.exp %451 : vector<2x128xf32>
    %cst_77 = arith.constant 1.000000e+00 : f32
    %453 = vector.broadcast %cst_77 : f32 to vector<2x128xf32>
    %454 = arith.addf %453, %452 : vector<2x128xf32>
    %455 = arith.divf %453, %454 : vector<2x128xf32>
    %456 = vector.extract_strided_slice %446 {offsets = [0, 128], sizes = [2, 128], strides = [1, 1]} : vector<2x384xf32> to vector<2x128xf32>
    %457 = vector.extract_strided_slice %447 {offsets = [0, 128], sizes = [2, 128], strides = [1, 1]} : vector<2x384xf32> to vector<2x128xf32>
    %458 = arith.addf %456, %457 : vector<2x128xf32>
    %459 = arith.negf %458 : vector<2x128xf32>
    %460 = math.exp %459 : vector<2x128xf32>
    %cst_78 = arith.constant 1.000000e+00 : f32
    %461 = vector.broadcast %cst_78 : f32 to vector<2x128xf32>
    %462 = arith.addf %461, %460 : vector<2x128xf32>
    %463 = arith.divf %461, %462 : vector<2x128xf32>
    %464 = vector.extract_strided_slice %446 {offsets = [0, 256], sizes = [2, 128], strides = [1, 1]} : vector<2x384xf32> to vector<2x128xf32>
    %465 = vector.extract_strided_slice %447 {offsets = [0, 256], sizes = [2, 128], strides = [1, 1]} : vector<2x384xf32> to vector<2x128xf32>
    %466 = vector.broadcast %244 : vector<1x128xf32> to vector<2x128xf32>
    %467 = arith.addf %465, %466 : vector<2x128xf32>
    %468 = arith.mulf %455, %467 : vector<2x128xf32>
    %469 = arith.addf %464, %468 : vector<2x128xf32>
    %470 = math.tanh %469 : vector<2x128xf32>
    %471 = arith.subf %445, %470 : vector<2x128xf32>
    %472 = arith.mulf %463, %471 : vector<2x128xf32>
    %473 = arith.addf %470, %472 : vector<2x128xf32>
    %c0_79 = arith.constant 0 : index
    %c0_80 = arith.constant 0 : index
    %474 = vector.load %arg10[%c0_79, %c0_80] : memref<128x128xf32, #tpu.memory_space<vmem>>, vector<128x128xf32>
    %cst_81 = arith.constant dense<0.000000e+00> : vector<2x128xf32>
    %475 = tpu.matmul %473, %474, %cst_81 {dimension_numbers = #tpu.dot_dimension_numbers<[1], [0], [0], [1], [0, 0, 1, 1], [], []>} : vector<2x128xf32>, vector<128x128xf32>, vector<2x128xf32> -> vector<2x128xf32>
    %c0_82 = arith.constant 0 : index
    %c0_83 = arith.constant 0 : index
    %476 = vector.load %arg11[%c0_82, %c0_83] : memref<1x128xf32, #tpu.memory_space<vmem>>, vector<1x128xf32>
    %477 = vector.broadcast %476 : vector<1x128xf32> to vector<2x128xf32>
    %478 = arith.addf %475, %477 : vector<2x128xf32>
    %c0_84 = arith.constant 0 : index
    %c0_85 = arith.constant 0 : index
    %479 = vector.load %arg12[%c0_84, %c0_85] : memref<2x128xf32, #tpu.memory_space<vmem>>, vector<2x128xf32>
    tpu.vector_store %arg12[%c0_84, %c0_85], %478 {strides = array<i32>} : memref<2x128xf32, #tpu.memory_space<vmem>>, vector<2x128xf32>,
    return
  }
  func.func @transform_0(%arg0: i32) -> (i32, i32) {
    %c0_i32 = arith.constant 0 : i32
    %c0_i32_0 = arith.constant 0 : i32
    %c0_i32_1 = arith.constant 0 : i32
    return %c0_i32, %c0_i32_0 : i32, i32
  }
  func.func @transform_1(%arg0: i32) -> (i32, i32) {
    %c0_i32 = arith.constant 0 : i32
    %c0_i32_0 = arith.constant 0 : i32
    %c0_i32_1 = arith.constant 0 : i32
    return %c0_i32, %c0_i32_0 : i32, i32
  }
  func.func @transform_2(%arg0: i32) -> (i32, i32) {
    %c0_i32 = arith.constant 0 : i32
    %c0_i32_0 = arith.constant 0 : i32
    %c0_i32_1 = arith.constant 0 : i32
    return %c0_i32, %c0_i32_0 : i32, i32
  }
  func.func @transform_3(%arg0: i32) -> (i32, i32) {
    %c0_i32 = arith.constant 0 : i32
    %c0_i32_0 = arith.constant 0 : i32
    %c0_i32_1 = arith.constant 0 : i32
    return %c0_i32, %c0_i32_0 : i32, i32
  }
  func.func @transform_4(%arg0: i32) -> (i32, i32) {
    %c0_i32 = arith.constant 0 : i32
    %c0_i32_0 = arith.constant 0 : i32
    %c0_i32_1 = arith.constant 0 : i32
    return %c0_i32, %c0_i32_0 : i32, i32
  }
  func.func @transform_5(%arg0: i32) -> (i32, i32) {
    %c0_i32 = arith.constant 0 : i32
    %c0_i32_0 = arith.constant 0 : i32
    %c0_i32_1 = arith.constant 0 : i32
    return %c0_i32, %c0_i32_0 : i32, i32
  }
  func.func @transform_6(%arg0: i32) -> (i32, i32) {
    %c0_i32 = arith.constant 0 : i32
    %c0_i32_0 = arith.constant 0 : i32
    %c0_i32_1 = arith.constant 0 : i32
    return %c0_i32, %c0_i32_0 : i32, i32
  }
  func.func @transform_7(%arg0: i32) -> (i32, i32) {
    %c0_i32 = arith.constant 0 : i32
    %c0_i32_0 = arith.constant 0 : i32
    %c0_i32_1 = arith.constant 0 : i32
    return %c0_i32, %c0_i32_0 : i32, i32
  }
  func.func @transform_8(%arg0: i32) -> (i32, i32) {
    %c0_i32 = arith.constant 0 : i32
    %c0_i32_0 = arith.constant 0 : i32
    %c0_i32_1 = arith.constant 0 : i32
    return %c0_i32, %c0_i32_0 : i32, i32
  }
  func.func @transform_9(%arg0: i32) -> (i32, i32) {
    %c0_i32 = arith.constant 0 : i32
    %c0_i32_0 = arith.constant 0 : i32
    %c0_i32_1 = arith.constant 0 : i32
    return %c0_i32, %c0_i32_0 : i32, i32
  }
  func.func @transform_10(%arg0: i32) -> (i32, i32) {
    %c0_i32 = arith.constant 0 : i32
    %c0_i32_0 = arith.constant 0 : i32
    %c0_i32_1 = arith.constant 0 : i32
    return %c0_i32, %c0_i32_0 : i32, i32
  }
  func.func @transform_11(%arg0: i32) -> (i32, i32) {
    %c0_i32 = arith.constant 0 : i32
    %c0_i32_0 = arith.constant 0 : i32
    %c0_i32_1 = arith.constant 0 : i32
    return %c0_i32, %c0_i32_0 : i32, i32
  }
}

</mosaic_0001>

<llo_original>
// kernel: tpu_custom_call.1
$region0: #{tpu_custom_call.1}
  #allocation0 [shape = 'u32[]', space=smem, size = 0x4, offset = 0x4, fixed_abs, tag = 'smem constant byte address 0x4 - core index']
  #allocation1 [shape = 'u32[144,128]{1,0:T(1,128)}', space=vmem, size = 0x12000, scoped, tag = 'internal scratch']
  #allocation2 [shape = 'f32[16,128]{1,0:T(8,128)}', space=vmem, size = 0x2000, scoped, tag = 'scratch operand']
  %s0 = inlined_call_operand.vmem [shape: f32[16,4], index: 0, kind: input, shape index: {}]
  %s1 = inlined_call_operand.vmem [shape: f32[4,384], index: 1, kind: input, shape index: {}]
  %s2 = inlined_call_operand.hbm [shape: f32[128,384], index: 2, kind: input, shape index: {}]
  %s3 = inlined_call_operand.vmem [shape: f32[1,384], index: 3, kind: input, shape index: {}]
  %s4 = inlined_call_operand.vmem [shape: f32[1,128], index: 4, kind: input, shape index: {}]
  %s5 = inlined_call_operand.hbm [shape: f32[128,384], index: 5, kind: input, shape index: {}]
  %s6 = inlined_call_operand.hbm [shape: f32[128,384], index: 6, kind: input, shape index: {}]
  %s7 = inlined_call_operand.vmem [shape: f32[1,384], index: 7, kind: input, shape index: {}]
  %s8 = inlined_call_operand.vmem [shape: f32[1,128], index: 8, kind: input, shape index: {}]
  %s9 = inlined_call_operand.hbm [shape: f32[128,128], index: 9, kind: input, shape index: {}]
  %s10 = inlined_call_operand.vmem [shape: f32[1,128], index: 10, kind: input, shape index: {}]
  %s11 = inlined_call_operand.hbm [shape: f32[2,128], index: 11, kind: output, shape index: {}]
  %s12 = sld [smem:[#allocation0]]
  $region70: #{tpu_custom_call.1} parent=0
    _
  %s14 = ssub.s32 1, %s12
  %s15 = scalar_select 0, %s14, %s12
  $region1: #{tpu_custom_call.1} parent=0
    #allocation3 [shape = 'u8[196608]{0}', space=vmem, size = 0x30000, scoped, tag = 'input window, operand 2, single buffered']
    #allocation4 [shape = 's32[1]{0}', space=sflag, size = 0x4, scoped, tag = 'scoped memory for tpu_custom_call.1']
    #allocation5 [shape = 's32[1]{0}', space=sflag, size = 0x4, scoped, tag = 'scoped memory for tpu_custom_call.1']
    #allocation6 [shape = 'u8[196608]{0}', space=vmem, size = 0x30000, scoped, tag = 'input window, operand 5, single buffered']
    #allocation7 [shape = 's32[1]{0}', space=sflag, size = 0x4, scoped, tag = 'scoped memory for tpu_custom_call.1']
    #allocation8 [shape = 'u8[196608]{0}', space=vmem, size = 0x30000, scoped, tag = 'input window, operand 6, single buffered']
    #allocation9 [shape = 'u8[65536]{0}', space=vmem, size = 0x10000, scoped, tag = 'input window, operand 9, single buffered']
    #allocation10 [shape = 's32[1]{0}', space=sflag, size = 0x4, scoped, tag = 'scoped memory for tpu_custom_call.1']
    #allocation11 [shape = 'u8[1024]{0}', space=vmem, size = 0x400, scoped, tag = 'output window, operand 0, single buffered']
    %16 = vsyncpa [#allocation4], 0
    %17 = vsyncpa [#allocation7], 0
    %18 = vsyncpa [#allocation10], 0
    %19 = vsyncpa [#allocation5], 0
    // Predicated region
    $region2: #{tpu_custom_call.1} parent=1 // pred_check
      _
    $region3: #{tpu_custom_call.1} parent=1 // pred_check_branch
      %21 = sbr.rel (0) target = $region5
    $region4: #{tpu_custom_call.1} parent=1 // pred_region
      _
    $region5: #{tpu_custom_call.1} parent=1 // pred_fallthru
      _
    // Predicated region
    $region6: #{tpu_custom_call.1} parent=1 // pred_check
      _
    $region7: #{tpu_custom_call.1} parent=1 // pred_check_branch
      %23 = sbr.rel (0) target = $region9
    $region8: #{tpu_custom_call.1} parent=1 // pred_region
      _
    $region9: #{tpu_custom_call.1} parent=1 // pred_fallthru
      _
    // Predicated region
    $region10: #{tpu_custom_call.1} parent=1 // pred_check
      _
    $region11: #{tpu_custom_call.1} parent=1 // pred_check_branch
      %25 = sbr.rel (0) target = $region13
    $region12: #{tpu_custom_call.1} parent=1 // pred_region
      %s27 = ssub.s32 6144, 6144
      %28 = vsyncadd [#allocation4], %s27
      %s29 = sshll.u32 [#allocation3], 4
      %s30 = int_to_ptr.vmem [resolvable:$true] %s29
      %35 = dma.hbm_to_vmem [thread:$0]  %s2, 6144, %s30, [#allocation4], 384, 384, 24
    $region13: #{tpu_custom_call.1} parent=1 // pred_fallthru
      _
    // Predicated region
    $region14: #{tpu_custom_call.1} parent=1 // pred_check
      _
    $region15: #{tpu_custom_call.1} parent=1 // pred_check_branch
      %37 = sbr.rel (0) target = $region17
    $region16: #{tpu_custom_call.1} parent=1 // pred_region
      _
    $region17: #{tpu_custom_call.1} parent=1 // pred_fallthru
      _
    // Predicated region
    $region18: #{tpu_custom_call.1} parent=1 // pred_check
      _
    $region19: #{tpu_custom_call.1} parent=1 // pred_check_branch
      %39 = sbr.rel (0) target = $region21
    $region20: #{tpu_custom_call.1} parent=1 // pred_region
      _
    $region21: #{tpu_custom_call.1} parent=1 // pred_fallthru
      _
    // Predicated region
    $region22: #{tpu_custom_call.1} parent=1 // pred_check
      _
    $region23: #{tpu_custom_call.1} parent=1 // pred_check_branch
      %41 = sbr.rel (0) target = $region25
    $region24: #{tpu_custom_call.1} parent=1 // pred_region
      %s43 = ssub.s32 6144, 6144
      %44 = vsyncadd [#allocation7], %s43
      %s45 = sshll.u32 [#allocation6], 4
      %s46 = int_to_ptr.vmem [resolvable:$true] %s45
      %51 = dma.hbm_to_vmem [thread:$0]  %s5, 6144, %s46, [#allocation7], 384, 384, 24
    $region25: #{tpu_custom_call.1} parent=1 // pred_fallthru
      _
    // Predicated region
    $region26: #{tpu_custom_call.1} parent=1 // pred_check
      _
    $region27: #{tpu_custom_call.1} parent=1 // pred_check_branch
      %53 = sbr.rel (0) target = $region29
    $region28: #{tpu_custom_call.1} parent=1 // pred_region
      %s55 = ssub.s32 6144, 6144
      %56 = vsyncadd [#allocation7], %s55
      %s57 = sshll.u32 [#allocation8], 4
      %s58 = int_to_ptr.vmem [resolvable:$true] %s57
      %63 = dma.hbm_to_vmem [thread:$0]  %s6, 6144, %s58, [#allocation7], 384, 384, 24
    $region29: #{tpu_custom_call.1} parent=1 // pred_fallthru
      _
    // Predicated region
    $region30: #{tpu_custom_call.1} parent=1 // pred_check
      _
    $region31: #{tpu_custom_call.1} parent=1 // pred_check_branch
      %65 = sbr.rel (0) target = $region33
    $region32: #{tpu_custom_call.1} parent=1 // pred_region
      _
    $region33: #{tpu_custom_call.1} parent=1 // pred_fallthru
      _
    // Predicated region
    $region34: #{tpu_custom_call.1} parent=1 // pred_check
      _
    $region35: #{tpu_custom_call.1} parent=1 // pred_check_branch
      %67 = sbr.rel (0) target = $region37
    $region36: #{tpu_custom_call.1} parent=1 // pred_region
      _
    $region37: #{tpu_custom_call.1} parent=1 // pred_fallthru
      _
    // Predicated region
    $region38: #{tpu_custom_call.1} parent=1 // pred_check
      _
    $region39: #{tpu_custom_call.1} parent=1 // pred_check_branch
      %69 = sbr.rel (0) target = $region41
    $region40: #{tpu_custom_call.1} parent=1 // pred_region
      %s71 = ssub.s32 2048, 2048
      %72 = vsyncadd [#allocation10], %s71
      %s73 = sshll.u32 [#allocation9], 4
      %s74 = int_to_ptr.vmem [resolvable:$true] %s73
      %79 = dma.hbm_to_vmem [thread:$0]  %s9, 2048, %s74, [#allocation10], 128, 128, 8
    $region41: #{tpu_custom_call.1} parent=1 // pred_fallthru
      _
    // Predicated region
    $region42: #{tpu_custom_call.1} parent=1 // pred_check
      _
    $region43: #{tpu_custom_call.1} parent=1 // pred_check_branch
      %81 = sbr.rel (0) target = $region45
    $region44: #{tpu_custom_call.1} parent=1 // pred_region
      _
    $region45: #{tpu_custom_call.1} parent=1 // pred_fallthru
      _
    // Predicated region
    $region46: #{tpu_custom_call.1} parent=1 // pred_check
      _
    $region47: #{tpu_custom_call.1} parent=1 // pred_check_branch
      %83 = sbr.rel (0) target = $region49
    $region48: #{tpu_custom_call.1} parent=1 // pred_region
      %84 = dma.done [#allocation4], 6144
    $region49: #{tpu_custom_call.1} parent=1 // pred_fallthru
      _
    // Predicated region
    $region50: #{tpu_custom_call.1} parent=1 // pred_check
      _
    $region51: #{tpu_custom_call.1} parent=1 // pred_check_branch
      %86 = sbr.rel (0) target = $region53
    $region52: #{tpu_custom_call.1} parent=1 // pred_region
      %87 = dma.done [#allocation7], 6144
    $region53: #{tpu_custom_call.1} parent=1 // pred_fallthru
      _
    // Predicated region
    $region54: #{tpu_custom_call.1} parent=1 // pred_check
      _
    $region55: #{tpu_custom_call.1} parent=1 // pred_check_branch
      %89 = sbr.rel (0) target = $region57
    $region56: #{tpu_custom_call.1} parent=1 // pred_region
      %90 = dma.done [#allocation7], 6144
    $region57: #{tpu_custom_call.1} parent=1 // pred_fallthru
      _
    // Predicated region
    $region58: #{tpu_custom_call.1} parent=1 // pred_check
      _
    $region59: #{tpu_custom_call.1} parent=1 // pred_check_branch
      %92 = sbr.rel (0) target = $region61
    $region60: #{tpu_custom_call.1} parent=1 // pred_region
      %93 = dma.done [#allocation10], 2048
    $region61: #{tpu_custom_call.1} parent=1 // pred_fallthru
      _
    %v94 = vld [vmem:[%s1] sm:$0xff]
    %v95 = vld [vmem:[%s1 + $0x8] sm:$0xf]
    %v96 = vld [vmem:[#allocation3] sm:$0xff]
    %v97 = vld [vmem:[#allocation3 + $0x8] sm:$0xff]
    %v98 = vld [vmem:[#allocation3 + $0x10] sm:$0xff]
    %v99 = vld [vmem:[#allocation3 + $0x18] sm:$0xff]
    %v100 = vld [vmem:[#allocation3 + $0x20] sm:$0xff]
    %v101 = vld [vmem:[#allocation3 + $0x28] sm:$0xff]
    %v102 = vld [vmem:[#allocation3 + $0x30] sm:$0xff]
    %v103 = vld [vmem:[#allocation3 + $0x38] sm:$0xff]
    %v104 = vld [vmem:[#allocation3 + $0x40] sm:$0xff]
    %v105 = vld [vmem:[#allocation3 + $0x48] sm:$0xff]
    %v106 = vld [vmem:[#allocation3 + $0x50] sm:$0xff]
    %v107 = vld [vmem:[#allocation3 + $0x58] sm:$0xff]
    %v108 = vld [vmem:[#allocation3 + $0x60] sm:$0xff]
    %v109 = vld [vmem:[#allocation3 + $0x68] sm:$0xff]
    %v110 = vld [vmem:[#allocation3 + $0x70] sm:$0xff]
    %v111 = vld [vmem:[#allocation3 + $0x78] sm:$0xff]
    %v112 = vld [vmem:[#allocation3 + $0x80] sm:$0xff]
    %v113 = vld [vmem:[#allocation3 + $0x88] sm:$0xff]
    %v114 = vld [vmem:[#allocation3 + $0x90] sm:$0xff]
    %v115 = vld [vmem:[#allocation3 + $0x98] sm:$0xff]
    %v116 = vld [vmem:[#allocation3 + $0xa0] sm:$0xff]
    %v117 = vld [vmem:[#allocation3 + $0xa8] sm:$0xff]
    %v118 = vld [vmem:[#allocation3 + $0xb0] sm:$0xff]
    %v119 = vld [vmem:[#allocation3 + $0xb8] sm:$0xff]
    %v120 = vld [vmem:[#allocation3 + $0xc0] sm:$0xff]
    %v121 = vld [vmem:[#allocation3 + $0xc8] sm:$0xff]
    %v122 = vld [vmem:[#allocation3 + $0xd0] sm:$0xff]
    %v123 = vld [vmem:[#allocation3 + $0xd8] sm:$0xff]
    %v124 = vld [vmem:[#allocation3 + $0xe0] sm:$0xff]
    %v125 = vld [vmem:[#allocation3 + $0xe8] sm:$0xff]
    %v126 = vld [vmem:[#allocation3 + $0xf0] sm:$0xff]
    %v127 = vld [vmem:[#allocation3 + $0xf8] sm:$0xff]
    %v128 = vld [vmem:[#allocation3 + $0x100] sm:$0xff]
    %v129 = vld [vmem:[#allocation3 + $0x108] sm:$0xff]
    %v130 = vld [vmem:[#allocation3 + $0x110] sm:$0xff]
    %v131 = vld [vmem:[#allocation3 + $0x118] sm:$0xff]
    %v132 = vld [vmem:[#allocation3 + $0x120] sm:$0xff]
    %v133 = vld [vmem:[#allocation3 + $0x128] sm:$0xff]
    %v134 = vld [vmem:[#allocation3 + $0x130] sm:$0xff]
    %v135 = vld [vmem:[#allocation3 + $0x138] sm:$0xff]
    %v136 = vld [vmem:[#allocation3 + $0x140] sm:$0xff]
    %v137 = vld [vmem:[#allocation3 + $0x148] sm:$0xff]
    %v138 = vld [vmem:[#allocation3 + $0x150] sm:$0xff]
    %v139 = vld [vmem:[#allocation3 + $0x158] sm:$0xff]
    %v140 = vld [vmem:[#allocation3 + $0x160] sm:$0xff]
    %v141 = vld [vmem:[#allocation3 + $0x168] sm:$0xff]
    %v142 = vld [vmem:[#allocation3 + $0x170] sm:$0xff]
    %v143 = vld [vmem:[#allocation3 + $0x178] sm:$0xff]
    %v144 = vld [vmem:[%s3] sm:$0x7]
    %v145 = vld [vmem:[%s4] sm:$0x1]
    %v146 = vld [vmem:[%s0] sm:$0xff]
    %v147 = vld [vmem:[%s0 + $0x8] sm:$0xff]
    %v149 = vlaneseq
    %v150 = vshrl.u32 %v149, 7
    %v151 = vsub.s32 0, %v150
    %v152 = vrot.slane %v144, %v151
    %v153 = vlaneseq
    %v154 = vshrl.u32 %v153, 7
    %v155 = vsub.s32 1, %v154
    %v156 = vrot.slane %v144, %v155
    %v157 = vlaneseq
    %v158 = vshrl.u32 %v157, 7
    %v159 = vsub.s32 2, %v158
    %v160 = vrot.slane %v144, %v159
    %v166 = vcombine.high %v94, %v94
    %vm167 = vcmask 31744
    %v169 = vsel %vm167, %v146, 0
    %v172 = vsel %vm167, %v147, 0
    %vm174 = vcmask 1043456
    %v175 = vsel %vm174, %v94, 0
    %v177 = vsel %vm174, %v166, 0
    %v179 = vsel %vm174, %v95, 0
    %181 = vmatprep.subr.mxu0 %v177
    %182 = vmatpush1.msra.mxu0 %v175
    %183 = vmatprep.subr.mxu0 0.0
    %184 = vmatpush1.msra.mxu0 0.0
    %185 = vmatprep.subr.mxu0 0.0
    %186 = vmatpush1.msra.mxu0 0.0
    %187 = vmatprep.subr.mxu0 0.0
    %188 = vmatpush1.msra.mxu0 0.0
    %189 = vmatprep.subr.mxu0 0.0
    %190 = vmatpush1.msra.mxu0 0.0
    %191 = vmatprep.subr.mxu0 0.0
    %192 = vmatpush1.msra.mxu0 0.0
    %193 = vmatprep.subr.mxu0 0.0
    %194 = vmatpush1.msra.mxu0 0.0
    %195 = vmatprep.subr.mxu0 0.0
    %196 = vmatpush1.msra.mxu0 0.0
    %197 = vmatprep.subr.mxu0 0.0
    %198 = vmatpush1.msra.mxu0 0.0
    %199 = vmatprep.subr.mxu0 0.0
    %200 = vmatpush1.msra.mxu0 0.0
    %201 = vmatprep.subr.mxu0 0.0
    %202 = vmatpush1.msra.mxu0 0.0
    %203 = vmatprep.subr.mxu0 0.0
    %204 = vmatpush1.msra.mxu0 0.0
    %205 = vmatprep.subr.mxu0 0.0
    %206 = vmatpush1.msra.mxu0 0.0
    %207 = vmatprep.subr.mxu0 0.0
    %208 = vmatpush1.msra.mxu0 0.0
    %209 = vmatprep.subr.mxu0 0.0
    %210 = vmatpush1.msra.mxu0 0.0
    %211 = vmatprep.subr.mxu0 0.0
    %212 = vmatpush1.msra.mxu0 0.0
    %213 = vmatprep.subr.mxu0 0.0
    %214 = vmatpush1.msra.mxu0 0.0
    %215 = vmatprep.subr.mxu0 0.0
    %216 = vmatpush1.msra.mxu0 0.0
    %217 = vmatprep.subr.mxu0 0.0
    %218 = vmatpush1.msra.mxu0 0.0
    %219 = vmatprep.subr.mxu0 0.0
    %220 = vmatpush1.msra.mxu0 0.0
    %221 = vmatprep.subr.mxu0 0.0
    %222 = vmatpush1.msra.mxu0 0.0
    %223 = vmatprep.subr.mxu0 0.0
    %224 = vmatpush1.msra.mxu0 0.0
    %225 = vmatprep.subr.mxu0 0.0
    %226 = vmatpush1.msra.mxu0 0.0
    %227 = vmatprep.subr.mxu0 0.0
    %228 = vmatpush1.msra.mxu0 0.0
    %229 = vmatprep.subr.mxu0 0.0
    %230 = vmatpush1.msra.mxu0 0.0
    %231 = vmatprep.subr.mxu0 0.0
    %232 = vmatpush1.msra.mxu0 0.0
    %233 = vmatprep.subr.mxu0 0.0
    %234 = vmatpush1.msra.mxu0 0.0
    %235 = vmatprep.subr.mxu0 0.0
    %236 = vmatpush1.msra.mxu0 0.0
    %237 = vmatprep.subr.mxu0 0.0
    %238 = vmatpush1.msra.mxu0 0.0
    %239 = vmatprep.subr.mxu0 0.0
    %240 = vmatpush1.msra.mxu0 0.0
    %241 = vmatprep.subr.mxu0 0.0
    %242 = vmatpush1.msra.mxu0 0.0
    %243 = vmatprep.subr.mxu0 0.0
    %244 = vmatpush1.msra.mxu0 0.0
    %245 = vmatprep.mubr.f32.mxu0 0.0
    %246 = vmatmul.mubr.f32.gmra.mrb[0].mxu0 %v169
    %v247 = vpop.f32.mrb[0].mxu0
    %v248 = vadd.f32 %v152, %v247
    %v249 = vpop.f32.mrb[0].mxu0
    %v250 = vadd.f32 %v156, %v249
    %251 = vmatprep.mubr.f32.mxu0 0.0
    %252 = vmatmul.mubr.f32.gmra.mrb[0].mxu0 %v172
    %v253 = vpop.f32.mrb[0].mxu0
    %v254 = vadd.f32 %v152, %v253
    %v255 = vpop.f32.mrb[0].mxu0
    %v256 = vadd.f32 %v156, %v255
    %257 = vdwg.mxu0
    %258 = vmatprep.subr.mxu0 0.0
    %259 = vmatpush1.msra.mxu0 %v179
    %260 = vmatprep.subr.mxu0 0.0
    %261 = vmatpush1.msra.mxu0 0.0
    %262 = vmatprep.subr.mxu0 0.0
    %263 = vmatpush1.msra.mxu0 0.0
    %264 = vmatprep.subr.mxu0 0.0
    %265 = vmatpush1.msra.mxu0 0.0
    %266 = vmatprep.subr.mxu0 0.0
    %267 = vmatpush1.msra.mxu0 0.0
    %268 = vmatprep.subr.mxu0 0.0
    %269 = vmatpush1.msra.mxu0 0.0
    %270 = vmatprep.subr.mxu0 0.0
    %271 = vmatpush1.msra.mxu0 0.0
    %272 = vmatprep.subr.mxu0 0.0
    %273 = vmatpush1.msra.mxu0 0.0
    %274 = vmatprep.subr.mxu0 0.0
    %275 = vmatpush1.msra.mxu0 0.0
    %276 = vmatprep.subr.mxu0 0.0
    %277 = vmatpush1.msra.mxu0 0.0
    %278 = vmatprep.subr.mxu0 0.0
    %279 = vmatpush1.msra.mxu0 0.0
    %280 = vmatprep.subr.mxu0 0.0
    %281 = vmatpush1.msra.mxu0 0.0
    %282 = vmatprep.subr.mxu0 0.0
    %283 = vmatpush1.msra.mxu0 0.0
    %284 = vmatprep.subr.mxu0 0.0
    %285 = vmatpush1.msra.mxu0 0.0
    %286 = vmatprep.subr.mxu0 0.0
    %287 = vmatpush1.msra.mxu0 0.0
    %288 = vmatprep.subr.mxu0 0.0
    %289 = vmatpush1.msra.mxu0 0.0
    %290 = vmatprep.subr.mxu0 0.0
    %291 = vmatpush1.msra.mxu0 0.0
    %292 = vmatprep.subr.mxu0 0.0
    %293 = vmatpush1.msra.mxu0 0.0
    %294 = vmatprep.subr.mxu0 0.0
    %295 = vmatpush1.msra.mxu0 0.0
    %296 = vmatprep.subr.mxu0 0.0
    %297 = vmatpush1.msra.mxu0 0.0
    %298 = vmatprep.subr.mxu0 0.0
    %299 = vmatpush1.msra.mxu0 0.0
    %300 = vmatprep.subr.mxu0 0.0
    %301 = vmatpush1.msra.mxu0 0.0
    %302 = vmatprep.subr.mxu0 0.0
    %303 = vmatpush1.msra.mxu0 0.0
    %304 = vmatprep.subr.mxu0 0.0
    %305 = vmatpush1.msra.mxu0 0.0
    %306 = vmatprep.subr.mxu0 0.0
    %307 = vmatpush1.msra.mxu0 0.0
    %308 = vmatprep.subr.mxu0 0.0
    %309 = vmatpush1.msra.mxu0 0.0
    %310 = vmatprep.subr.mxu0 0.0
    %311 = vmatpush1.msra.mxu0 0.0
    %312 = vmatprep.subr.mxu0 0.0
    %313 = vmatpush1.msra.mxu0 0.0
    %314 = vmatprep.subr.mxu0 0.0
    %315 = vmatpush1.msra.mxu0 0.0
    %316 = vmatprep.subr.mxu0 0.0
    %317 = vmatpush1.msra.mxu0 0.0
    %318 = vmatprep.subr.mxu0 0.0
    %319 = vmatpush1.msra.mxu0 0.0
    %320 = vmatprep.subr.mxu0 0.0
    %321 = vmatpush1.msra.mxu0 0.0
    %322 = vmatprep.mubr.f32.mxu0 0.0
    %323 = vmatmul.mubr.f32.gmra.mrb[0].mxu0 %v169
    %v324 = vpop.f32.mrb[0].mxu0
    %v325 = vadd.f32 %v160, %v324
    %v326 = vpop.f32.mrb[0].mxu0
    %327 = vmatprep.mubr.f32.mxu0 0.0
    %328 = vmatmul.mubr.f32.gmra.mrb[0].mxu0 %v172
    %v329 = vpop.f32.mrb[0].mxu0
    %v330 = vadd.f32 %v160, %v329
    %v331 = vpop.f32.mrb[0].mxu0
    %332 = vdwg.mxu0
    %333 = vmatprep.subr.mxu0 %v97
    %334 = vmatpush1.msra.mxu0 %v96
    %335 = vmatprep.subr.mxu0 %v100
    %336 = vmatpush1.msra.mxu0 %v99
    %337 = vmatprep.subr.mxu0 %v103
    %338 = vmatpush1.msra.mxu0 %v102
    %339 = vmatprep.subr.mxu0 %v106
    %340 = vmatpush1.msra.mxu0 %v105
    %341 = vmatprep.subr.mxu0 %v109
    %342 = vmatpush1.msra.mxu0 %v108
    %343 = vmatprep.subr.mxu0 %v112
    %344 = vmatpush1.msra.mxu0 %v111
    %345 = vmatprep.subr.mxu0 %v115
    %346 = vmatpush1.msra.mxu0 %v114
    %347 = vmatprep.subr.mxu0 %v118
    %348 = vmatpush1.msra.mxu0 %v117
    %349 = vmatprep.subr.mxu0 %v121
    %350 = vmatpush1.msra.mxu0 %v120
    %351 = vmatprep.subr.mxu0 %v124
    %352 = vmatpush1.msra.mxu0 %v123
    %353 = vmatprep.subr.mxu0 %v127
    %354 = vmatpush1.msra.mxu0 %v126
    %355 = vmatprep.subr.mxu0 %v130
    %356 = vmatpush1.msra.mxu0 %v129
    %357 = vmatprep.subr.mxu0 %v133
    %358 = vmatpush1.msra.mxu0 %v132
    %359 = vmatprep.subr.mxu0 %v136
    %360 = vmatpush1.msra.mxu0 %v135
    %361 = vmatprep.subr.mxu0 %v139
    %362 = vmatpush1.msra.mxu0 %v138
    %363 = vmatprep.subr.mxu0 %v142
    %364 = vmatpush1.msra.mxu0 %v141
    %365 = vmatprep.subr.mxu0 0.0
    %366 = vmatpush1.msra.mxu0 0.0
    %367 = vmatprep.subr.mxu0 0.0
    %368 = vmatpush1.msra.mxu0 0.0
    %369 = vmatprep.subr.mxu0 0.0
    %370 = vmatpush1.msra.mxu0 0.0
    %371 = vmatprep.subr.mxu0 0.0
    %372 = vmatpush1.msra.mxu0 0.0
    %373 = vmatprep.subr.mxu0 0.0
    %374 = vmatpush1.msra.mxu0 0.0
    %375 = vmatprep.subr.mxu0 0.0
    %376 = vmatpush1.msra.mxu0 0.0
    %377 = vmatprep.subr.mxu0 0.0
    %378 = vmatpush1.msra.mxu0 0.0
    %379 = vmatprep.subr.mxu0 0.0
    %380 = vmatpush1.msra.mxu0 0.0
    %381 = vmatprep.subr.mxu0 0.0
    %382 = vmatpush1.msra.mxu0 0.0
    %383 = vmatprep.subr.mxu0 0.0
    %384 = vmatpush1.msra.mxu0 0.0
    %385 = vmatprep.subr.mxu0 0.0
    %386 = vmatpush1.msra.mxu0 0.0
    %387 = vmatprep.subr.mxu0 0.0
    %388 = vmatpush1.msra.mxu0 0.0
    %389 = vmatprep.subr.mxu0 0.0
    %390 = vmatpush1.msra.mxu0 0.0
    %391 = vmatprep.subr.mxu0 0.0
    %392 = vmatpush1.msra.mxu0 0.0
    %393 = vmatprep.subr.mxu0 0.0
    %394 = vmatpush1.msra.mxu0 0.0
    %395 = vmatprep.subr.mxu0 0.0
    %396 = vmatpush1.msra.mxu0 0.0
    %397 = vmatprep.mubr.f32.mxu0 0.0
    %398 = vmatmul.mubr.f32.gmra.mrb[0].mxu0 0.0
    %v399 = vpop.f32.mrb[0].mxu0
    %v400 = vadd.f32 0.0, %v399
    %v401 = vpop.f32.mrb[0].mxu0
    %v402 = vadd.f32 0.0, %v401
    %403 = vdwg.mxu0
    %404 = vmatprep.subr.mxu0 0.0
    %405 = vmatpush1.msra.mxu0 %v98
    %406 = vmatprep.subr.mxu0 0.0
    %407 = vmatpush1.msra.mxu0 %v101
    %408 = vmatprep.subr.mxu0 0.0
    %409 = vmatpush1.msra.mxu0 %v104
    %410 = vmatprep.subr.mxu0 0.0
    %411 = vmatpush1.msra.mxu0 %v107
    %412 = vmatprep.subr.mxu0 0.0
    %413 = vmatpush1.msra.mxu0 %v110
    %414 = vmatprep.subr.mxu0 0.0
    %415 = vmatpush1.msra.mxu0 %v113
    %416 = vmatprep.subr.mxu0 0.0
    %417 = vmatpush1.msra.mxu0 %v116
    %418 = vmatprep.subr.mxu0 0.0
    %419 = vmatpush1.msra.mxu0 %v119
    %420 = vmatprep.subr.mxu0 0.0
    %421 = vmatpush1.msra.mxu0 %v122
    %422 = vmatprep.subr.mxu0 0.0
    %423 = vmatpush1.msra.mxu0 %v125
    %424 = vmatprep.subr.mxu0 0.0
    %425 = vmatpush1.msra.mxu0 %v128
    %426 = vmatprep.subr.mxu0 0.0
    %427 = vmatpush1.msra.mxu0 %v131
    %428 = vmatprep.subr.mxu0 0.0
    %429 = vmatpush1.msra.mxu0 %v134
    %430 = vmatprep.subr.mxu0 0.0
    %431 = vmatpush1.msra.mxu0 %v137
    %432 = vmatprep.subr.mxu0 0.0
    %433 = vmatpush1.msra.mxu0 %v140
    %434 = vmatprep.subr.mxu0 0.0
    %435 = vmatpush1.msra.mxu0 %v143
    %436 = vmatprep.subr.mxu0 0.0
    %437 = vmatpush1.msra.mxu0 0.0
    %438 = vmatprep.subr.mxu0 0.0
    %439 = vmatpush1.msra.mxu0 0.0
    %440 = vmatprep.subr.mxu0 0.0
    %441 = vmatpush1.msra.mxu0 0.0
    %442 = vmatprep.subr.mxu0 0.0
    %443 = vmatpush1.msra.mxu0 0.0
    %444 = vmatprep.subr.mxu0 0.0
    %445 = vmatpush1.msra.mxu0 0.0
    %446 = vmatprep.subr.mxu0 0.0
    %447 = vmatpush1.msra.mxu0 0.0
    %448 = vmatprep.subr.mxu0 0.0
    %449 = vmatpush1.msra.mxu0 0.0
    %450 = vmatprep.subr.mxu0 0.0
    %451 = vmatpush1.msra.mxu0 0.0
    %452 = vmatprep.subr.mxu0 0.0
    %453 = vmatpush1.msra.mxu0 0.0
    %454 = vmatprep.subr.mxu0 0.0
    %455 = vmatpush1.msra.mxu0 0.0
    %456 = vmatprep.subr.mxu0 0.0
    %457 = vmatpush1.msra.mxu0 0.0
    %458 = vmatprep.subr.mxu0 0.0
    %459 = vmatpush1.msra.mxu0 0.0
    %460 = vmatprep.subr.mxu0 0.0
    %461 = vmatpush1.msra.mxu0 0.0
    %462 = vmatprep.subr.mxu0 0.0
    %463 = vmatpush1.msra.mxu0 0.0
    %464 = vmatprep.subr.mxu0 0.0
    %465 = vmatpush1.msra.mxu0 0.0
    %466 = vmatprep.subr.mxu0 0.0
    %467 = vmatpush1.msra.mxu0 0.0
    %468 = vmatprep.mubr.f32.mxu0 0.0
    %469 = vmatmul.mubr.f32.gmra.mrb[0].mxu0 0.0
    %v470 = vpop.f32.mrb[0].mxu0
    %v471 = vadd.f32 0.0, %v470
    %v472 = vpop.f32.mrb[0].mxu0
    %473 = vdwg.mxu0
    %v474 = vadd.f32 %v248, %v400
    %v475 = vxor.u32 %v474, 2147483648
    %v476 = vmul.f32 %v475, 1.442695
    %v477 = vpow.pop %v476
    %v478 = vadd.f32 %v477, 1.0
    %v479 = vrcp.pop %v478
    %v480 = vmul.f32 1.0, %v479
    %v481 = vadd.f32 %v250, %v402
    %v482 = vxor.u32 %v481, 2147483648
    %v483 = vmul.f32 %v482, 1.442695
    %v484 = vpow.pop %v483
    %v485 = vadd.f32 %v484, 1.0
    %v486 = vrcp.pop %v485
    %v487 = vmul.f32 1.0, %v486
    %v489 = vlaneseq
    %v490 = vshrl.u32 %v489, 7
    %v491 = vsub.s32 0, %v490
    %v492 = vrot.slane %v145, %v491
    %v494 = vadd.f32 %v471, %v492
    %v495 = vmul.f32 %v480, %v494
    %v496 = vadd.f32 %v325, %v495
    %v497 = vtanh.pop %v496
    %v498 = vsub.f32 0.0, %v497
    %v499 = vmul.f32 %v487, %v498
    %v500 = vadd.f32 %v497, %v499
    %501 = vst [vmem:[#allocation2] sm:$0x3] %v500
    %502 = vmatprep.subr.mxu0 %v97
    %503 = vmatpush1.msra.mxu0 %v96
    %504 = vmatprep.subr.mxu0 %v100
    %505 = vmatpush1.msra.mxu0 %v99
    %506 = vmatprep.subr.mxu0 %v103
    %507 = vmatpush1.msra.mxu0 %v102
    %508 = vmatprep.subr.mxu0 %v106
    %509 = vmatpush1.msra.mxu0 %v105
    %510 = vmatprep.subr.mxu0 %v109
    %511 = vmatpush1.msra.mxu0 %v108
    %512 = vmatprep.subr.mxu0 %v112
    %513 = vmatpush1.msra.mxu0 %v111
    %514 = vmatprep.subr.mxu0 %v115
    %515 = vmatpush1.msra.mxu0 %v114
    %516 = vmatprep.subr.mxu0 %v118
    %517 = vmatpush1.msra.mxu0 %v117
    %518 = vmatprep.subr.mxu0 %v121
    %519 = vmatpush1.msra.mxu0 %v120
    %520 = vmatprep.subr.mxu0 %v124
    %521 = vmatpush1.msra.mxu0 %v123
    %522 = vmatprep.subr.mxu0 %v127
    %523 = vmatpush1.msra.mxu0 %v126
    %524 = vmatprep.subr.mxu0 %v130
    %525 = vmatpush1.msra.mxu0 %v129
    %526 = vmatprep.subr.mxu0 %v133
    %527 = vmatpush1.msra.mxu0 %v132
    %528 = vmatprep.subr.mxu0 %v136
    %529 = vmatpush1.msra.mxu0 %v135
    %530 = vmatprep.subr.mxu0 %v139
    %531 = vmatpush1.msra.mxu0 %v138
    %532 = vmatprep.subr.mxu0 %v142
    %533 = vmatpush1.msra.mxu0 %v141
    %534 = vmatprep.subr.mxu0 0.0
    %535 = vmatpush1.msra.mxu0 0.0
    %536 = vmatprep.subr.mxu0 0.0
    %537 = vmatpush1.msra.mxu0 0.0
    %538 = vmatprep.subr.mxu0 0.0
    %539 = vmatpush1.msra.mxu0 0.0
    %540 = vmatprep.subr.mxu0 0.0
    %541 = vmatpush1.msra.mxu0 0.0
    %542 = vmatprep.subr.mxu0 0.0
    %543 = vmatpush1.msra.mxu0 0.0
    %544 = vmatprep.subr.mxu0 0.0
    %545 = vmatpush1.msra.mxu0 0.0
    %546 = vmatprep.subr.mxu0 0.0
    %547 = vmatpush1.msra.mxu0 0.0
    %548 = vmatprep.subr.mxu0 0.0
    %549 = vmatpush1.msra.mxu0 0.0
    %550 = vmatprep.subr.mxu0 0.0
    %551 = vmatpush1.msra.mxu0 0.0
    %552 = vmatprep.subr.mxu0 0.0
    %553 = vmatpush1.msra.mxu0 0.0
    %554 = vmatprep.subr.mxu0 0.0
    %555 = vmatpush1.msra.mxu0 0.0
    %556 = vmatprep.subr.mxu0 0.0
    %557 = vmatpush1.msra.mxu0 0.0
    %558 = vmatprep.subr.mxu0 0.0
    %559 = vmatpush1.msra.mxu0 0.0
    %560 = vmatprep.subr.mxu0 0.0
    %561 = vmatpush1.msra.mxu0 0.0
    %562 = vmatprep.subr.mxu0 0.0
    %563 = vmatpush1.msra.mxu0 0.0
    %564 = vmatprep.subr.mxu0 0.0
    %565 = vmatpush1.msra.mxu0 0.0
    %566 = vmatprep.mubr.f32.mxu0 0.0
    %567 = vmatmul.mubr.f32.gmra.mrb[0].mxu0 %v500
    %v568 = vpop.f32.mrb[0].mxu0
    %v569 = vadd.f32 0.0, %v568
    %v570 = vpop.f32.mrb[0].mxu0
    %v571 = vadd.f32 0.0, %v570
    %572 = vdwg.mxu0
    %573 = vmatprep.subr.mxu0 0.0
    %574 = vmatpush1.msra.mxu0 %v98
    %575 = vmatprep.subr.mxu0 0.0
    %576 = vmatpush1.msra.mxu0 %v101
    %577 = vmatprep.subr.mxu0 0.0
    %578 = vmatpush1.msra.mxu0 %v104
    %579 = vmatprep.subr.mxu0 0.0
    %580 = vmatpush1.msra.mxu0 %v107
    %581 = vmatprep.subr.mxu0 0.0
    %582 = vmatpush1.msra.mxu0 %v110
    %583 = vmatprep.subr.mxu0 0.0
    %584 = vmatpush1.msra.mxu0 %v113
    %585 = vmatprep.subr.mxu0 0.0
    %586 = vmatpush1.msra.mxu0 %v116
    %587 = vmatprep.subr.mxu0 0.0
    %588 = vmatpush1.msra.mxu0 %v119
    %589 = vmatprep.subr.mxu0 0.0
    %590 = vmatpush1.msra.mxu0 %v122
    %591 = vmatprep.subr.mxu0 0.0
    %592 = vmatpush1.msra.mxu0 %v125
    %593 = vmatprep.subr.mxu0 0.0
    %594 = vmatpush1.msra.mxu0 %v128
    %595 = vmatprep.subr.mxu0 0.0
    %596 = vmatpush1.msra.mxu0 %v131
    %597 = vmatprep.subr.mxu0 0.0
    %598 = vmatpush1.msra.mxu0 %v134
    %599 = vmatprep.subr.mxu0 0.0
    %600 = vmatpush1.msra.mxu0 %v137
    %601 = vmatprep.subr.mxu0 0.0
    %602 = vmatpush1.msra.mxu0 %v140
    %603 = vmatprep.subr.mxu0 0.0
    %604 = vmatpush1.msra.mxu0 %v143
    %605 = vmatprep.subr.mxu0 0.0
    %606 = vmatpush1.msra.mxu0 0.0
    %607 = vmatprep.subr.mxu0 0.0
    %608 = vmatpush1.msra.mxu0 0.0
    %609 = vmatprep.subr.mxu0 0.0
    %610 = vmatpush1.msra.mxu0 0.0
    %611 = vmatprep.subr.mxu0 0.0
    %612 = vmatpush1.msra.mxu0 0.0
    %613 = vmatprep.subr.mxu0 0.0
    %614 = vmatpush1.msra.mxu0 0.0
    %615 = vmatprep.subr.mxu0 0.0
    %616 = vmatpush1.msra.mxu0 0.0
    %617 = vmatprep.subr.mxu0 0.0
    %618 = vmatpush1.msra.mxu0 0.0
    %619 = vmatprep.subr.mxu0 0.0
    %620 = vmatpush1.msra.mxu0 0.0
    %621 = vmatprep.subr.mxu0 0.0
    %622 = vmatpush1.msra.mxu0 0.0
    %623 = vmatprep.subr.mxu0 0.0
    %624 = vmatpush1.msra.mxu0 0.0
    %625 = vmatprep.subr.mxu0 0.0
    %626 = vmatpush1.msra.mxu0 0.0
    %627 = vmatprep.subr.mxu0 0.0
    %628 = vmatpush1.msra.mxu0 0.0
    %629 = vmatprep.subr.mxu0 0.0
    %630 = vmatpush1.msra.mxu0 0.0
    %631 = vmatprep.subr.mxu0 0.0
    %632 = vmatpush1.msra.mxu0 0.0
    %633 = vmatprep.subr.mxu0 0.0
    %634 = vmatpush1.msra.mxu0 0.0
    %635 = vmatprep.subr.mxu0 0.0
    %636 = vmatpush1.msra.mxu0 0.0
    %637 = vmatprep.mubr.f32.mxu0 0.0
    %638 = vmatmul.mubr.f32.gmra.mrb[0].mxu0 %v500
    %v639 = vpop.f32.mrb[0].mxu0
    %v640 = vadd.f32 0.0, %v639
    %v641 = vpop.f32.mrb[0].mxu0
    %642 = vdwg.mxu0
    %v644 = vrot.slane %v569, 6
    %v646 = vadd.f32 %v248, %v644
    %v647 = vxor.u32 %v646, 2147483648
    %v648 = vmul.f32 %v647, 1.442695
    %v649 = vpow.pop %v648
    %v650 = vadd.f32 %v649, 1.0
    %v651 = vrcp.pop %v650
    %v652 = vmul.f32 1.0, %v651
    %v654 = vrot.slane %v571, 6
    %v656 = vadd.f32 %v250, %v654
    %v657 = vxor.u32 %v656, 2147483648
    %v658 = vmul.f32 %v657, 1.442695
    %v659 = vpow.pop %v658
    %v660 = vadd.f32 %v659, 1.0
    %v661 = vrcp.pop %v660
    %v662 = vmul.f32 1.0, %v661
    %v663 = vadd.f32 %v640, %v492
    %v665 = vrot.slane %v663, 6
    %v667 = vmul.f32 %v652, %v665
    %v668 = vadd.f32 %v325, %v667
    %v669 = vtanh.pop %v668
    %v671 = vrot.slane %v669, 2
    %v673 = vsub.f32 %v500, %v671
    %v675 = vrot.slane %v673, 6
    %v677 = vmul.f32 %v662, %v675
    %v678 = vadd.f32 %v669, %v677
    %679 = vst [vmem:[#allocation2] sm:$0xc] %v678
    %v681 = vrot.slane %v678, 2
    %683 = vmatprep.subr.mxu0 %v97
    %684 = vmatpush1.msra.mxu0 %v96
    %685 = vmatprep.subr.mxu0 %v100
    %686 = vmatpush1.msra.mxu0 %v99
    %687 = vmatprep.subr.mxu0 %v103
    %688 = vmatpush1.msra.mxu0 %v102
    %689 = vmatprep.subr.mxu0 %v106
    %690 = vmatpush1.msra.mxu0 %v105
    %691 = vmatprep.subr.mxu0 %v109
    %692 = vmatpush1.msra.mxu0 %v108
    %693 = vmatprep.subr.mxu0 %v112
    %694 = vmatpush1.msra.mxu0 %v111
    %695 = vmatprep.subr.mxu0 %v115
    %696 = vmatpush1.msra.mxu0 %v114
    %697 = vmatprep.subr.mxu0 %v118
    %698 = vmatpush1.msra.mxu0 %v117
    %699 = vmatprep.subr.mxu0 %v121
    %700 = vmatpush1.msra.mxu0 %v120
    %701 = vmatprep.subr.mxu0 %v124
    %702 = vmatpush1.msra.mxu0 %v123
    %703 = vmatprep.subr.mxu0 %v127
    %704 = vmatpush1.msra.mxu0 %v126
    %705 = vmatprep.subr.mxu0 %v130
    %706 = vmatpush1.msra.mxu0 %v129
    %707 = vmatprep.subr.mxu0 %v133
    %708 = vmatpush1.msra.mxu0 %v132
    %709 = vmatprep.subr.mxu0 %v136
    %710 = vmatpush1.msra.mxu0 %v135
    %711 = vmatprep.subr.mxu0 %v139
    %712 = vmatpush1.msra.mxu0 %v138
    %713 = vmatprep.subr.mxu0 %v142
    %714 = vmatpush1.msra.mxu0 %v141
    %715 = vmatprep.subr.mxu0 0.0
    %716 = vmatpush1.msra.mxu0 0.0
    %717 = vmatprep.subr.mxu0 0.0
    %718 = vmatpush1.msra.mxu0 0.0
    %719 = vmatprep.subr.mxu0 0.0
    %720 = vmatpush1.msra.mxu0 0.0
    %721 = vmatprep.subr.mxu0 0.0
    %722 = vmatpush1.msra.mxu0 0.0
    %723 = vmatprep.subr.mxu0 0.0
    %724 = vmatpush1.msra.mxu0 0.0
    %725 = vmatprep.subr.mxu0 0.0
    %726 = vmatpush1.msra.mxu0 0.0
    %727 = vmatprep.subr.mxu0 0.0
    %728 = vmatpush1.msra.mxu0 0.0
    %729 = vmatprep.subr.mxu0 0.0
    %730 = vmatpush1.msra.mxu0 0.0
    %731 = vmatprep.subr.mxu0 0.0
    %732 = vmatpush1.msra.mxu0 0.0
    %733 = vmatprep.subr.mxu0 0.0
    %734 = vmatpush1.msra.mxu0 0.0
    %735 = vmatprep.subr.mxu0 0.0
    %736 = vmatpush1.msra.mxu0 0.0
    %737 = vmatprep.subr.mxu0 0.0
    %738 = vmatpush1.msra.mxu0 0.0
    %739 = vmatprep.subr.mxu0 0.0
    %740 = vmatpush1.msra.mxu0 0.0
    %741 = vmatprep.subr.mxu0 0.0
    %742 = vmatpush1.msra.mxu0 0.0
    %743 = vmatprep.subr.mxu0 0.0
    %744 = vmatpush1.msra.mxu0 0.0
    %745 = vmatprep.subr.mxu0 0.0
    %746 = vmatpush1.msra.mxu0 0.0
    %747 = vmatprep.mubr.f32.mxu0 0.0
    %748 = vmatmul.mubr.f32.gmra.mrb[0].mxu0 %v681
    %v749 = vpop.f32.mrb[0].mxu0
    %v750 = vadd.f32 0.0, %v749
    %v751 = vpop.f32.mrb[0].mxu0
    %v752 = vadd.f32 0.0, %v751
    %753 = vdwg.mxu0
    %754 = vmatprep.subr.mxu0 0.0
    %755 = vmatpush1.msra.mxu0 %v98
    %756 = vmatprep.subr.mxu0 0.0
    %757 = vmatpush1.msra.mxu0 %v101
    %758 = vmatprep.subr.mxu0 0.0
    %759 = vmatpush1.msra.mxu0 %v104
    %760 = vmatprep.subr.mxu0 0.0
    %761 = vmatpush1.msra.mxu0 %v107
    %762 = vmatprep.subr.mxu0 0.0
    %763 = vmatpush1.msra.mxu0 %v110
    %764 = vmatprep.subr.mxu0 0.0
    %765 = vmatpush1.msra.mxu0 %v113
    %766 = vmatprep.subr.mxu0 0.0
    %767 = vmatpush1.msra.mxu0 %v116
    %768 = vmatprep.subr.mxu0 0.0
    %769 = vmatpush1.msra.mxu0 %v119
    %770 = vmatprep.subr.mxu0 0.0
    %771 = vmatpush1.msra.mxu0 %v122
    %772 = vmatprep.subr.mxu0 0.0
    %773 = vmatpush1.msra.mxu0 %v125
    %774 = vmatprep.subr.mxu0 0.0
    %775 = vmatpush1.msra.mxu0 %v128
    %776 = vmatprep.subr.mxu0 0.0
    %777 = vmatpush1.msra.mxu0 %v131
    %778 = vmatprep.subr.mxu0 0.0
    %779 = vmatpush1.msra.mxu0 %v134
    %780 = vmatprep.subr.mxu0 0.0
    %781 = vmatpush1.msra.mxu0 %v137
    %782 = vmatprep.subr.mxu0 0.0
    %783 = vmatpush1.msra.mxu0 %v140
    %784 = vmatprep.subr.mxu0 0.0
    %785 = vmatpush1.msra.mxu0 %v143
    %786 = vmatprep.subr.mxu0 0.0
    %787 = vmatpush1.msra.mxu0 0.0
    %788 = vmatprep.subr.mxu0 0.0
    %789 = vmatpush1.msra.mxu0 0.0
    %790 = vmatprep.subr.mxu0 0.0
    %791 = vmatpush1.msra.mxu0 0.0
    %792 = vmatprep.subr.mxu0 0.0
    %793 = vmatpush1.msra.mxu0 0.0
    %794 = vmatprep.subr.mxu0 0.0
    %795 = vmatpush1.msra.mxu0 0.0
    %796 = vmatprep.subr.mxu0 0.0
    %797 = vmatpush1.msra.mxu0 0.0
    %798 = vmatprep.subr.mxu0 0.0
    %799 = vmatpush1.msra.mxu0 0.0
    %800 = vmatprep.subr.mxu0 0.0
    %801 = vmatpush1.msra.mxu0 0.0
    %802 = vmatprep.subr.mxu0 0.0
    %803 = vmatpush1.msra.mxu0 0.0
    %804 = vmatprep.subr.mxu0 0.0
    %805 = vmatpush1.msra.mxu0 0.0
    %806 = vmatprep.subr.mxu0 0.0
    %807 = vmatpush1.msra.mxu0 0.0
    %808 = vmatprep.subr.mxu0 0.0
    %809 = vmatpush1.msra.mxu0 0.0
    %810 = vmatprep.subr.mxu0 0.0
    %811 = vmatpush1.msra.mxu0 0.0
    %812 = vmatprep.subr.mxu0 0.0
    %813 = vmatpush1.msra.mxu0 0.0
    %814 = vmatprep.subr.mxu0 0.0
    %815 = vmatpush1.msra.mxu0 0.0
    %816 = vmatprep.subr.mxu0 0.0
    %817 = vmatpush1.msra.mxu0 0.0
    %818 = vmatprep.mubr.f32.mxu0 0.0
    %819 = vmatmul.mubr.f32.gmra.mrb[0].mxu0 %v681
    %v820 = vpop.f32.mrb[0].mxu0
    %v821 = vadd.f32 0.0, %v820
    %v822 = vpop.f32.mrb[0].mxu0
    %823 = vdwg.mxu0
    %v825 = vrot.slane %v750, 4
    %v827 = vadd.f32 %v248, %v825
    %v828 = vxor.u32 %v827, 2147483648
    %v829 = vmul.f32 %v828, 1.442695
    %v830 = vpow.pop %v829
    %v831 = vadd.f32 %v830, 1.0
    %v832 = vrcp.pop %v831
    %v833 = vmul.f32 1.0, %v832
    %v835 = vrot.slane %v752, 4
    %v837 = vadd.f32 %v250, %v835
    %v838 = vxor.u32 %v837, 2147483648
    %v839 = vmul.f32 %v838, 1.442695
    %v840 = vpow.pop %v839
    %v841 = vadd.f32 %v840, 1.0
    %v842 = vrcp.pop %v841
    %v843 = vmul.f32 1.0, %v842
    %v844 = vadd.f32 %v821, %v492
    %v846 = vrot.slane %v844, 4
    %v848 = vmul.f32 %v833, %v846
    %v849 = vadd.f32 %v325, %v848
    %v850 = vtanh.pop %v849
    %v852 = vrot.slane %v850, 2
    %v854 = vsub.f32 %v678, %v852
    %v856 = vrot.slane %v854, 6
    %v858 = vmul.f32 %v843, %v856
    %v859 = vadd.f32 %v850, %v858
    %860 = vst [vmem:[#allocation2] sm:$0x30] %v859
    %v862 = vrot.slane %v859, 4
    %864 = vmatprep.subr.mxu0 %v97
    %865 = vmatpush1.msra.mxu0 %v96
    %866 = vmatprep.subr.mxu0 %v100
    %867 = vmatpush1.msra.mxu0 %v99
    %868 = vmatprep.subr.mxu0 %v103
    %869 = vmatpush1.msra.mxu0 %v102
    %870 = vmatprep.subr.mxu0 %v106
    %871 = vmatpush1.msra.mxu0 %v105
    %872 = vmatprep.subr.mxu0 %v109
    %873 = vmatpush1.msra.mxu0 %v108
    %874 = vmatprep.subr.mxu0 %v112
    %875 = vmatpush1.msra.mxu0 %v111
    %876 = vmatprep.subr.mxu0 %v115
    %877 = vmatpush1.msra.mxu0 %v114
    %878 = vmatprep.subr.mxu0 %v118
    %879 = vmatpush1.msra.mxu0 %v117
    %880 = vmatprep.subr.mxu0 %v121
    %881 = vmatpush1.msra.mxu0 %v120
    %882 = vmatprep.subr.mxu0 %v124
    %883 = vmatpush1.msra.mxu0 %v123
    %884 = vmatprep.subr.mxu0 %v127
    %885 = vmatpush1.msra.mxu0 %v126
    %886 = vmatprep.subr.mxu0 %v130
    %887 = vmatpush1.msra.mxu0 %v129
    %888 = vmatprep.subr.mxu0 %v133
    %889 = vmatpush1.msra.mxu0 %v132
    %890 = vmatprep.subr.mxu0 %v136
    %891 = vmatpush1.msra.mxu0 %v135
    %892 = vmatprep.subr.mxu0 %v139
    %893 = vmatpush1.msra.mxu0 %v138
    %894 = vmatprep.subr.mxu0 %v142
    %895 = vmatpush1.msra.mxu0 %v141
    %896 = vmatprep.subr.mxu0 0.0
    %897 = vmatpush1.msra.mxu0 0.0
    %898 = vmatprep.subr.mxu0 0.0
    %899 = vmatpush1.msra.mxu0 0.0
    %900 = vmatprep.subr.mxu0 0.0
    %901 = vmatpush1.msra.mxu0 0.0
    %902 = vmatprep.subr.mxu0 0.0
    %903 = vmatpush1.msra.mxu0 0.0
    %904 = vmatprep.subr.mxu0 0.0
    %905 = vmatpush1.msra.mxu0 0.0
    %906 = vmatprep.subr.mxu0 0.0
    %907 = vmatpush1.msra.mxu0 0.0
    %908 = vmatprep.subr.mxu0 0.0
    %909 = vmatpush1.msra.mxu0 0.0
    %910 = vmatprep.subr.mxu0 0.0
    %911 = vmatpush1.msra.mxu0 0.0
    %912 = vmatprep.subr.mxu0 0.0
    %913 = vmatpush1.msra.mxu0 0.0
    %914 = vmatprep.subr.mxu0 0.0
    %915 = vmatpush1.msra.mxu0 0.0
    %916 = vmatprep.subr.mxu0 0.0
    %917 = vmatpush1.msra.mxu0 0.0
    %918 = vmatprep.subr.mxu0 0.0
    %919 = vmatpush1.msra.mxu0 0.0
    %920 = vmatprep.subr.mxu0 0.0
    %921 = vmatpush1.msra.mxu0 0.0
    %922 = vmatprep.subr.mxu0 0.0
    %923 = vmatpush1.msra.mxu0 0.0
    %924 = vmatprep.subr.mxu0 0.0
    %925 = vmatpush1.msra.mxu0 0.0
    %926 = vmatprep.subr.mxu0 0.0
    %927 = vmatpush1.msra.mxu0 0.0
    %928 = vmatprep.mubr.f32.mxu0 0.0
    %929 = vmatmul.mubr.f32.gmra.mrb[0].mxu0 %v862
    %v930 = vpop.f32.mrb[0].mxu0
    %v931 = vadd.f32 0.0, %v930
    %v932 = vpop.f32.mrb[0].mxu0
    %v933 = vadd.f32 0.0, %v932
    %934 = vdwg.mxu0
    %935 = vmatprep.subr.mxu0 0.0
    %936 = vmatpush1.msra.mxu0 %v98
    %937 = vmatprep.subr.mxu0 0.0
    %938 = vmatpush1.msra.mxu0 %v101
    %939 = vmatprep.subr.mxu0 0.0
    %940 = vmatpush1.msra.mxu0 %v104
    %941 = vmatprep.subr.mxu0 0.0
    %942 = vmatpush1.msra.mxu0 %v107
    %943 = vmatprep.subr.mxu0 0.0
    %944 = vmatpush1.msra.mxu0 %v110
    %945 = vmatprep.subr.mxu0 0.0
    %946 = vmatpush1.msra.mxu0 %v113
    %947 = vmatprep.subr.mxu0 0.0
    %948 = vmatpush1.msra.mxu0 %v116
    %949 = vmatprep.subr.mxu0 0.0
    %950 = vmatpush1.msra.mxu0 %v119
    %951 = vmatprep.subr.mxu0 0.0
    %952 = vmatpush1.msra.mxu0 %v122
    %953 = vmatprep.subr.mxu0 0.0
    %954 = vmatpush1.msra.mxu0 %v125
    %955 = vmatprep.subr.mxu0 0.0
    %956 = vmatpush1.msra.mxu0 %v128
    %957 = vmatprep.subr.mxu0 0.0
    %958 = vmatpush1.msra.mxu0 %v131
    %959 = vmatprep.subr.mxu0 0.0
    %960 = vmatpush1.msra.mxu0 %v134
    %961 = vmatprep.subr.mxu0 0.0
    %962 = vmatpush1.msra.mxu0 %v137
    %963 = vmatprep.subr.mxu0 0.0
    %964 = vmatpush1.msra.mxu0 %v140
    %965 = vmatprep.subr.mxu0 0.0
    %966 = vmatpush1.msra.mxu0 %v143
    %967 = vmatprep.subr.mxu0 0.0
    %968 = vmatpush1.msra.mxu0 0.0
    %969 = vmatprep.subr.mxu0 0.0
    %970 = vmatpush1.msra.mxu0 0.0
    %971 = vmatprep.subr.mxu0 0.0
    %972 = vmatpush1.msra.mxu0 0.0
    %973 = vmatprep.subr.mxu0 0.0
    %974 = vmatpush1.msra.mxu0 0.0
    %975 = vmatprep.subr.mxu0 0.0
    %976 = vmatpush1.msra.mxu0 0.0
    %977 = vmatprep.subr.mxu0 0.0
    %978 = vmatpush1.msra.mxu0 0.0
    %979 = vmatprep.subr.mxu0 0.0
    %980 = vmatpush1.msra.mxu0 0.0
    %981 = vmatprep.subr.mxu0 0.0
    %982 = vmatpush1.msra.mxu0 0.0
    %983 = vmatprep.subr.mxu0 0.0
    %984 = vmatpush1.msra.mxu0 0.0
    %985 = vmatprep.subr.mxu0 0.0
    %986 = vmatpush1.msra.mxu0 0.0
    %987 = vmatprep.subr.mxu0 0.0
    %988 = vmatpush1.msra.mxu0 0.0
    %989 = vmatprep.subr.mxu0 0.0
    %990 = vmatpush1.msra.mxu0 0.0
    %991 = vmatprep.subr.mxu0 0.0
    %992 = vmatpush1.msra.mxu0 0.0
    %993 = vmatprep.subr.mxu0 0.0
    %994 = vmatpush1.msra.mxu0 0.0
    %995 = vmatprep.subr.mxu0 0.0
    %996 = vmatpush1.msra.mxu0 0.0
    %997 = vmatprep.subr.mxu0 0.0
    %998 = vmatpush1.msra.mxu0 0.0
    %999 = vmatprep.mubr.f32.mxu0 0.0
    %1000 = vmatmul.mubr.f32.gmra.mrb[0].mxu0 %v862
    %v1001 = vpop.f32.mrb[0].mxu0
    %v1002 = vadd.f32 0.0, %v1001
    %v1003 = vpop.f32.mrb[0].mxu0
    %1004 = vdwg.mxu0
    %v1006 = vrot.slane %v931, 2
    %v1008 = vadd.f32 %v248, %v1006
    %v1009 = vxor.u32 %v1008, 2147483648
    %v1010 = vmul.f32 %v1009, 1.442695
    %v1011 = vpow.pop %v1010
    %v1012 = vadd.f32 %v1011, 1.0
    %v1013 = vrcp.pop %v1012
    %v1014 = vmul.f32 1.0, %v1013
    %v1016 = vrot.slane %v933, 2
    %v1018 = vadd.f32 %v250, %v1016
    %v1019 = vxor.u32 %v1018, 2147483648
    %v1020 = vmul.f32 %v1019, 1.442695
    %v1021 = vpow.pop %v1020
    %v1022 = vadd.f32 %v1021, 1.0
    %v1023 = vrcp.pop %v1022
    %v1024 = vmul.f32 1.0, %v1023
    %v1025 = vadd.f32 %v1002, %v492
    %v1027 = vrot.slane %v1025, 2
    %v1029 = vmul.f32 %v1014, %v1027
    %v1030 = vadd.f32 %v325, %v1029
    %v1031 = vtanh.pop %v1030
    %v1033 = vrot.slane %v1031, 2
    %v1035 = vsub.f32 %v859, %v1033
    %v1037 = vrot.slane %v1035, 6
    %v1039 = vmul.f32 %v1024, %v1037
    %v1040 = vadd.f32 %v1031, %v1039
    %1041 = vst [vmem:[#allocation2] sm:$0xc0] %v1040
    %v1043 = vrot.slane %v1040, 6
    %1045 = vmatprep.subr.mxu0 %v97
    %1046 = vmatpush1.msra.mxu0 %v96
    %1047 = vmatprep.subr.mxu0 %v100
    %1048 = vmatpush1.msra.mxu0 %v99
    %1049 = vmatprep.subr.mxu0 %v103
    %1050 = vmatpush1.msra.mxu0 %v102
    %1051 = vmatprep.subr.mxu0 %v106
    %1052 = vmatpush1.msra.mxu0 %v105
    %1053 = vmatprep.subr.mxu0 %v109
    %1054 = vmatpush1.msra.mxu0 %v108
    %1055 = vmatprep.subr.mxu0 %v112
    %1056 = vmatpush1.msra.mxu0 %v111
    %1057 = vmatprep.subr.mxu0 %v115
    %1058 = vmatpush1.msra.mxu0 %v114
    %1059 = vmatprep.subr.mxu0 %v118
    %1060 = vmatpush1.msra.mxu0 %v117
    %1061 = vmatprep.subr.mxu0 %v121
    %1062 = vmatpush1.msra.mxu0 %v120
    %1063 = vmatprep.subr.mxu0 %v124
    %1064 = vmatpush1.msra.mxu0 %v123
    %1065 = vmatprep.subr.mxu0 %v127
    %1066 = vmatpush1.msra.mxu0 %v126
    %1067 = vmatprep.subr.mxu0 %v130
    %1068 = vmatpush1.msra.mxu0 %v129
    %1069 = vmatprep.subr.mxu0 %v133
    %1070 = vmatpush1.msra.mxu0 %v132
    %1071 = vmatprep.subr.mxu0 %v136
    %1072 = vmatpush1.msra.mxu0 %v135
    %1073 = vmatprep.subr.mxu0 %v139
    %1074 = vmatpush1.msra.mxu0 %v138
    %1075 = vmatprep.subr.mxu0 %v142
    %1076 = vmatpush1.msra.mxu0 %v141
    %1077 = vmatprep.subr.mxu0 0.0
    %1078 = vmatpush1.msra.mxu0 0.0
    %1079 = vmatprep.subr.mxu0 0.0
    %1080 = vmatpush1.msra.mxu0 0.0
    %1081 = vmatprep.subr.mxu0 0.0
    %1082 = vmatpush1.msra.mxu0 0.0
    %1083 = vmatprep.subr.mxu0 0.0
    %1084 = vmatpush1.msra.mxu0 0.0
    %1085 = vmatprep.subr.mxu0 0.0
    %1086 = vmatpush1.msra.mxu0 0.0
    %1087 = vmatprep.subr.mxu0 0.0
    %1088 = vmatpush1.msra.mxu0 0.0
    %1089 = vmatprep.subr.mxu0 0.0
    %1090 = vmatpush1.msra.mxu0 0.0
    %1091 = vmatprep.subr.mxu0 0.0
    %1092 = vmatpush1.msra.mxu0 0.0
    %1093 = vmatprep.subr.mxu0 0.0
    %1094 = vmatpush1.msra.mxu0 0.0
    %1095 = vmatprep.subr.mxu0 0.0
    %1096 = vmatpush1.msra.mxu0 0.0
    %1097 = vmatprep.subr.mxu0 0.0
    %1098 = vmatpush1.msra.mxu0 0.0
    %1099 = vmatprep.subr.mxu0 0.0
    %1100 = vmatpush1.msra.mxu0 0.0
    %1101 = vmatprep.subr.mxu0 0.0
    %1102 = vmatpush1.msra.mxu0 0.0
    %1103 = vmatprep.subr.mxu0 0.0
    %1104 = vmatpush1.msra.mxu0 0.0
    %1105 = vmatprep.subr.mxu0 0.0
    %1106 = vmatpush1.msra.mxu0 0.0
    %1107 = vmatprep.subr.mxu0 0.0
    %1108 = vmatpush1.msra.mxu0 0.0
    %1109 = vmatprep.mubr.f32.mxu0 0.0
    %1110 = vmatmul.mubr.f32.gmra.mrb[0].mxu0 %v1043
    %v1111 = vpop.f32.mrb[0].mxu0
    %v1112 = vadd.f32 0.0, %v1111
    %v1113 = vpop.f32.mrb[0].mxu0
    %v1114 = vadd.f32 0.0, %v1113
    %1115 = vdwg.mxu0
    %1116 = vmatprep.subr.mxu0 0.0
    %1117 = vmatpush1.msra.mxu0 %v98
    %1118 = vmatprep.subr.mxu0 0.0
    %1119 = vmatpush1.msra.mxu0 %v101
    %1120 = vmatprep.subr.mxu0 0.0
    %1121 = vmatpush1.msra.mxu0 %v104
    %1122 = vmatprep.subr.mxu0 0.0
    %1123 = vmatpush1.msra.mxu0 %v107
    %1124 = vmatprep.subr.mxu0 0.0
    %1125 = vmatpush1.msra.mxu0 %v110
    %1126 = vmatprep.subr.mxu0 0.0
    %1127 = vmatpush1.msra.mxu0 %v113
    %1128 = vmatprep.subr.mxu0 0.0
    %1129 = vmatpush1.msra.mxu0 %v116
    %1130 = vmatprep.subr.mxu0 0.0
    %1131 = vmatpush1.msra.mxu0 %v119
    %1132 = vmatprep.subr.mxu0 0.0
    %1133 = vmatpush1.msra.mxu0 %v122
    %1134 = vmatprep.subr.mxu0 0.0
    %1135 = vmatpush1.msra.mxu0 %v125
    %1136 = vmatprep.subr.mxu0 0.0
    %1137 = vmatpush1.msra.mxu0 %v128
    %1138 = vmatprep.subr.mxu0 0.0
    %1139 = vmatpush1.msra.mxu0 %v131
    %1140 = vmatprep.subr.mxu0 0.0
    %1141 = vmatpush1.msra.mxu0 %v134
    %1142 = vmatprep.subr.mxu0 0.0
    %1143 = vmatpush1.msra.mxu0 %v137
    %1144 = vmatprep.subr.mxu0 0.0
    %1145 = vmatpush1.msra.mxu0 %v140
    %1146 = vmatprep.subr.mxu0 0.0
    %1147 = vmatpush1.msra.mxu0 %v143
    %1148 = vmatprep.subr.mxu0 0.0
    %1149 = vmatpush1.msra.mxu0 0.0
    %1150 = vmatprep.subr.mxu0 0.0
    %1151 = vmatpush1.msra.mxu0 0.0
    %1152 = vmatprep.subr.mxu0 0.0
    %1153 = vmatpush1.msra.mxu0 0.0
    %1154 = vmatprep.subr.mxu0 0.0
    %1155 = vmatpush1.msra.mxu0 0.0
    %1156 = vmatprep.subr.mxu0 0.0
    %1157 = vmatpush1.msra.mxu0 0.0
    %1158 = vmatprep.subr.mxu0 0.0
    %1159 = vmatpush1.msra.mxu0 0.0
    %1160 = vmatprep.subr.mxu0 0.0
    %1161 = vmatpush1.msra.mxu0 0.0
    %1162 = vmatprep.subr.mxu0 0.0
    %1163 = vmatpush1.msra.mxu0 0.0
    %1164 = vmatprep.subr.mxu0 0.0
    %1165 = vmatpush1.msra.mxu0 0.0
    %1166 = vmatprep.subr.mxu0 0.0
    %1167 = vmatpush1.msra.mxu0 0.0
    %1168 = vmatprep.subr.mxu0 0.0
    %1169 = vmatpush1.msra.mxu0 0.0
    %1170 = vmatprep.subr.mxu0 0.0
    %1171 = vmatpush1.msra.mxu0 0.0
    %1172 = vmatprep.subr.mxu0 0.0
    %1173 = vmatpush1.msra.mxu0 0.0
    %1174 = vmatprep.subr.mxu0 0.0
    %1175 = vmatpush1.msra.mxu0 0.0
    %1176 = vmatprep.subr.mxu0 0.0
    %1177 = vmatpush1.msra.mxu0 0.0
    %1178 = vmatprep.subr.mxu0 0.0
    %1179 = vmatpush1.msra.mxu0 0.0
    %1180 = vmatprep.mubr.f32.mxu0 0.0
    %1181 = vmatmul.mubr.f32.gmra.mrb[0].mxu0 %v1043
    %v1182 = vpop.f32.mrb[0].mxu0
    %v1183 = vadd.f32 0.0, %v1182
    %v1184 = vpop.f32.mrb[0].mxu0
    %1185 = vdwg.mxu0
    %v1186 = vadd.f32 %v254, %v1112
    %v1187 = vxor.u32 %v1186, 2147483648
    %v1188 = vmul.f32 %v1187, 1.442695
    %v1189 = vpow.pop %v1188
    %v1190 = vadd.f32 %v1189, 1.0
    %v1191 = vrcp.pop %v1190
    %v1192 = vmul.f32 1.0, %v1191
    %v1193 = vadd.f32 %v256, %v1114
    %v1194 = vxor.u32 %v1193, 2147483648
    %v1195 = vmul.f32 %v1194, 1.442695
    %v1196 = vpow.pop %v1195
    %v1197 = vadd.f32 %v1196, 1.0
    %v1198 = vrcp.pop %v1197
    %v1199 = vmul.f32 1.0, %v1198
    %v1200 = vadd.f32 %v1183, %v492
    %v1201 = vmul.f32 %v1192, %v1200
    %v1202 = vadd.f32 %v330, %v1201
    %v1203 = vtanh.pop %v1202
    %v1205 = vrot.slane %v1203, 2
    %v1207 = vsub.f32 %v1040, %v1205
    %v1209 = vrot.slane %v1207, 6
    %v1211 = vmul.f32 %v1199, %v1209
    %v1212 = vadd.f32 %v1203, %v1211
    %1213 = vst [vmem:[#allocation2 + $0x8] sm:$0x3] %v1212
    %1214 = vmatprep.subr.mxu0 %v97
    %1215 = vmatpush1.msra.mxu0 %v96
    %1216 = vmatprep.subr.mxu0 %v100
    %1217 = vmatpush1.msra.mxu0 %v99
    %1218 = vmatprep.subr.mxu0 %v103
    %1219 = vmatpush1.msra.mxu0 %v102
    %1220 = vmatprep.subr.mxu0 %v106
    %1221 = vmatpush1.msra.mxu0 %v105
    %1222 = vmatprep.subr.mxu0 %v109
    %1223 = vmatpush1.msra.mxu0 %v108
    %1224 = vmatprep.subr.mxu0 %v112
    %1225 = vmatpush1.msra.mxu0 %v111
    %1226 = vmatprep.subr.mxu0 %v115
    %1227 = vmatpush1.msra.mxu0 %v114
    %1228 = vmatprep.subr.mxu0 %v118
    %1229 = vmatpush1.msra.mxu0 %v117
    %1230 = vmatprep.subr.mxu0 %v121
    %1231 = vmatpush1.msra.mxu0 %v120
    %1232 = vmatprep.subr.mxu0 %v124
    %1233 = vmatpush1.msra.mxu0 %v123
    %1234 = vmatprep.subr.mxu0 %v127
    %1235 = vmatpush1.msra.mxu0 %v126
    %1236 = vmatprep.subr.mxu0 %v130
    %1237 = vmatpush1.msra.mxu0 %v129
    %1238 = vmatprep.subr.mxu0 %v133
    %1239 = vmatpush1.msra.mxu0 %v132
    %1240 = vmatprep.subr.mxu0 %v136
    %1241 = vmatpush1.msra.mxu0 %v135
    %1242 = vmatprep.subr.mxu0 %v139
    %1243 = vmatpush1.msra.mxu0 %v138
    %1244 = vmatprep.subr.mxu0 %v142
    %1245 = vmatpush1.msra.mxu0 %v141
    %1246 = vmatprep.subr.mxu0 0.0
    %1247 = vmatpush1.msra.mxu0 0.0
    %1248 = vmatprep.subr.mxu0 0.0
    %1249 = vmatpush1.msra.mxu0 0.0
    %1250 = vmatprep.subr.mxu0 0.0
    %1251 = vmatpush1.msra.mxu0 0.0
    %1252 = vmatprep.subr.mxu0 0.0
    %1253 = vmatpush1.msra.mxu0 0.0
    %1254 = vmatprep.subr.mxu0 0.0
    %1255 = vmatpush1.msra.mxu0 0.0
    %1256 = vmatprep.subr.mxu0 0.0
    %1257 = vmatpush1.msra.mxu0 0.0
    %1258 = vmatprep.subr.mxu0 0.0
    %1259 = vmatpush1.msra.mxu0 0.0
    %1260 = vmatprep.subr.mxu0 0.0
    %1261 = vmatpush1.msra.mxu0 0.0
    %1262 = vmatprep.subr.mxu0 0.0
    %1263 = vmatpush1.msra.mxu0 0.0
    %1264 = vmatprep.subr.mxu0 0.0
    %1265 = vmatpush1.msra.mxu0 0.0
    %1266 = vmatprep.subr.mxu0 0.0
    %1267 = vmatpush1.msra.mxu0 0.0
    %1268 = vmatprep.subr.mxu0 0.0
    %1269 = vmatpush1.msra.mxu0 0.0
    %1270 = vmatprep.subr.mxu0 0.0
    %1271 = vmatpush1.msra.mxu0 0.0
    %1272 = vmatprep.subr.mxu0 0.0
    %1273 = vmatpush1.msra.mxu0 0.0
    %1274 = vmatprep.subr.mxu0 0.0
    %1275 = vmatpush1.msra.mxu0 0.0
    %1276 = vmatprep.subr.mxu0 0.0
    %1277 = vmatpush1.msra.mxu0 0.0
    %1278 = vmatprep.mubr.f32.mxu0 0.0
    %1279 = vmatmul.mubr.f32.gmra.mrb[0].mxu0 %v1212
    %v1280 = vpop.f32.mrb[0].mxu0
    %v1281 = vadd.f32 0.0, %v1280
    %v1282 = vpop.f32.mrb[0].mxu0
    %v1283 = vadd.f32 0.0, %v1282
    %1284 = vdwg.mxu0
    %1285 = vmatprep.subr.mxu0 0.0
    %1286 = vmatpush1.msra.mxu0 %v98
    %1287 = vmatprep.subr.mxu0 0.0
    %1288 = vmatpush1.msra.mxu0 %v101
    %1289 = vmatprep.subr.mxu0 0.0
    %1290 = vmatpush1.msra.mxu0 %v104
    %1291 = vmatprep.subr.mxu0 0.0
    %1292 = vmatpush1.msra.mxu0 %v107
    %1293 = vmatprep.subr.mxu0 0.0
    %1294 = vmatpush1.msra.mxu0 %v110
    %1295 = vmatprep.subr.mxu0 0.0
    %1296 = vmatpush1.msra.mxu0 %v113
    %1297 = vmatprep.subr.mxu0 0.0
    %1298 = vmatpush1.msra.mxu0 %v116
    %1299 = vmatprep.subr.mxu0 0.0
    %1300 = vmatpush1.msra.mxu0 %v119
    %1301 = vmatprep.subr.mxu0 0.0
    %1302 = vmatpush1.msra.mxu0 %v122
    %1303 = vmatprep.subr.mxu0 0.0
    %1304 = vmatpush1.msra.mxu0 %v125
    %1305 = vmatprep.subr.mxu0 0.0
    %1306 = vmatpush1.msra.mxu0 %v128
    %1307 = vmatprep.subr.mxu0 0.0
    %1308 = vmatpush1.msra.mxu0 %v131
    %1309 = vmatprep.subr.mxu0 0.0
    %1310 = vmatpush1.msra.mxu0 %v134
    %1311 = vmatprep.subr.mxu0 0.0
    %1312 = vmatpush1.msra.mxu0 %v137
    %1313 = vmatprep.subr.mxu0 0.0
    %1314 = vmatpush1.msra.mxu0 %v140
    %1315 = vmatprep.subr.mxu0 0.0
    %1316 = vmatpush1.msra.mxu0 %v143
    %1317 = vmatprep.subr.mxu0 0.0
    %1318 = vmatpush1.msra.mxu0 0.0
    %1319 = vmatprep.subr.mxu0 0.0
    %1320 = vmatpush1.msra.mxu0 0.0
    %1321 = vmatprep.subr.mxu0 0.0
    %1322 = vmatpush1.msra.mxu0 0.0
    %1323 = vmatprep.subr.mxu0 0.0
    %1324 = vmatpush1.msra.mxu0 0.0
    %1325 = vmatprep.subr.mxu0 0.0
    %1326 = vmatpush1.msra.mxu0 0.0
    %1327 = vmatprep.subr.mxu0 0.0
    %1328 = vmatpush1.msra.mxu0 0.0
    %1329 = vmatprep.subr.mxu0 0.0
    %1330 = vmatpush1.msra.mxu0 0.0
    %1331 = vmatprep.subr.mxu0 0.0
    %1332 = vmatpush1.msra.mxu0 0.0
    %1333 = vmatprep.subr.mxu0 0.0
    %1334 = vmatpush1.msra.mxu0 0.0
    %1335 = vmatprep.subr.mxu0 0.0
    %1336 = vmatpush1.msra.mxu0 0.0
    %1337 = vmatprep.subr.mxu0 0.0
    %1338 = vmatpush1.msra.mxu0 0.0
    %1339 = vmatprep.subr.mxu0 0.0
    %1340 = vmatpush1.msra.mxu0 0.0
    %1341 = vmatprep.subr.mxu0 0.0
    %1342 = vmatpush1.msra.mxu0 0.0
    %1343 = vmatprep.subr.mxu0 0.0
    %1344 = vmatpush1.msra.mxu0 0.0
    %1345 = vmatprep.subr.mxu0 0.0
    %1346 = vmatpush1.msra.mxu0 0.0
    %1347 = vmatprep.subr.mxu0 0.0
    %1348 = vmatpush1.msra.mxu0 0.0
    %1349 = vmatprep.mubr.f32.mxu0 0.0
    %1350 = vmatmul.mubr.f32.gmra.mrb[0].mxu0 %v1212
    %v1351 = vpop.f32.mrb[0].mxu0
    %v1352 = vadd.f32 0.0, %v1351
    %v1353 = vpop.f32.mrb[0].mxu0
    %1354 = vdwg.mxu0
    %v1356 = vrot.slane %v1281, 6
    %v1358 = vadd.f32 %v254, %v1356
    %v1359 = vxor.u32 %v1358, 2147483648
    %v1360 = vmul.f32 %v1359, 1.442695
    %v1361 = vpow.pop %v1360
    %v1362 = vadd.f32 %v1361, 1.0
    %v1363 = vrcp.pop %v1362
    %v1364 = vmul.f32 1.0, %v1363
    %v1366 = vrot.slane %v1283, 6
    %v1368 = vadd.f32 %v256, %v1366
    %v1369 = vxor.u32 %v1368, 2147483648
    %v1370 = vmul.f32 %v1369, 1.442695
    %v1371 = vpow.pop %v1370
    %v1372 = vadd.f32 %v1371, 1.0
    %v1373 = vrcp.pop %v1372
    %v1374 = vmul.f32 1.0, %v1373
    %v1375 = vadd.f32 %v1352, %v492
    %v1377 = vrot.slane %v1375, 6
    %v1379 = vmul.f32 %v1364, %v1377
    %v1380 = vadd.f32 %v330, %v1379
    %v1381 = vtanh.pop %v1380
    %v1383 = vrot.slane %v1381, 2
    %v1385 = vsub.f32 %v1212, %v1383
    %v1387 = vrot.slane %v1385, 6
    %v1389 = vmul.f32 %v1374, %v1387
    %v1390 = vadd.f32 %v1381, %v1389
    %1391 = vst [vmem:[#allocation2 + $0x8] sm:$0xc] %v1390
    %v1393 = vrot.slane %v1390, 2
    %1395 = vmatprep.subr.mxu0 %v97
    %1396 = vmatpush1.msra.mxu0 %v96
    %1397 = vmatprep.subr.mxu0 %v100
    %1398 = vmatpush1.msra.mxu0 %v99
    %1399 = vmatprep.subr.mxu0 %v103
    %1400 = vmatpush1.msra.mxu0 %v102
    %1401 = vmatprep.subr.mxu0 %v106
    %1402 = vmatpush1.msra.mxu0 %v105
    %1403 = vmatprep.subr.mxu0 %v109
    %1404 = vmatpush1.msra.mxu0 %v108
    %1405 = vmatprep.subr.mxu0 %v112
    %1406 = vmatpush1.msra.mxu0 %v111
    %1407 = vmatprep.subr.mxu0 %v115
    %1408 = vmatpush1.msra.mxu0 %v114
    %1409 = vmatprep.subr.mxu0 %v118
    %1410 = vmatpush1.msra.mxu0 %v117
    %1411 = vmatprep.subr.mxu0 %v121
    %1412 = vmatpush1.msra.mxu0 %v120
    %1413 = vmatprep.subr.mxu0 %v124
    %1414 = vmatpush1.msra.mxu0 %v123
    %1415 = vmatprep.subr.mxu0 %v127
    %1416 = vmatpush1.msra.mxu0 %v126
    %1417 = vmatprep.subr.mxu0 %v130
    %1418 = vmatpush1.msra.mxu0 %v129
    %1419 = vmatprep.subr.mxu0 %v133
    %1420 = vmatpush1.msra.mxu0 %v132
    %1421 = vmatprep.subr.mxu0 %v136
    %1422 = vmatpush1.msra.mxu0 %v135
    %1423 = vmatprep.subr.mxu0 %v139
    %1424 = vmatpush1.msra.mxu0 %v138
    %1425 = vmatprep.subr.mxu0 %v142
    %1426 = vmatpush1.msra.mxu0 %v141
    %1427 = vmatprep.subr.mxu0 0.0
    %1428 = vmatpush1.msra.mxu0 0.0
    %1429 = vmatprep.subr.mxu0 0.0
    %1430 = vmatpush1.msra.mxu0 0.0
    %1431 = vmatprep.subr.mxu0 0.0
    %1432 = vmatpush1.msra.mxu0 0.0
    %1433 = vmatprep.subr.mxu0 0.0
    %1434 = vmatpush1.msra.mxu0 0.0
    %1435 = vmatprep.subr.mxu0 0.0
    %1436 = vmatpush1.msra.mxu0 0.0
    %1437 = vmatprep.subr.mxu0 0.0
    %1438 = vmatpush1.msra.mxu0 0.0
    %1439 = vmatprep.subr.mxu0 0.0
    %1440 = vmatpush1.msra.mxu0 0.0
    %1441 = vmatprep.subr.mxu0 0.0
    %1442 = vmatpush1.msra.mxu0 0.0
    %1443 = vmatprep.subr.mxu0 0.0
    %1444 = vmatpush1.msra.mxu0 0.0
    %1445 = vmatprep.subr.mxu0 0.0
    %1446 = vmatpush1.msra.mxu0 0.0
    %1447 = vmatprep.subr.mxu0 0.0
    %1448 = vmatpush1.msra.mxu0 0.0
    %1449 = vmatprep.subr.mxu0 0.0
    %1450 = vmatpush1.msra.mxu0 0.0
    %1451 = vmatprep.subr.mxu0 0.0
    %1452 = vmatpush1.msra.mxu0 0.0
    %1453 = vmatprep.subr.mxu0 0.0
    %1454 = vmatpush1.msra.mxu0 0.0
    %1455 = vmatprep.subr.mxu0 0.0
    %1456 = vmatpush1.msra.mxu0 0.0
    %1457 = vmatprep.subr.mxu0 0.0
    %1458 = vmatpush1.msra.mxu0 0.0
    %1459 = vmatprep.mubr.f32.mxu0 0.0
    %1460 = vmatmul.mubr.f32.gmra.mrb[0].mxu0 %v1393
    %v1461 = vpop.f32.mrb[0].mxu0
    %v1462 = vadd.f32 0.0, %v1461
    %v1463 = vpop.f32.mrb[0].mxu0
    %v1464 = vadd.f32 0.0, %v1463
    %1465 = vdwg.mxu0
    %1466 = vmatprep.subr.mxu0 0.0
    %1467 = vmatpush1.msra.mxu0 %v98
    %1468 = vmatprep.subr.mxu0 0.0
    %1469 = vmatpush1.msra.mxu0 %v101
    %1470 = vmatprep.subr.mxu0 0.0
    %1471 = vmatpush1.msra.mxu0 %v104
    %1472 = vmatprep.subr.mxu0 0.0
    %1473 = vmatpush1.msra.mxu0 %v107
    %1474 = vmatprep.subr.mxu0 0.0
    %1475 = vmatpush1.msra.mxu0 %v110
    %1476 = vmatprep.subr.mxu0 0.0
    %1477 = vmatpush1.msra.mxu0 %v113
    %1478 = vmatprep.subr.mxu0 0.0
    %1479 = vmatpush1.msra.mxu0 %v116
    %1480 = vmatprep.subr.mxu0 0.0
    %1481 = vmatpush1.msra.mxu0 %v119
    %1482 = vmatprep.subr.mxu0 0.0
    %1483 = vmatpush1.msra.mxu0 %v122
    %1484 = vmatprep.subr.mxu0 0.0
    %1485 = vmatpush1.msra.mxu0 %v125
    %1486 = vmatprep.subr.mxu0 0.0
    %1487 = vmatpush1.msra.mxu0 %v128
    %1488 = vmatprep.subr.mxu0 0.0
    %1489 = vmatpush1.msra.mxu0 %v131
    %1490 = vmatprep.subr.mxu0 0.0
    %1491 = vmatpush1.msra.mxu0 %v134
    %1492 = vmatprep.subr.mxu0 0.0
    %1493 = vmatpush1.msra.mxu0 %v137
    %1494 = vmatprep.subr.mxu0 0.0
    %1495 = vmatpush1.msra.mxu0 %v140
    %1496 = vmatprep.subr.mxu0 0.0
    %1497 = vmatpush1.msra.mxu0 %v143
    %1498 = vmatprep.subr.mxu0 0.0
    %1499 = vmatpush1.msra.mxu0 0.0
    %1500 = vmatprep.subr.mxu0 0.0
    %1501 = vmatpush1.msra.mxu0 0.0
    %1502 = vmatprep.subr.mxu0 0.0
    %1503 = vmatpush1.msra.mxu0 0.0
    %1504 = vmatprep.subr.mxu0 0.0
    %1505 = vmatpush1.msra.mxu0 0.0
    %1506 = vmatprep.subr.mxu0 0.0
    %1507 = vmatpush1.msra.mxu0 0.0
    %1508 = vmatprep.subr.mxu0 0.0
    %1509 = vmatpush1.msra.mxu0 0.0
    %1510 = vmatprep.subr.mxu0 0.0
    %1511 = vmatpush1.msra.mxu0 0.0
    %1512 = vmatprep.subr.mxu0 0.0
    %1513 = vmatpush1.msra.mxu0 0.0
    %1514 = vmatprep.subr.mxu0 0.0
    %1515 = vmatpush1.msra.mxu0 0.0
    %1516 = vmatprep.subr.mxu0 0.0
    %1517 = vmatpush1.msra.mxu0 0.0
    %1518 = vmatprep.subr.mxu0 0.0
    %1519 = vmatpush1.msra.mxu0 0.0
    %1520 = vmatprep.subr.mxu0 0.0
    %1521 = vmatpush1.msra.mxu0 0.0
    %1522 = vmatprep.subr.mxu0 0.0
    %1523 = vmatpush1.msra.mxu0 0.0
    %1524 = vmatprep.subr.mxu0 0.0
    %1525 = vmatpush1.msra.mxu0 0.0
    %1526 = vmatprep.subr.mxu0 0.0
    %1527 = vmatpush1.msra.mxu0 0.0
    %1528 = vmatprep.subr.mxu0 0.0
    %1529 = vmatpush1.msra.mxu0 0.0
    %1530 = vmatprep.mubr.f32.mxu0 0.0
    %1531 = vmatmul.mubr.f32.gmra.mrb[0].mxu0 %v1393
    %v1532 = vpop.f32.mrb[0].mxu0
    %v1533 = vadd.f32 0.0, %v1532
    %v1534 = vpop.f32.mrb[0].mxu0
    %1535 = vdwg.mxu0
    %v1537 = vrot.slane %v1462, 4
    %v1539 = vadd.f32 %v254, %v1537
    %v1540 = vxor.u32 %v1539, 2147483648
    %v1541 = vmul.f32 %v1540, 1.442695
    %v1542 = vpow.pop %v1541
    %v1543 = vadd.f32 %v1542, 1.0
    %v1544 = vrcp.pop %v1543
    %v1545 = vmul.f32 1.0, %v1544
    %v1547 = vrot.slane %v1464, 4
    %v1549 = vadd.f32 %v256, %v1547
    %v1550 = vxor.u32 %v1549, 2147483648
    %v1551 = vmul.f32 %v1550, 1.442695
    %v1552 = vpow.pop %v1551
    %v1553 = vadd.f32 %v1552, 1.0
    %v1554 = vrcp.pop %v1553
    %v1555 = vmul.f32 1.0, %v1554
    %v1556 = vadd.f32 %v1533, %v492
    %v1558 = vrot.slane %v1556, 4
    %v1560 = vmul.f32 %v1545, %v1558
    %v1561 = vadd.f32 %v330, %v1560
    %v1562 = vtanh.pop %v1561
    %v1564 = vrot.slane %v1562, 2
    %v1566 = vsub.f32 %v1390, %v1564
    %v1568 = vrot.slane %v1566, 6
    %v1570 = vmul.f32 %v1555, %v1568
    %v1571 = vadd.f32 %v1562, %v1570
    %1572 = vst [vmem:[#allocation2 + $0x8] sm:$0x30] %v1571
    %v1574 = vrot.slane %v1571, 4
    %1576 = vmatprep.subr.mxu0 %v97
    %1577 = vmatpush1.msra.mxu0 %v96
    %1578 = vmatprep.subr.mxu0 %v100
    %1579 = vmatpush1.msra.mxu0 %v99
    %1580 = vmatprep.subr.mxu0 %v103
    %1581 = vmatpush1.msra.mxu0 %v102
    %1582 = vmatprep.subr.mxu0 %v106
    %1583 = vmatpush1.msra.mxu0 %v105
    %1584 = vmatprep.subr.mxu0 %v109
    %1585 = vmatpush1.msra.mxu0 %v108
    %1586 = vmatprep.subr.mxu0 %v112
    %1587 = vmatpush1.msra.mxu0 %v111
    %1588 = vmatprep.subr.mxu0 %v115
    %1589 = vmatpush1.msra.mxu0 %v114
    %1590 = vmatprep.subr.mxu0 %v118
    %1591 = vmatpush1.msra.mxu0 %v117
    %1592 = vmatprep.subr.mxu0 %v121
    %1593 = vmatpush1.msra.mxu0 %v120
    %1594 = vmatprep.subr.mxu0 %v124
    %1595 = vmatpush1.msra.mxu0 %v123
    %1596 = vmatprep.subr.mxu0 %v127
    %1597 = vmatpush1.msra.mxu0 %v126
    %1598 = vmatprep.subr.mxu0 %v130
    %1599 = vmatpush1.msra.mxu0 %v129
    %1600 = vmatprep.subr.mxu0 %v133
    %1601 = vmatpush1.msra.mxu0 %v132
    %1602 = vmatprep.subr.mxu0 %v136
    %1603 = vmatpush1.msra.mxu0 %v135
    %1604 = vmatprep.subr.mxu0 %v139
    %1605 = vmatpush1.msra.mxu0 %v138
    %1606 = vmatprep.subr.mxu0 %v142
    %1607 = vmatpush1.msra.mxu0 %v141
    %1608 = vmatprep.subr.mxu0 0.0
    %1609 = vmatpush1.msra.mxu0 0.0
    %1610 = vmatprep.subr.mxu0 0.0
    %1611 = vmatpush1.msra.mxu0 0.0
    %1612 = vmatprep.subr.mxu0 0.0
    %1613 = vmatpush1.msra.mxu0 0.0
    %1614 = vmatprep.subr.mxu0 0.0
    %1615 = vmatpush1.msra.mxu0 0.0
    %1616 = vmatprep.subr.mxu0 0.0
    %1617 = vmatpush1.msra.mxu0 0.0
    %1618 = vmatprep.subr.mxu0 0.0
    %1619 = vmatpush1.msra.mxu0 0.0
    %1620 = vmatprep.subr.mxu0 0.0
    %1621 = vmatpush1.msra.mxu0 0.0
    %1622 = vmatprep.subr.mxu0 0.0
    %1623 = vmatpush1.msra.mxu0 0.0
    %1624 = vmatprep.subr.mxu0 0.0
    %1625 = vmatpush1.msra.mxu0 0.0
    %1626 = vmatprep.subr.mxu0 0.0
    %1627 = vmatpush1.msra.mxu0 0.0
    %1628 = vmatprep.subr.mxu0 0.0
    %1629 = vmatpush1.msra.mxu0 0.0
    %1630 = vmatprep.subr.mxu0 0.0
    %1631 = vmatpush1.msra.mxu0 0.0
    %1632 = vmatprep.subr.mxu0 0.0
    %1633 = vmatpush1.msra.mxu0 0.0
    %1634 = vmatprep.subr.mxu0 0.0
    %1635 = vmatpush1.msra.mxu0 0.0
    %1636 = vmatprep.subr.mxu0 0.0
    %1637 = vmatpush1.msra.mxu0 0.0
    %1638 = vmatprep.subr.mxu0 0.0
    %1639 = vmatpush1.msra.mxu0 0.0
    %1640 = vmatprep.mubr.f32.mxu0 0.0
    %1641 = vmatmul.mubr.f32.gmra.mrb[0].mxu0 %v1574
    %v1642 = vpop.f32.mrb[0].mxu0
    %v1643 = vadd.f32 0.0, %v1642
    %v1644 = vpop.f32.mrb[0].mxu0
    %v1645 = vadd.f32 0.0, %v1644
    %1646 = vdwg.mxu0
    %1647 = vmatprep.subr.mxu0 0.0
    %1648 = vmatpush1.msra.mxu0 %v98
    %1649 = vmatprep.subr.mxu0 0.0
    %1650 = vmatpush1.msra.mxu0 %v101
    %1651 = vmatprep.subr.mxu0 0.0
    %1652 = vmatpush1.msra.mxu0 %v104
    %1653 = vmatprep.subr.mxu0 0.0
    %1654 = vmatpush1.msra.mxu0 %v107
    %1655 = vmatprep.subr.mxu0 0.0
    %1656 = vmatpush1.msra.mxu0 %v110
    %1657 = vmatprep.subr.mxu0 0.0
    %1658 = vmatpush1.msra.mxu0 %v113
    %1659 = vmatprep.subr.mxu0 0.0
    %1660 = vmatpush1.msra.mxu0 %v116
    %1661 = vmatprep.subr.mxu0 0.0
    %1662 = vmatpush1.msra.mxu0 %v119
    %1663 = vmatprep.subr.mxu0 0.0
    %1664 = vmatpush1.msra.mxu0 %v122
    %1665 = vmatprep.subr.mxu0 0.0
    %1666 = vmatpush1.msra.mxu0 %v125
    %1667 = vmatprep.subr.mxu0 0.0
    %1668 = vmatpush1.msra.mxu0 %v128
    %1669 = vmatprep.subr.mxu0 0.0
    %1670 = vmatpush1.msra.mxu0 %v131
    %1671 = vmatprep.subr.mxu0 0.0
    %1672 = vmatpush1.msra.mxu0 %v134
    %1673 = vmatprep.subr.mxu0 0.0
    %1674 = vmatpush1.msra.mxu0 %v137
    %1675 = vmatprep.subr.mxu0 0.0
    %1676 = vmatpush1.msra.mxu0 %v140
    %1677 = vmatprep.subr.mxu0 0.0
    %1678 = vmatpush1.msra.mxu0 %v143
    %1679 = vmatprep.subr.mxu0 0.0
    %1680 = vmatpush1.msra.mxu0 0.0
    %1681 = vmatprep.subr.mxu0 0.0
    %1682 = vmatpush1.msra.mxu0 0.0
    %1683 = vmatprep.subr.mxu0 0.0
    %1684 = vmatpush1.msra.mxu0 0.0
    %1685 = vmatprep.subr.mxu0 0.0
    %1686 = vmatpush1.msra.mxu0 0.0
    %1687 = vmatprep.subr.mxu0 0.0
    %1688 = vmatpush1.msra.mxu0 0.0
    %1689 = vmatprep.subr.mxu0 0.0
    %1690 = vmatpush1.msra.mxu0 0.0
    %1691 = vmatprep.subr.mxu0 0.0
    %1692 = vmatpush1.msra.mxu0 0.0
    %1693 = vmatprep.subr.mxu0 0.0
    %1694 = vmatpush1.msra.mxu0 0.0
    %1695 = vmatprep.subr.mxu0 0.0
    %1696 = vmatpush1.msra.mxu0 0.0
    %1697 = vmatprep.subr.mxu0 0.0
    %1698 = vmatpush1.msra.mxu0 0.0
    %1699 = vmatprep.subr.mxu0 0.0
    %1700 = vmatpush1.msra.mxu0 0.0
    %1701 = vmatprep.subr.mxu0 0.0
    %1702 = vmatpush1.msra.mxu0 0.0
    %1703 = vmatprep.subr.mxu0 0.0
    %1704 = vmatpush1.msra.mxu0 0.0
    %1705 = vmatprep.subr.mxu0 0.0
    %1706 = vmatpush1.msra.mxu0 0.0
    %1707 = vmatprep.subr.mxu0 0.0
    %1708 = vmatpush1.msra.mxu0 0.0
    %1709 = vmatprep.subr.mxu0 0.0
    %1710 = vmatpush1.msra.mxu0 0.0
    %1711 = vmatprep.mubr.f32.mxu0 0.0
    %1712 = vmatmul.mubr.f32.gmra.mrb[0].mxu0 %v1574
    %v1713 = vpop.f32.mrb[0].mxu0
    %v1714 = vadd.f32 0.0, %v1713
    %v1715 = vpop.f32.mrb[0].mxu0
    %1716 = vdwg.mxu0
    %v1718 = vrot.slane %v1643, 2
    %v1720 = vadd.f32 %v254, %v1718
    %v1721 = vxor.u32 %v1720, 2147483648
    %v1722 = vmul.f32 %v1721, 1.442695
    %v1723 = vpow.pop %v1722
    %v1724 = vadd.f32 %v1723, 1.0
    %v1725 = vrcp.pop %v1724
    %v1726 = vmul.f32 1.0, %v1725
    %v1728 = vrot.slane %v1645, 2
    %v1730 = vadd.f32 %v256, %v1728
    %v1731 = vxor.u32 %v1730, 2147483648
    %v1732 = vmul.f32 %v1731, 1.442695
    %v1733 = vpow.pop %v1732
    %v1734 = vadd.f32 %v1733, 1.0
    %v1735 = vrcp.pop %v1734
    %v1736 = vmul.f32 1.0, %v1735
    %v1737 = vadd.f32 %v1714, %v492
    %v1739 = vrot.slane %v1737, 2
    %v1741 = vmul.f32 %v1726, %v1739
    %v1742 = vadd.f32 %v330, %v1741
    %v1743 = vtanh.pop %v1742
    %v1745 = vrot.slane %v1743, 2
    %v1747 = vsub.f32 %v1571, %v1745
    %v1749 = vrot.slane %v1747, 6
    %v1751 = vmul.f32 %v1736, %v1749
    %v1752 = vadd.f32 %v1743, %v1751
    %1753 = vst [vmem:[#allocation2 + $0x8] sm:$0xc0] %v1752
    %v1754 = vld [vmem:[#allocation6] sm:$0xff]
    %v1755 = vld [vmem:[#allocation6 + $0x8] sm:$0xff]
    %v1756 = vld [vmem:[#allocation6 + $0x10] sm:$0xff]
    %v1757 = vld [vmem:[#allocation6 + $0x18] sm:$0xff]
    %v1758 = vld [vmem:[#allocation6 + $0x20] sm:$0xff]
    %v1759 = vld [vmem:[#allocation6 + $0x28] sm:$0xff]
    %v1760 = vld [vmem:[#allocation6 + $0x30] sm:$0xff]
    %v1761 = vld [vmem:[#allocation6 + $0x38] sm:$0xff]
    %v1762 = vld [vmem:[#allocation6 + $0x40] sm:$0xff]
    %v1763 = vld [vmem:[#allocation6 + $0x48] sm:$0xff]
    %v1764 = vld [vmem:[#allocation6 + $0x50] sm:$0xff]
    %v1765 = vld [vmem:[#allocation6 + $0x58] sm:$0xff]
    %v1766 = vld [vmem:[#allocation6 + $0x60] sm:$0xff]
    %v1767 = vld [vmem:[#allocation6 + $0x68] sm:$0xff]
    %v1768 = vld [vmem:[#allocation6 + $0x70] sm:$0xff]
    %v1769 = vld [vmem:[#allocation6 + $0x78] sm:$0xff]
    %v1770 = vld [vmem:[#allocation6 + $0x80] sm:$0xff]
    %v1771 = vld [vmem:[#allocation6 + $0x88] sm:$0xff]
    %v1772 = vld [vmem:[#allocation6 + $0x90] sm:$0xff]
    %v1773 = vld [vmem:[#allocation6 + $0x98] sm:$0xff]
    %v1774 = vld [vmem:[#allocation6 + $0xa0] sm:$0xff]
    %v1775 = vld [vmem:[#allocation6 + $0xa8] sm:$0xff]
    %v1776 = vld [vmem:[#allocation6 + $0xb0] sm:$0xff]
    %v1777 = vld [vmem:[#allocation6 + $0xb8] sm:$0xff]
    %v1778 = vld [vmem:[#allocation6 + $0xc0] sm:$0xff]
    %v1779 = vld [vmem:[#allocation6 + $0xc8] sm:$0xff]
    %v1780 = vld [vmem:[#allocation6 + $0xd0] sm:$0xff]
    %v1781 = vld [vmem:[#allocation6 + $0xd8] sm:$0xff]
    %v1782 = vld [vmem:[#allocation6 + $0xe0] sm:$0xff]
    %v1783 = vld [vmem:[#allocation6 + $0xe8] sm:$0xff]
    %v1784 = vld [vmem:[#allocation6 + $0xf0] sm:$0xff]
    %v1785 = vld [vmem:[#allocation6 + $0xf8] sm:$0xff]
    %v1786 = vld [vmem:[#allocation6 + $0x100] sm:$0xff]
    %v1787 = vld [vmem:[#allocation6 + $0x108] sm:$0xff]
    %v1788 = vld [vmem:[#allocation6 + $0x110] sm:$0xff]
    %v1789 = vld [vmem:[#allocation6 + $0x118] sm:$0xff]
    %v1790 = vld [vmem:[#allocation6 + $0x120] sm:$0xff]
    %v1791 = vld [vmem:[#allocation6 + $0x128] sm:$0xff]
    %v1792 = vld [vmem:[#allocation6 + $0x130] sm:$0xff]
    %v1793 = vld [vmem:[#allocation6 + $0x138] sm:$0xff]
    %v1794 = vld [vmem:[#allocation6 + $0x140] sm:$0xff]
    %v1795 = vld [vmem:[#allocation6 + $0x148] sm:$0xff]
    %v1796 = vld [vmem:[#allocation6 + $0x150] sm:$0xff]
    %v1797 = vld [vmem:[#allocation6 + $0x158] sm:$0xff]
    %v1798 = vld [vmem:[#allocation6 + $0x160] sm:$0xff]
    %v1799 = vld [vmem:[#allocation6 + $0x168] sm:$0xff]
    %v1800 = vld [vmem:[#allocation6 + $0x170] sm:$0xff]
    %v1801 = vld [vmem:[#allocation6 + $0x178] sm:$0xff]
    %v1802 = vld [vmem:[#allocation8] sm:$0xff]
    %v1803 = vld [vmem:[#allocation8 + $0x8] sm:$0xff]
    %v1804 = vld [vmem:[#allocation8 + $0x10] sm:$0xff]
    %v1805 = vld [vmem:[#allocation8 + $0x18] sm:$0xff]
    %v1806 = vld [vmem:[#allocation8 + $0x20] sm:$0xff]
    %v1807 = vld [vmem:[#allocation8 + $0x28] sm:$0xff]
    %v1808 = vld [vmem:[#allocation8 + $0x30] sm:$0xff]
    %v1809 = vld [vmem:[#allocation8 + $0x38] sm:$0xff]
    %v1810 = vld [vmem:[#allocation8 + $0x40] sm:$0xff]
    %v1811 = vld [vmem:[#allocation8 + $0x48] sm:$0xff]
    %v1812 = vld [vmem:[#allocation8 + $0x50] sm:$0xff]
    %v1813 = vld [vmem:[#allocation8 + $0x58] sm:$0xff]
    %v1814 = vld [vmem:[#allocation8 + $0x60] sm:$0xff]
    %v1815 = vld [vmem:[#allocation8 + $0x68] sm:$0xff]
    %v1816 = vld [vmem:[#allocation8 + $0x70] sm:$0xff]
    %v1817 = vld [vmem:[#allocation8 + $0x78] sm:$0xff]
    %v1818 = vld [vmem:[#allocation8 + $0x80] sm:$0xff]
    %v1819 = vld [vmem:[#allocation8 + $0x88] sm:$0xff]
    %v1820 = vld [vmem:[#allocation8 + $0x90] sm:$0xff]
    %v1821 = vld [vmem:[#allocation8 + $0x98] sm:$0xff]
    %v1822 = vld [vmem:[#allocation8 + $0xa0] sm:$0xff]
    %v1823 = vld [vmem:[#allocation8 + $0xa8] sm:$0xff]
    %v1824 = vld [vmem:[#allocation8 + $0xb0] sm:$0xff]
    %v1825 = vld [vmem:[#allocation8 + $0xb8] sm:$0xff]
    %v1826 = vld [vmem:[#allocation8 + $0xc0] sm:$0xff]
    %v1827 = vld [vmem:[#allocation8 + $0xc8] sm:$0xff]
    %v1828 = vld [vmem:[#allocation8 + $0xd0] sm:$0xff]
    %v1829 = vld [vmem:[#allocation8 + $0xd8] sm:$0xff]
    %v1830 = vld [vmem:[#allocation8 + $0xe0] sm:$0xff]
    %v1831 = vld [vmem:[#allocation8 + $0xe8] sm:$0xff]
    %v1832 = vld [vmem:[#allocation8 + $0xf0] sm:$0xff]
    %v1833 = vld [vmem:[#allocation8 + $0xf8] sm:$0xff]
    %v1834 = vld [vmem:[#allocation8 + $0x100] sm:$0xff]
    %v1835 = vld [vmem:[#allocation8 + $0x108] sm:$0xff]
    %v1836 = vld [vmem:[#allocation8 + $0x110] sm:$0xff]
    %v1837 = vld [vmem:[#allocation8 + $0x118] sm:$0xff]
    %v1838 = vld [vmem:[#allocation8 + $0x120] sm:$0xff]
    %v1839 = vld [vmem:[#allocation8 + $0x128] sm:$0xff]
    %v1840 = vld [vmem:[#allocation8 + $0x130] sm:$0xff]
    %v1841 = vld [vmem:[#allocation8 + $0x138] sm:$0xff]
    %v1842 = vld [vmem:[#allocation8 + $0x140] sm:$0xff]
    %v1843 = vld [vmem:[#allocation8 + $0x148] sm:$0xff]
    %v1844 = vld [vmem:[#allocation8 + $0x150] sm:$0xff]
    %v1845 = vld [vmem:[#allocation8 + $0x158] sm:$0xff]
    %v1846 = vld [vmem:[#allocation8 + $0x160] sm:$0xff]
    %v1847 = vld [vmem:[#allocation8 + $0x168] sm:$0xff]
    %v1848 = vld [vmem:[#allocation8 + $0x170] sm:$0xff]
    %v1849 = vld [vmem:[#allocation8 + $0x178] sm:$0xff]
    %v1850 = vld [vmem:[%s7] sm:$0x7]
    %v1851 = vld [vmem:[%s8] sm:$0x1]
    %v1852 = vld [vmem:[#allocation2] sm:$0xff]
    %v1853 = vld [vmem:[#allocation2 + $0x8] sm:$0xff]
    %v1855 = vlaneseq
    %v1856 = vshrl.u32 %v1855, 7
    %v1857 = vsub.s32 0, %v1856
    %v1858 = vrot.slane %v1850, %v1857
    %v1859 = vlaneseq
    %v1860 = vshrl.u32 %v1859, 7
    %v1861 = vsub.s32 1, %v1860
    %v1862 = vrot.slane %v1850, %v1861
    %v1863 = vlaneseq
    %v1864 = vshrl.u32 %v1863, 7
    %v1865 = vsub.s32 2, %v1864
    %v1866 = vrot.slane %v1850, %v1865
    %1870 = vmatprep.subr.mxu0 %v1755
    %1871 = vmatpush1.msra.mxu0 %v1754
    %1872 = vmatprep.subr.mxu0 %v1758
    %1873 = vmatpush1.msra.mxu0 %v1757
    %1874 = vmatprep.subr.mxu0 %v1761
    %1875 = vmatpush1.msra.mxu0 %v1760
    %1876 = vmatprep.subr.mxu0 %v1764
    %1877 = vmatpush1.msra.mxu0 %v1763
    %1878 = vmatprep.subr.mxu0 %v1767
    %1879 = vmatpush1.msra.mxu0 %v1766
    %1880 = vmatprep.subr.mxu0 %v1770
    %1881 = vmatpush1.msra.mxu0 %v1769
    %1882 = vmatprep.subr.mxu0 %v1773
    %1883 = vmatpush1.msra.mxu0 %v1772
    %1884 = vmatprep.subr.mxu0 %v1776
    %1885 = vmatpush1.msra.mxu0 %v1775
    %1886 = vmatprep.subr.mxu0 %v1779
    %1887 = vmatpush1.msra.mxu0 %v1778
    %1888 = vmatprep.subr.mxu0 %v1782
    %1889 = vmatpush1.msra.mxu0 %v1781
    %1890 = vmatprep.subr.mxu0 %v1785
    %1891 = vmatpush1.msra.mxu0 %v1784
    %1892 = vmatprep.subr.mxu0 %v1788
    %1893 = vmatpush1.msra.mxu0 %v1787
    %1894 = vmatprep.subr.mxu0 %v1791
    %1895 = vmatpush1.msra.mxu0 %v1790
    %1896 = vmatprep.subr.mxu0 %v1794
    %1897 = vmatpush1.msra.mxu0 %v1793
    %1898 = vmatprep.subr.mxu0 %v1797
    %1899 = vmatpush1.msra.mxu0 %v1796
    %1900 = vmatprep.subr.mxu0 %v1800
    %1901 = vmatpush1.msra.mxu0 %v1799
    %1902 = vmatprep.subr.mxu0 0.0
    %1903 = vmatpush1.msra.mxu0 0.0
    %1904 = vmatprep.subr.mxu0 0.0
    %1905 = vmatpush1.msra.mxu0 0.0
    %1906 = vmatprep.subr.mxu0 0.0
    %1907 = vmatpush1.msra.mxu0 0.0
    %1908 = vmatprep.subr.mxu0 0.0
    %1909 = vmatpush1.msra.mxu0 0.0
    %1910 = vmatprep.subr.mxu0 0.0
    %1911 = vmatpush1.msra.mxu0 0.0
    %1912 = vmatprep.subr.mxu0 0.0
    %1913 = vmatpush1.msra.mxu0 0.0
    %1914 = vmatprep.subr.mxu0 0.0
    %1915 = vmatpush1.msra.mxu0 0.0
    %1916 = vmatprep.subr.mxu0 0.0
    %1917 = vmatpush1.msra.mxu0 0.0
    %1918 = vmatprep.subr.mxu0 0.0
    %1919 = vmatpush1.msra.mxu0 0.0
    %1920 = vmatprep.subr.mxu0 0.0
    %1921 = vmatpush1.msra.mxu0 0.0
    %1922 = vmatprep.subr.mxu0 0.0
    %1923 = vmatpush1.msra.mxu0 0.0
    %1924 = vmatprep.subr.mxu0 0.0
    %1925 = vmatpush1.msra.mxu0 0.0
    %1926 = vmatprep.subr.mxu0 0.0
    %1927 = vmatpush1.msra.mxu0 0.0
    %1928 = vmatprep.subr.mxu0 0.0
    %1929 = vmatpush1.msra.mxu0 0.0
    %1930 = vmatprep.subr.mxu0 0.0
    %1931 = vmatpush1.msra.mxu0 0.0
    %1932 = vmatprep.subr.mxu0 0.0
    %1933 = vmatpush1.msra.mxu0 0.0
    %1934 = vmatprep.mubr.f32.mxu0 0.0
    %1935 = vmatmul.mubr.f32.gmra.mrb[0].mxu0 %v1852
    %v1936 = vpop.f32.mrb[0].mxu0
    %v1937 = vadd.f32 %v1858, %v1936
    %v1938 = vpop.f32.mrb[0].mxu0
    %v1939 = vadd.f32 %v1862, %v1938
    %1940 = vmatprep.mubr.f32.mxu0 0.0
    %1941 = vmatmul.mubr.f32.gmra.mrb[0].mxu0 %v1853
    %v1942 = vpop.f32.mrb[0].mxu0
    %v1943 = vadd.f32 %v1858, %v1942
    %v1944 = vpop.f32.mrb[0].mxu0
    %v1945 = vadd.f32 %v1862, %v1944
    %1946 = vdwg.mxu0
    %1947 = vmatprep.subr.mxu0 0.0
    %1948 = vmatpush1.msra.mxu0 %v1756
    %1949 = vmatprep.subr.mxu0 0.0
    %1950 = vmatpush1.msra.mxu0 %v1759
    %1951 = vmatprep.subr.mxu0 0.0
    %1952 = vmatpush1.msra.mxu0 %v1762
    %1953 = vmatprep.subr.mxu0 0.0
    %1954 = vmatpush1.msra.mxu0 %v1765
    %1955 = vmatprep.subr.mxu0 0.0
    %1956 = vmatpush1.msra.mxu0 %v1768
    %1957 = vmatprep.subr.mxu0 0.0
    %1958 = vmatpush1.msra.mxu0 %v1771
    %1959 = vmatprep.subr.mxu0 0.0
    %1960 = vmatpush1.msra.mxu0 %v1774
    %1961 = vmatprep.subr.mxu0 0.0
    %1962 = vmatpush1.msra.mxu0 %v1777
    %1963 = vmatprep.subr.mxu0 0.0
    %1964 = vmatpush1.msra.mxu0 %v1780
    %1965 = vmatprep.subr.mxu0 0.0
    %1966 = vmatpush1.msra.mxu0 %v1783
    %1967 = vmatprep.subr.mxu0 0.0
    %1968 = vmatpush1.msra.mxu0 %v1786
    %1969 = vmatprep.subr.mxu0 0.0
    %1970 = vmatpush1.msra.mxu0 %v1789
    %1971 = vmatprep.subr.mxu0 0.0
    %1972 = vmatpush1.msra.mxu0 %v1792
    %1973 = vmatprep.subr.mxu0 0.0
    %1974 = vmatpush1.msra.mxu0 %v1795
    %1975 = vmatprep.subr.mxu0 0.0
    %1976 = vmatpush1.msra.mxu0 %v1798
    %1977 = vmatprep.subr.mxu0 0.0
    %1978 = vmatpush1.msra.mxu0 %v1801
    %1979 = vmatprep.subr.mxu0 0.0
    %1980 = vmatpush1.msra.mxu0 0.0
    %1981 = vmatprep.subr.mxu0 0.0
    %1982 = vmatpush1.msra.mxu0 0.0
    %1983 = vmatprep.subr.mxu0 0.0
    %1984 = vmatpush1.msra.mxu0 0.0
    %1985 = vmatprep.subr.mxu0 0.0
    %1986 = vmatpush1.msra.mxu0 0.0
    %1987 = vmatprep.subr.mxu0 0.0
    %1988 = vmatpush1.msra.mxu0 0.0
    %1989 = vmatprep.subr.mxu0 0.0
    %1990 = vmatpush1.msra.mxu0 0.0
    %1991 = vmatprep.subr.mxu0 0.0
    %1992 = vmatpush1.msra.mxu0 0.0
    %1993 = vmatprep.subr.mxu0 0.0
    %1994 = vmatpush1.msra.mxu0 0.0
    %1995 = vmatprep.subr.mxu0 0.0
    %1996 = vmatpush1.msra.mxu0 0.0
    %1997 = vmatprep.subr.mxu0 0.0
    %1998 = vmatpush1.msra.mxu0 0.0
    %1999 = vmatprep.subr.mxu0 0.0
    %2000 = vmatpush1.msra.mxu0 0.0
    %2001 = vmatprep.subr.mxu0 0.0
    %2002 = vmatpush1.msra.mxu0 0.0
    %2003 = vmatprep.subr.mxu0 0.0
    %2004 = vmatpush1.msra.mxu0 0.0
    %2005 = vmatprep.subr.mxu0 0.0
    %2006 = vmatpush1.msra.mxu0 0.0
    %2007 = vmatprep.subr.mxu0 0.0
    %2008 = vmatpush1.msra.mxu0 0.0
    %2009 = vmatprep.subr.mxu0 0.0
    %2010 = vmatpush1.msra.mxu0 0.0
    %2011 = vmatprep.mubr.f32.mxu0 0.0
    %2012 = vmatmul.mubr.f32.gmra.mrb[0].mxu0 %v1852
    %v2013 = vpop.f32.mrb[0].mxu0
    %v2014 = vadd.f32 %v1866, %v2013
    %v2015 = vpop.f32.mrb[0].mxu0
    %2016 = vmatprep.mubr.f32.mxu0 0.0
    %2017 = vmatmul.mubr.f32.gmra.mrb[0].mxu0 %v1853
    %v2018 = vpop.f32.mrb[0].mxu0
    %v2019 = vadd.f32 %v1866, %v2018
    %v2020 = vpop.f32.mrb[0].mxu0
    %2021 = vdwg.mxu0
    %2022 = vmatprep.subr.mxu0 %v1803
    %2023 = vmatpush1.msra.mxu0 %v1802
    %2024 = vmatprep.subr.mxu0 %v1806
    %2025 = vmatpush1.msra.mxu0 %v1805
    %2026 = vmatprep.subr.mxu0 %v1809
    %2027 = vmatpush1.msra.mxu0 %v1808
    %2028 = vmatprep.subr.mxu0 %v1812
    %2029 = vmatpush1.msra.mxu0 %v1811
    %2030 = vmatprep.subr.mxu0 %v1815
    %2031 = vmatpush1.msra.mxu0 %v1814
    %2032 = vmatprep.subr.mxu0 %v1818
    %2033 = vmatpush1.msra.mxu0 %v1817
    %2034 = vmatprep.subr.mxu0 %v1821
    %2035 = vmatpush1.msra.mxu0 %v1820
    %2036 = vmatprep.subr.mxu0 %v1824
    %2037 = vmatpush1.msra.mxu0 %v1823
    %2038 = vmatprep.subr.mxu0 %v1827
    %2039 = vmatpush1.msra.mxu0 %v1826
    %2040 = vmatprep.subr.mxu0 %v1830
    %2041 = vmatpush1.msra.mxu0 %v1829
    %2042 = vmatprep.subr.mxu0 %v1833
    %2043 = vmatpush1.msra.mxu0 %v1832
    %2044 = vmatprep.subr.mxu0 %v1836
    %2045 = vmatpush1.msra.mxu0 %v1835
    %2046 = vmatprep.subr.mxu0 %v1839
    %2047 = vmatpush1.msra.mxu0 %v1838
    %2048 = vmatprep.subr.mxu0 %v1842
    %2049 = vmatpush1.msra.mxu0 %v1841
    %2050 = vmatprep.subr.mxu0 %v1845
    %2051 = vmatpush1.msra.mxu0 %v1844
    %2052 = vmatprep.subr.mxu0 %v1848
    %2053 = vmatpush1.msra.mxu0 %v1847
    %2054 = vmatprep.subr.mxu0 0.0
    %2055 = vmatpush1.msra.mxu0 0.0
    %2056 = vmatprep.subr.mxu0 0.0
    %2057 = vmatpush1.msra.mxu0 0.0
    %2058 = vmatprep.subr.mxu0 0.0
    %2059 = vmatpush1.msra.mxu0 0.0
    %2060 = vmatprep.subr.mxu0 0.0
    %2061 = vmatpush1.msra.mxu0 0.0
    %2062 = vmatprep.subr.mxu0 0.0
    %2063 = vmatpush1.msra.mxu0 0.0
    %2064 = vmatprep.subr.mxu0 0.0
    %2065 = vmatpush1.msra.mxu0 0.0
    %2066 = vmatprep.subr.mxu0 0.0
    %2067 = vmatpush1.msra.mxu0 0.0
    %2068 = vmatprep.subr.mxu0 0.0
    %2069 = vmatpush1.msra.mxu0 0.0
    %2070 = vmatprep.subr.mxu0 0.0
    %2071 = vmatpush1.msra.mxu0 0.0
    %2072 = vmatprep.subr.mxu0 0.0
    %2073 = vmatpush1.msra.mxu0 0.0
    %2074 = vmatprep.subr.mxu0 0.0
    %2075 = vmatpush1.msra.mxu0 0.0
    %2076 = vmatprep.subr.mxu0 0.0
    %2077 = vmatpush1.msra.mxu0 0.0
    %2078 = vmatprep.subr.mxu0 0.0
    %2079 = vmatpush1.msra.mxu0 0.0
    %2080 = vmatprep.subr.mxu0 0.0
    %2081 = vmatpush1.msra.mxu0 0.0
    %2082 = vmatprep.subr.mxu0 0.0
    %2083 = vmatpush1.msra.mxu0 0.0
    %2084 = vmatprep.subr.mxu0 0.0
    %2085 = vmatpush1.msra.mxu0 0.0
    %2086 = vmatprep.mubr.f32.mxu0 0.0
    %2087 = vmatmul.mubr.f32.gmra.mrb[0].mxu0 0.0
    %v2088 = vpop.f32.mrb[0].mxu0
    %v2089 = vadd.f32 0.0, %v2088
    %v2090 = vpop.f32.mrb[0].mxu0
    %v2091 = vadd.f32 0.0, %v2090
    %2092 = vdwg.mxu0
    %2093 = vmatprep.subr.mxu0 0.0
    %2094 = vmatpush1.msra.mxu0 %v1804
    %2095 = vmatprep.subr.mxu0 0.0
    %2096 = vmatpush1.msra.mxu0 %v1807
    %2097 = vmatprep.subr.mxu0 0.0
    %2098 = vmatpush1.msra.mxu0 %v1810
    %2099 = vmatprep.subr.mxu0 0.0
    %2100 = vmatpush1.msra.mxu0 %v1813
    %2101 = vmatprep.subr.mxu0 0.0
    %2102 = vmatpush1.msra.mxu0 %v1816
    %2103 = vmatprep.subr.mxu0 0.0
    %2104 = vmatpush1.msra.mxu0 %v1819
    %2105 = vmatprep.subr.mxu0 0.0
    %2106 = vmatpush1.msra.mxu0 %v1822
    %2107 = vmatprep.subr.mxu0 0.0
    %2108 = vmatpush1.msra.mxu0 %v1825
    %2109 = vmatprep.subr.mxu0 0.0
    %2110 = vmatpush1.msra.mxu0 %v1828
    %2111 = vmatprep.subr.mxu0 0.0
    %2112 = vmatpush1.msra.mxu0 %v1831
    %2113 = vmatprep.subr.mxu0 0.0
    %2114 = vmatpush1.msra.mxu0 %v1834
    %2115 = vmatprep.subr.mxu0 0.0
    %2116 = vmatpush1.msra.mxu0 %v1837
    %2117 = vmatprep.subr.mxu0 0.0
    %2118 = vmatpush1.msra.mxu0 %v1840
    %2119 = vmatprep.subr.mxu0 0.0
    %2120 = vmatpush1.msra.mxu0 %v1843
    %2121 = vmatprep.subr.mxu0 0.0
    %2122 = vmatpush1.msra.mxu0 %v1846
    %2123 = vmatprep.subr.mxu0 0.0
    %2124 = vmatpush1.msra.mxu0 %v1849
    %2125 = vmatprep.subr.mxu0 0.0
    %2126 = vmatpush1.msra.mxu0 0.0
    %2127 = vmatprep.subr.mxu0 0.0
    %2128 = vmatpush1.msra.mxu0 0.0
    %2129 = vmatprep.subr.mxu0 0.0
    %2130 = vmatpush1.msra.mxu0 0.0
    %2131 = vmatprep.subr.mxu0 0.0
    %2132 = vmatpush1.msra.mxu0 0.0
    %2133 = vmatprep.subr.mxu0 0.0
    %2134 = vmatpush1.msra.mxu0 0.0
    %2135 = vmatprep.subr.mxu0 0.0
    %2136 = vmatpush1.msra.mxu0 0.0
    %2137 = vmatprep.subr.mxu0 0.0
    %2138 = vmatpush1.msra.mxu0 0.0
    %2139 = vmatprep.subr.mxu0 0.0
    %2140 = vmatpush1.msra.mxu0 0.0
    %2141 = vmatprep.subr.mxu0 0.0
    %2142 = vmatpush1.msra.mxu0 0.0
    %2143 = vmatprep.subr.mxu0 0.0
    %2144 = vmatpush1.msra.mxu0 0.0
    %2145 = vmatprep.subr.mxu0 0.0
    %2146 = vmatpush1.msra.mxu0 0.0
    %2147 = vmatprep.subr.mxu0 0.0
    %2148 = vmatpush1.msra.mxu0 0.0
    %2149 = vmatprep.subr.mxu0 0.0
    %2150 = vmatpush1.msra.mxu0 0.0
    %2151 = vmatprep.subr.mxu0 0.0
    %2152 = vmatpush1.msra.mxu0 0.0
    %2153 = vmatprep.subr.mxu0 0.0
    %2154 = vmatpush1.msra.mxu0 0.0
    %2155 = vmatprep.subr.mxu0 0.0
    %2156 = vmatpush1.msra.mxu0 0.0
    %2157 = vmatprep.mubr.f32.mxu0 0.0
    %2158 = vmatmul.mubr.f32.gmra.mrb[0].mxu0 0.0
    %v2159 = vpop.f32.mrb[0].mxu0
    %v2160 = vadd.f32 0.0, %v2159
    %v2161 = vpop.f32.mrb[0].mxu0
    %2162 = vdwg.mxu0
    %v2163 = vadd.f32 %v1937, %v2089
    %v2164 = vxor.u32 %v2163, 2147483648
    %v2165 = vmul.f32 %v2164, 1.442695
    %v2166 = vpow.pop %v2165
    %v2167 = vadd.f32 %v2166, 1.0
    %v2168 = vrcp.pop %v2167
    %v2169 = vmul.f32 1.0, %v2168
    %v2170 = vadd.f32 %v1939, %v2091
    %v2171 = vxor.u32 %v2170, 2147483648
    %v2172 = vmul.f32 %v2171, 1.442695
    %v2173 = vpow.pop %v2172
    %v2174 = vadd.f32 %v2173, 1.0
    %v2175 = vrcp.pop %v2174
    %v2176 = vmul.f32 1.0, %v2175
    %v2178 = vlaneseq
    %v2179 = vshrl.u32 %v2178, 7
    %v2180 = vsub.s32 0, %v2179
    %v2181 = vrot.slane %v1851, %v2180
    %v2183 = vadd.f32 %v2160, %v2181
    %v2184 = vmul.f32 %v2169, %v2183
    %v2185 = vadd.f32 %v2014, %v2184
    %v2186 = vtanh.pop %v2185
    %v2187 = vsub.f32 0.0, %v2186
    %v2188 = vmul.f32 %v2176, %v2187
    %v2189 = vadd.f32 %v2186, %v2188
    %2190 = vmatprep.subr.mxu0 %v1803
    %2191 = vmatpush1.msra.mxu0 %v1802
    %2192 = vmatprep.subr.mxu0 %v1806
    %2193 = vmatpush1.msra.mxu0 %v1805
    %2194 = vmatprep.subr.mxu0 %v1809
    %2195 = vmatpush1.msra.mxu0 %v1808
    %2196 = vmatprep.subr.mxu0 %v1812
    %2197 = vmatpush1.msra.mxu0 %v1811
    %2198 = vmatprep.subr.mxu0 %v1815
    %2199 = vmatpush1.msra.mxu0 %v1814
    %2200 = vmatprep.subr.mxu0 %v1818
    %2201 = vmatpush1.msra.mxu0 %v1817
    %2202 = vmatprep.subr.mxu0 %v1821
    %2203 = vmatpush1.msra.mxu0 %v1820
    %2204 = vmatprep.subr.mxu0 %v1824
    %2205 = vmatpush1.msra.mxu0 %v1823
    %2206 = vmatprep.subr.mxu0 %v1827
    %2207 = vmatpush1.msra.mxu0 %v1826
    %2208 = vmatprep.subr.mxu0 %v1830
    %2209 = vmatpush1.msra.mxu0 %v1829
    %2210 = vmatprep.subr.mxu0 %v1833
    %2211 = vmatpush1.msra.mxu0 %v1832
    %2212 = vmatprep.subr.mxu0 %v1836
    %2213 = vmatpush1.msra.mxu0 %v1835
    %2214 = vmatprep.subr.mxu0 %v1839
    %2215 = vmatpush1.msra.mxu0 %v1838
    %2216 = vmatprep.subr.mxu0 %v1842
    %2217 = vmatpush1.msra.mxu0 %v1841
    %2218 = vmatprep.subr.mxu0 %v1845
    %2219 = vmatpush1.msra.mxu0 %v1844
    %2220 = vmatprep.subr.mxu0 %v1848
    %2221 = vmatpush1.msra.mxu0 %v1847
    %2222 = vmatprep.subr.mxu0 0.0
    %2223 = vmatpush1.msra.mxu0 0.0
    %2224 = vmatprep.subr.mxu0 0.0
    %2225 = vmatpush1.msra.mxu0 0.0
    %2226 = vmatprep.subr.mxu0 0.0
    %2227 = vmatpush1.msra.mxu0 0.0
    %2228 = vmatprep.subr.mxu0 0.0
    %2229 = vmatpush1.msra.mxu0 0.0
    %2230 = vmatprep.subr.mxu0 0.0
    %2231 = vmatpush1.msra.mxu0 0.0
    %2232 = vmatprep.subr.mxu0 0.0
    %2233 = vmatpush1.msra.mxu0 0.0
    %2234 = vmatprep.subr.mxu0 0.0
    %2235 = vmatpush1.msra.mxu0 0.0
    %2236 = vmatprep.subr.mxu0 0.0
    %2237 = vmatpush1.msra.mxu0 0.0
    %2238 = vmatprep.subr.mxu0 0.0
    %2239 = vmatpush1.msra.mxu0 0.0
    %2240 = vmatprep.subr.mxu0 0.0
    %2241 = vmatpush1.msra.mxu0 0.0
    %2242 = vmatprep.subr.mxu0 0.0
    %2243 = vmatpush1.msra.mxu0 0.0
    %2244 = vmatprep.subr.mxu0 0.0
    %2245 = vmatpush1.msra.mxu0 0.0
    %2246 = vmatprep.subr.mxu0 0.0
    %2247 = vmatpush1.msra.mxu0 0.0
    %2248 = vmatprep.subr.mxu0 0.0
    %2249 = vmatpush1.msra.mxu0 0.0
    %2250 = vmatprep.subr.mxu0 0.0
    %2251 = vmatpush1.msra.mxu0 0.0
    %2252 = vmatprep.subr.mxu0 0.0
    %2253 = vmatpush1.msra.mxu0 0.0
    %2254 = vmatprep.mubr.f32.mxu0 0.0
    %2255 = vmatmul.mubr.f32.gmra.mrb[0].mxu0 %v2189
    %v2256 = vpop.f32.mrb[0].mxu0
    %v2257 = vadd.f32 0.0, %v2256
    %v2258 = vpop.f32.mrb[0].mxu0
    %v2259 = vadd.f32 0.0, %v2258
    %2260 = vdwg.mxu0
    %2261 = vmatprep.subr.mxu0 0.0
    %2262 = vmatpush1.msra.mxu0 %v1804
    %2263 = vmatprep.subr.mxu0 0.0
    %2264 = vmatpush1.msra.mxu0 %v1807
    %2265 = vmatprep.subr.mxu0 0.0
    %2266 = vmatpush1.msra.mxu0 %v1810
    %2267 = vmatprep.subr.mxu0 0.0
    %2268 = vmatpush1.msra.mxu0 %v1813
    %2269 = vmatprep.subr.mxu0 0.0
    %2270 = vmatpush1.msra.mxu0 %v1816
    %2271 = vmatprep.subr.mxu0 0.0
    %2272 = vmatpush1.msra.mxu0 %v1819
    %2273 = vmatprep.subr.mxu0 0.0
    %2274 = vmatpush1.msra.mxu0 %v1822
    %2275 = vmatprep.subr.mxu0 0.0
    %2276 = vmatpush1.msra.mxu0 %v1825
    %2277 = vmatprep.subr.mxu0 0.0
    %2278 = vmatpush1.msra.mxu0 %v1828
    %2279 = vmatprep.subr.mxu0 0.0
    %2280 = vmatpush1.msra.mxu0 %v1831
    %2281 = vmatprep.subr.mxu0 0.0
    %2282 = vmatpush1.msra.mxu0 %v1834
    %2283 = vmatprep.subr.mxu0 0.0
    %2284 = vmatpush1.msra.mxu0 %v1837
    %2285 = vmatprep.subr.mxu0 0.0
    %2286 = vmatpush1.msra.mxu0 %v1840
    %2287 = vmatprep.subr.mxu0 0.0
    %2288 = vmatpush1.msra.mxu0 %v1843
    %2289 = vmatprep.subr.mxu0 0.0
    %2290 = vmatpush1.msra.mxu0 %v1846
    %2291 = vmatprep.subr.mxu0 0.0
    %2292 = vmatpush1.msra.mxu0 %v1849
    %2293 = vmatprep.subr.mxu0 0.0
    %2294 = vmatpush1.msra.mxu0 0.0
    %2295 = vmatprep.subr.mxu0 0.0
    %2296 = vmatpush1.msra.mxu0 0.0
    %2297 = vmatprep.subr.mxu0 0.0
    %2298 = vmatpush1.msra.mxu0 0.0
    %2299 = vmatprep.subr.mxu0 0.0
    %2300 = vmatpush1.msra.mxu0 0.0
    %2301 = vmatprep.subr.mxu0 0.0
    %2302 = vmatpush1.msra.mxu0 0.0
    %2303 = vmatprep.subr.mxu0 0.0
    %2304 = vmatpush1.msra.mxu0 0.0
    %2305 = vmatprep.subr.mxu0 0.0
    %2306 = vmatpush1.msra.mxu0 0.0
    %2307 = vmatprep.subr.mxu0 0.0
    %2308 = vmatpush1.msra.mxu0 0.0
    %2309 = vmatprep.subr.mxu0 0.0
    %2310 = vmatpush1.msra.mxu0 0.0
    %2311 = vmatprep.subr.mxu0 0.0
    %2312 = vmatpush1.msra.mxu0 0.0
    %2313 = vmatprep.subr.mxu0 0.0
    %2314 = vmatpush1.msra.mxu0 0.0
    %2315 = vmatprep.subr.mxu0 0.0
    %2316 = vmatpush1.msra.mxu0 0.0
    %2317 = vmatprep.subr.mxu0 0.0
    %2318 = vmatpush1.msra.mxu0 0.0
    %2319 = vmatprep.subr.mxu0 0.0
    %2320 = vmatpush1.msra.mxu0 0.0
    %2321 = vmatprep.subr.mxu0 0.0
    %2322 = vmatpush1.msra.mxu0 0.0
    %2323 = vmatprep.subr.mxu0 0.0
    %2324 = vmatpush1.msra.mxu0 0.0
    %2325 = vmatprep.mubr.f32.mxu0 0.0
    %2326 = vmatmul.mubr.f32.gmra.mrb[0].mxu0 %v2189
    %v2327 = vpop.f32.mrb[0].mxu0
    %v2328 = vadd.f32 0.0, %v2327
    %v2329 = vpop.f32.mrb[0].mxu0
    %2330 = vdwg.mxu0
    %v2332 = vrot.slane %v2257, 6
    %v2334 = vadd.f32 %v1937, %v2332
    %v2335 = vxor.u32 %v2334, 2147483648
    %v2336 = vmul.f32 %v2335, 1.442695
    %v2337 = vpow.pop %v2336
    %v2338 = vadd.f32 %v2337, 1.0
    %v2339 = vrcp.pop %v2338
    %v2340 = vmul.f32 1.0, %v2339
    %v2342 = vrot.slane %v2259, 6
    %v2344 = vadd.f32 %v1939, %v2342
    %v2345 = vxor.u32 %v2344, 2147483648
    %v2346 = vmul.f32 %v2345, 1.442695
    %v2347 = vpow.pop %v2346
    %v2348 = vadd.f32 %v2347, 1.0
    %v2349 = vrcp.pop %v2348
    %v2350 = vmul.f32 1.0, %v2349
    %v2351 = vadd.f32 %v2328, %v2181
    %v2353 = vrot.slane %v2351, 6
    %v2355 = vmul.f32 %v2340, %v2353
    %v2356 = vadd.f32 %v2014, %v2355
    %v2357 = vtanh.pop %v2356
    %v2359 = vrot.slane %v2357, 2
    %v2361 = vsub.f32 %v2189, %v2359
    %v2363 = vrot.slane %v2361, 6
    %v2365 = vmul.f32 %v2350, %v2363
    %v2366 = vadd.f32 %v2357, %v2365
    %v2368 = vrot.slane %v2366, 2
    %2370 = vmatprep.subr.mxu0 %v1803
    %2371 = vmatpush1.msra.mxu0 %v1802
    %2372 = vmatprep.subr.mxu0 %v1806
    %2373 = vmatpush1.msra.mxu0 %v1805
    %2374 = vmatprep.subr.mxu0 %v1809
    %2375 = vmatpush1.msra.mxu0 %v1808
    %2376 = vmatprep.subr.mxu0 %v1812
    %2377 = vmatpush1.msra.mxu0 %v1811
    %2378 = vmatprep.subr.mxu0 %v1815
    %2379 = vmatpush1.msra.mxu0 %v1814
    %2380 = vmatprep.subr.mxu0 %v1818
    %2381 = vmatpush1.msra.mxu0 %v1817
    %2382 = vmatprep.subr.mxu0 %v1821
    %2383 = vmatpush1.msra.mxu0 %v1820
    %2384 = vmatprep.subr.mxu0 %v1824
    %2385 = vmatpush1.msra.mxu0 %v1823
    %2386 = vmatprep.subr.mxu0 %v1827
    %2387 = vmatpush1.msra.mxu0 %v1826
    %2388 = vmatprep.subr.mxu0 %v1830
    %2389 = vmatpush1.msra.mxu0 %v1829
    %2390 = vmatprep.subr.mxu0 %v1833
    %2391 = vmatpush1.msra.mxu0 %v1832
    %2392 = vmatprep.subr.mxu0 %v1836
    %2393 = vmatpush1.msra.mxu0 %v1835
    %2394 = vmatprep.subr.mxu0 %v1839
    %2395 = vmatpush1.msra.mxu0 %v1838
    %2396 = vmatprep.subr.mxu0 %v1842
    %2397 = vmatpush1.msra.mxu0 %v1841
    %2398 = vmatprep.subr.mxu0 %v1845
    %2399 = vmatpush1.msra.mxu0 %v1844
    %2400 = vmatprep.subr.mxu0 %v1848
    %2401 = vmatpush1.msra.mxu0 %v1847
    %2402 = vmatprep.subr.mxu0 0.0
    %2403 = vmatpush1.msra.mxu0 0.0
    %2404 = vmatprep.subr.mxu0 0.0
    %2405 = vmatpush1.msra.mxu0 0.0
    %2406 = vmatprep.subr.mxu0 0.0
    %2407 = vmatpush1.msra.mxu0 0.0
    %2408 = vmatprep.subr.mxu0 0.0
    %2409 = vmatpush1.msra.mxu0 0.0
    %2410 = vmatprep.subr.mxu0 0.0
    %2411 = vmatpush1.msra.mxu0 0.0
    %2412 = vmatprep.subr.mxu0 0.0
    %2413 = vmatpush1.msra.mxu0 0.0
    %2414 = vmatprep.subr.mxu0 0.0
    %2415 = vmatpush1.msra.mxu0 0.0
    %2416 = vmatprep.subr.mxu0 0.0
    %2417 = vmatpush1.msra.mxu0 0.0
    %2418 = vmatprep.subr.mxu0 0.0
    %2419 = vmatpush1.msra.mxu0 0.0
    %2420 = vmatprep.subr.mxu0 0.0
    %2421 = vmatpush1.msra.mxu0 0.0
    %2422 = vmatprep.subr.mxu0 0.0
    %2423 = vmatpush1.msra.mxu0 0.0
    %2424 = vmatprep.subr.mxu0 0.0
    %2425 = vmatpush1.msra.mxu0 0.0
    %2426 = vmatprep.subr.mxu0 0.0
    %2427 = vmatpush1.msra.mxu0 0.0
    %2428 = vmatprep.subr.mxu0 0.0
    %2429 = vmatpush1.msra.mxu0 0.0
    %2430 = vmatprep.subr.mxu0 0.0
    %2431 = vmatpush1.msra.mxu0 0.0
    %2432 = vmatprep.subr.mxu0 0.0
    %2433 = vmatpush1.msra.mxu0 0.0
    %2434 = vmatprep.mubr.f32.mxu0 0.0
    %2435 = vmatmul.mubr.f32.gmra.mrb[0].mxu0 %v2368
    %v2436 = vpop.f32.mrb[0].mxu0
    %v2437 = vadd.f32 0.0, %v2436
    %v2438 = vpop.f32.mrb[0].mxu0
    %v2439 = vadd.f32 0.0, %v2438
    %2440 = vdwg.mxu0
    %2441 = vmatprep.subr.mxu0 0.0
    %2442 = vmatpush1.msra.mxu0 %v1804
    %2443 = vmatprep.subr.mxu0 0.0
    %2444 = vmatpush1.msra.mxu0 %v1807
    %2445 = vmatprep.subr.mxu0 0.0
    %2446 = vmatpush1.msra.mxu0 %v1810
    %2447 = vmatprep.subr.mxu0 0.0
    %2448 = vmatpush1.msra.mxu0 %v1813
    %2449 = vmatprep.subr.mxu0 0.0
    %2450 = vmatpush1.msra.mxu0 %v1816
    %2451 = vmatprep.subr.mxu0 0.0
    %2452 = vmatpush1.msra.mxu0 %v1819
    %2453 = vmatprep.subr.mxu0 0.0
    %2454 = vmatpush1.msra.mxu0 %v1822
    %2455 = vmatprep.subr.mxu0 0.0
    %2456 = vmatpush1.msra.mxu0 %v1825
    %2457 = vmatprep.subr.mxu0 0.0
    %2458 = vmatpush1.msra.mxu0 %v1828
    %2459 = vmatprep.subr.mxu0 0.0
    %2460 = vmatpush1.msra.mxu0 %v1831
    %2461 = vmatprep.subr.mxu0 0.0
    %2462 = vmatpush1.msra.mxu0 %v1834
    %2463 = vmatprep.subr.mxu0 0.0
    %2464 = vmatpush1.msra.mxu0 %v1837
    %2465 = vmatprep.subr.mxu0 0.0
    %2466 = vmatpush1.msra.mxu0 %v1840
    %2467 = vmatprep.subr.mxu0 0.0
    %2468 = vmatpush1.msra.mxu0 %v1843
    %2469 = vmatprep.subr.mxu0 0.0
    %2470 = vmatpush1.msra.mxu0 %v1846
    %2471 = vmatprep.subr.mxu0 0.0
    %2472 = vmatpush1.msra.mxu0 %v1849
    %2473 = vmatprep.subr.mxu0 0.0
    %2474 = vmatpush1.msra.mxu0 0.0
    %2475 = vmatprep.subr.mxu0 0.0
    %2476 = vmatpush1.msra.mxu0 0.0
    %2477 = vmatprep.subr.mxu0 0.0
    %2478 = vmatpush1.msra.mxu0 0.0
    %2479 = vmatprep.subr.mxu0 0.0
    %2480 = vmatpush1.msra.mxu0 0.0
    %2481 = vmatprep.subr.mxu0 0.0
    %2482 = vmatpush1.msra.mxu0 0.0
    %2483 = vmatprep.subr.mxu0 0.0
    %2484 = vmatpush1.msra.mxu0 0.0
    %2485 = vmatprep.subr.mxu0 0.0
    %2486 = vmatpush1.msra.mxu0 0.0
    %2487 = vmatprep.subr.mxu0 0.0
    %2488 = vmatpush1.msra.mxu0 0.0
    %2489 = vmatprep.subr.mxu0 0.0
    %2490 = vmatpush1.msra.mxu0 0.0
    %2491 = vmatprep.subr.mxu0 0.0
    %2492 = vmatpush1.msra.mxu0 0.0
    %2493 = vmatprep.subr.mxu0 0.0
    %2494 = vmatpush1.msra.mxu0 0.0
    %2495 = vmatprep.subr.mxu0 0.0
    %2496 = vmatpush1.msra.mxu0 0.0
    %2497 = vmatprep.subr.mxu0 0.0
    %2498 = vmatpush1.msra.mxu0 0.0
    %2499 = vmatprep.subr.mxu0 0.0
    %2500 = vmatpush1.msra.mxu0 0.0
    %2501 = vmatprep.subr.mxu0 0.0
    %2502 = vmatpush1.msra.mxu0 0.0
    %2503 = vmatprep.subr.mxu0 0.0
    %2504 = vmatpush1.msra.mxu0 0.0
    %2505 = vmatprep.mubr.f32.mxu0 0.0
    %2506 = vmatmul.mubr.f32.gmra.mrb[0].mxu0 %v2368
    %v2507 = vpop.f32.mrb[0].mxu0
    %v2508 = vadd.f32 0.0, %v2507
    %v2509 = vpop.f32.mrb[0].mxu0
    %2510 = vdwg.mxu0
    %v2512 = vrot.slane %v2437, 4
    %v2514 = vadd.f32 %v1937, %v2512
    %v2515 = vxor.u32 %v2514, 2147483648
    %v2516 = vmul.f32 %v2515, 1.442695
    %v2517 = vpow.pop %v2516
    %v2518 = vadd.f32 %v2517, 1.0
    %v2519 = vrcp.pop %v2518
    %v2520 = vmul.f32 1.0, %v2519
    %v2522 = vrot.slane %v2439, 4
    %v2524 = vadd.f32 %v1939, %v2522
    %v2525 = vxor.u32 %v2524, 2147483648
    %v2526 = vmul.f32 %v2525, 1.442695
    %v2527 = vpow.pop %v2526
    %v2528 = vadd.f32 %v2527, 1.0
    %v2529 = vrcp.pop %v2528
    %v2530 = vmul.f32 1.0, %v2529
    %v2531 = vadd.f32 %v2508, %v2181
    %v2533 = vrot.slane %v2531, 4
    %v2535 = vmul.f32 %v2520, %v2533
    %v2536 = vadd.f32 %v2014, %v2535
    %v2537 = vtanh.pop %v2536
    %v2539 = vrot.slane %v2537, 2
    %v2541 = vsub.f32 %v2366, %v2539
    %v2543 = vrot.slane %v2541, 6
    %v2545 = vmul.f32 %v2530, %v2543
    %v2546 = vadd.f32 %v2537, %v2545
    %v2548 = vrot.slane %v2546, 4
    %2550 = vmatprep.subr.mxu0 %v1803
    %2551 = vmatpush1.msra.mxu0 %v1802
    %2552 = vmatprep.subr.mxu0 %v1806
    %2553 = vmatpush1.msra.mxu0 %v1805
    %2554 = vmatprep.subr.mxu0 %v1809
    %2555 = vmatpush1.msra.mxu0 %v1808
    %2556 = vmatprep.subr.mxu0 %v1812
    %2557 = vmatpush1.msra.mxu0 %v1811
    %2558 = vmatprep.subr.mxu0 %v1815
    %2559 = vmatpush1.msra.mxu0 %v1814
    %2560 = vmatprep.subr.mxu0 %v1818
    %2561 = vmatpush1.msra.mxu0 %v1817
    %2562 = vmatprep.subr.mxu0 %v1821
    %2563 = vmatpush1.msra.mxu0 %v1820
    %2564 = vmatprep.subr.mxu0 %v1824
    %2565 = vmatpush1.msra.mxu0 %v1823
    %2566 = vmatprep.subr.mxu0 %v1827
    %2567 = vmatpush1.msra.mxu0 %v1826
    %2568 = vmatprep.subr.mxu0 %v1830
    %2569 = vmatpush1.msra.mxu0 %v1829
    %2570 = vmatprep.subr.mxu0 %v1833
    %2571 = vmatpush1.msra.mxu0 %v1832
    %2572 = vmatprep.subr.mxu0 %v1836
    %2573 = vmatpush1.msra.mxu0 %v1835
    %2574 = vmatprep.subr.mxu0 %v1839
    %2575 = vmatpush1.msra.mxu0 %v1838
    %2576 = vmatprep.subr.mxu0 %v1842
    %2577 = vmatpush1.msra.mxu0 %v1841
    %2578 = vmatprep.subr.mxu0 %v1845
    %2579 = vmatpush1.msra.mxu0 %v1844
    %2580 = vmatprep.subr.mxu0 %v1848
    %2581 = vmatpush1.msra.mxu0 %v1847
    %2582 = vmatprep.subr.mxu0 0.0
    %2583 = vmatpush1.msra.mxu0 0.0
    %2584 = vmatprep.subr.mxu0 0.0
    %2585 = vmatpush1.msra.mxu0 0.0
    %2586 = vmatprep.subr.mxu0 0.0
    %2587 = vmatpush1.msra.mxu0 0.0
    %2588 = vmatprep.subr.mxu0 0.0
    %2589 = vmatpush1.msra.mxu0 0.0
    %2590 = vmatprep.subr.mxu0 0.0
    %2591 = vmatpush1.msra.mxu0 0.0
    %2592 = vmatprep.subr.mxu0 0.0
    %2593 = vmatpush1.msra.mxu0 0.0
    %2594 = vmatprep.subr.mxu0 0.0
    %2595 = vmatpush1.msra.mxu0 0.0
    %2596 = vmatprep.subr.mxu0 0.0
    %2597 = vmatpush1.msra.mxu0 0.0
    %2598 = vmatprep.subr.mxu0 0.0
    %2599 = vmatpush1.msra.mxu0 0.0
    %2600 = vmatprep.subr.mxu0 0.0
    %2601 = vmatpush1.msra.mxu0 0.0
    %2602 = vmatprep.subr.mxu0 0.0
    %2603 = vmatpush1.msra.mxu0 0.0
    %2604 = vmatprep.subr.mxu0 0.0
    %2605 = vmatpush1.msra.mxu0 0.0
    %2606 = vmatprep.subr.mxu0 0.0
    %2607 = vmatpush1.msra.mxu0 0.0
    %2608 = vmatprep.subr.mxu0 0.0
    %2609 = vmatpush1.msra.mxu0 0.0
    %2610 = vmatprep.subr.mxu0 0.0
    %2611 = vmatpush1.msra.mxu0 0.0
    %2612 = vmatprep.subr.mxu0 0.0
    %2613 = vmatpush1.msra.mxu0 0.0
    %2614 = vmatprep.mubr.f32.mxu0 0.0
    %2615 = vmatmul.mubr.f32.gmra.mrb[0].mxu0 %v2548
    %v2616 = vpop.f32.mrb[0].mxu0
    %v2617 = vadd.f32 0.0, %v2616
    %v2618 = vpop.f32.mrb[0].mxu0
    %v2619 = vadd.f32 0.0, %v2618
    %2620 = vdwg.mxu0
    %2621 = vmatprep.subr.mxu0 0.0
    %2622 = vmatpush1.msra.mxu0 %v1804
    %2623 = vmatprep.subr.mxu0 0.0
    %2624 = vmatpush1.msra.mxu0 %v1807
    %2625 = vmatprep.subr.mxu0 0.0
    %2626 = vmatpush1.msra.mxu0 %v1810
    %2627 = vmatprep.subr.mxu0 0.0
    %2628 = vmatpush1.msra.mxu0 %v1813
    %2629 = vmatprep.subr.mxu0 0.0
    %2630 = vmatpush1.msra.mxu0 %v1816
    %2631 = vmatprep.subr.mxu0 0.0
    %2632 = vmatpush1.msra.mxu0 %v1819
    %2633 = vmatprep.subr.mxu0 0.0
    %2634 = vmatpush1.msra.mxu0 %v1822
    %2635 = vmatprep.subr.mxu0 0.0
    %2636 = vmatpush1.msra.mxu0 %v1825
    %2637 = vmatprep.subr.mxu0 0.0
    %2638 = vmatpush1.msra.mxu0 %v1828
    %2639 = vmatprep.subr.mxu0 0.0
    %2640 = vmatpush1.msra.mxu0 %v1831
    %2641 = vmatprep.subr.mxu0 0.0
    %2642 = vmatpush1.msra.mxu0 %v1834
    %2643 = vmatprep.subr.mxu0 0.0
    %2644 = vmatpush1.msra.mxu0 %v1837
    %2645 = vmatprep.subr.mxu0 0.0
    %2646 = vmatpush1.msra.mxu0 %v1840
    %2647 = vmatprep.subr.mxu0 0.0
    %2648 = vmatpush1.msra.mxu0 %v1843
    %2649 = vmatprep.subr.mxu0 0.0
    %2650 = vmatpush1.msra.mxu0 %v1846
    %2651 = vmatprep.subr.mxu0 0.0
    %2652 = vmatpush1.msra.mxu0 %v1849
    %2653 = vmatprep.subr.mxu0 0.0
    %2654 = vmatpush1.msra.mxu0 0.0
    %2655 = vmatprep.subr.mxu0 0.0
    %2656 = vmatpush1.msra.mxu0 0.0
    %2657 = vmatprep.subr.mxu0 0.0
    %2658 = vmatpush1.msra.mxu0 0.0
    %2659 = vmatprep.subr.mxu0 0.0
    %2660 = vmatpush1.msra.mxu0 0.0
    %2661 = vmatprep.subr.mxu0 0.0
    %2662 = vmatpush1.msra.mxu0 0.0
    %2663 = vmatprep.subr.mxu0 0.0
    %2664 = vmatpush1.msra.mxu0 0.0
    %2665 = vmatprep.subr.mxu0 0.0
    %2666 = vmatpush1.msra.mxu0 0.0
    %2667 = vmatprep.subr.mxu0 0.0
    %2668 = vmatpush1.msra.mxu0 0.0
    %2669 = vmatprep.subr.mxu0 0.0
    %2670 = vmatpush1.msra.mxu0 0.0
    %2671 = vmatprep.subr.mxu0 0.0
    %2672 = vmatpush1.msra.mxu0 0.0
    %2673 = vmatprep.subr.mxu0 0.0
    %2674 = vmatpush1.msra.mxu0 0.0
    %2675 = vmatprep.subr.mxu0 0.0
    %2676 = vmatpush1.msra.mxu0 0.0
    %2677 = vmatprep.subr.mxu0 0.0
    %2678 = vmatpush1.msra.mxu0 0.0
    %2679 = vmatprep.subr.mxu0 0.0
    %2680 = vmatpush1.msra.mxu0 0.0
    %2681 = vmatprep.subr.mxu0 0.0
    %2682 = vmatpush1.msra.mxu0 0.0
    %2683 = vmatprep.subr.mxu0 0.0
    %2684 = vmatpush1.msra.mxu0 0.0
    %2685 = vmatprep.mubr.f32.mxu0 0.0
    %2686 = vmatmul.mubr.f32.gmra.mrb[0].mxu0 %v2548
    %v2687 = vpop.f32.mrb[0].mxu0
    %v2688 = vadd.f32 0.0, %v2687
    %v2689 = vpop.f32.mrb[0].mxu0
    %2690 = vdwg.mxu0
    %v2692 = vrot.slane %v2617, 2
    %v2694 = vadd.f32 %v1937, %v2692
    %v2695 = vxor.u32 %v2694, 2147483648
    %v2696 = vmul.f32 %v2695, 1.442695
    %v2697 = vpow.pop %v2696
    %v2698 = vadd.f32 %v2697, 1.0
    %v2699 = vrcp.pop %v2698
    %v2700 = vmul.f32 1.0, %v2699
    %v2702 = vrot.slane %v2619, 2
    %v2704 = vadd.f32 %v1939, %v2702
    %v2705 = vxor.u32 %v2704, 2147483648
    %v2706 = vmul.f32 %v2705, 1.442695
    %v2707 = vpow.pop %v2706
    %v2708 = vadd.f32 %v2707, 1.0
    %v2709 = vrcp.pop %v2708
    %v2710 = vmul.f32 1.0, %v2709
    %v2711 = vadd.f32 %v2688, %v2181
    %v2713 = vrot.slane %v2711, 2
    %v2715 = vmul.f32 %v2700, %v2713
    %v2716 = vadd.f32 %v2014, %v2715
    %v2717 = vtanh.pop %v2716
    %v2719 = vrot.slane %v2717, 2
    %v2721 = vsub.f32 %v2546, %v2719
    %v2723 = vrot.slane %v2721, 6
    %v2725 = vmul.f32 %v2710, %v2723
    %v2726 = vadd.f32 %v2717, %v2725
    %v2728 = vrot.slane %v2726, 6
    %2730 = vmatprep.subr.mxu0 %v1803
    %2731 = vmatpush1.msra.mxu0 %v1802
    %2732 = vmatprep.subr.mxu0 %v1806
    %2733 = vmatpush1.msra.mxu0 %v1805
    %2734 = vmatprep.subr.mxu0 %v1809
    %2735 = vmatpush1.msra.mxu0 %v1808
    %2736 = vmatprep.subr.mxu0 %v1812
    %2737 = vmatpush1.msra.mxu0 %v1811
    %2738 = vmatprep.subr.mxu0 %v1815
    %2739 = vmatpush1.msra.mxu0 %v1814
    %2740 = vmatprep.subr.mxu0 %v1818
    %2741 = vmatpush1.msra.mxu0 %v1817
    %2742 = vmatprep.subr.mxu0 %v1821
    %2743 = vmatpush1.msra.mxu0 %v1820
    %2744 = vmatprep.subr.mxu0 %v1824
    %2745 = vmatpush1.msra.mxu0 %v1823
    %2746 = vmatprep.subr.mxu0 %v1827
    %2747 = vmatpush1.msra.mxu0 %v1826
    %2748 = vmatprep.subr.mxu0 %v1830
    %2749 = vmatpush1.msra.mxu0 %v1829
    %2750 = vmatprep.subr.mxu0 %v1833
    %2751 = vmatpush1.msra.mxu0 %v1832
    %2752 = vmatprep.subr.mxu0 %v1836
    %2753 = vmatpush1.msra.mxu0 %v1835
    %2754 = vmatprep.subr.mxu0 %v1839
    %2755 = vmatpush1.msra.mxu0 %v1838
    %2756 = vmatprep.subr.mxu0 %v1842
    %2757 = vmatpush1.msra.mxu0 %v1841
    %2758 = vmatprep.subr.mxu0 %v1845
    %2759 = vmatpush1.msra.mxu0 %v1844
    %2760 = vmatprep.subr.mxu0 %v1848
    %2761 = vmatpush1.msra.mxu0 %v1847
    %2762 = vmatprep.subr.mxu0 0.0
    %2763 = vmatpush1.msra.mxu0 0.0
    %2764 = vmatprep.subr.mxu0 0.0
    %2765 = vmatpush1.msra.mxu0 0.0
    %2766 = vmatprep.subr.mxu0 0.0
    %2767 = vmatpush1.msra.mxu0 0.0
    %2768 = vmatprep.subr.mxu0 0.0
    %2769 = vmatpush1.msra.mxu0 0.0
    %2770 = vmatprep.subr.mxu0 0.0
    %2771 = vmatpush1.msra.mxu0 0.0
    %2772 = vmatprep.subr.mxu0 0.0
    %2773 = vmatpush1.msra.mxu0 0.0
    %2774 = vmatprep.subr.mxu0 0.0
    %2775 = vmatpush1.msra.mxu0 0.0
    %2776 = vmatprep.subr.mxu0 0.0
    %2777 = vmatpush1.msra.mxu0 0.0
    %2778 = vmatprep.subr.mxu0 0.0
    %2779 = vmatpush1.msra.mxu0 0.0
    %2780 = vmatprep.subr.mxu0 0.0
    %2781 = vmatpush1.msra.mxu0 0.0
    %2782 = vmatprep.subr.mxu0 0.0
    %2783 = vmatpush1.msra.mxu0 0.0
    %2784 = vmatprep.subr.mxu0 0.0
    %2785 = vmatpush1.msra.mxu0 0.0
    %2786 = vmatprep.subr.mxu0 0.0
    %2787 = vmatpush1.msra.mxu0 0.0
    %2788 = vmatprep.subr.mxu0 0.0
    %2789 = vmatpush1.msra.mxu0 0.0
    %2790 = vmatprep.subr.mxu0 0.0
    %2791 = vmatpush1.msra.mxu0 0.0
    %2792 = vmatprep.subr.mxu0 0.0
    %2793 = vmatpush1.msra.mxu0 0.0
    %2794 = vmatprep.mubr.f32.mxu0 0.0
    %2795 = vmatmul.mubr.f32.gmra.mrb[0].mxu0 %v2728
    %v2796 = vpop.f32.mrb[0].mxu0
    %v2797 = vadd.f32 0.0, %v2796
    %v2798 = vpop.f32.mrb[0].mxu0
    %v2799 = vadd.f32 0.0, %v2798
    %2800 = vdwg.mxu0
    %2801 = vmatprep.subr.mxu0 0.0
    %2802 = vmatpush1.msra.mxu0 %v1804
    %2803 = vmatprep.subr.mxu0 0.0
    %2804 = vmatpush1.msra.mxu0 %v1807
    %2805 = vmatprep.subr.mxu0 0.0
    %2806 = vmatpush1.msra.mxu0 %v1810
    %2807 = vmatprep.subr.mxu0 0.0
    %2808 = vmatpush1.msra.mxu0 %v1813
    %2809 = vmatprep.subr.mxu0 0.0
    %2810 = vmatpush1.msra.mxu0 %v1816
    %2811 = vmatprep.subr.mxu0 0.0
    %2812 = vmatpush1.msra.mxu0 %v1819
    %2813 = vmatprep.subr.mxu0 0.0
    %2814 = vmatpush1.msra.mxu0 %v1822
    %2815 = vmatprep.subr.mxu0 0.0
    %2816 = vmatpush1.msra.mxu0 %v1825
    %2817 = vmatprep.subr.mxu0 0.0
    %2818 = vmatpush1.msra.mxu0 %v1828
    %2819 = vmatprep.subr.mxu0 0.0
    %2820 = vmatpush1.msra.mxu0 %v1831
    %2821 = vmatprep.subr.mxu0 0.0
    %2822 = vmatpush1.msra.mxu0 %v1834
    %2823 = vmatprep.subr.mxu0 0.0
    %2824 = vmatpush1.msra.mxu0 %v1837
    %2825 = vmatprep.subr.mxu0 0.0
    %2826 = vmatpush1.msra.mxu0 %v1840
    %2827 = vmatprep.subr.mxu0 0.0
    %2828 = vmatpush1.msra.mxu0 %v1843
    %2829 = vmatprep.subr.mxu0 0.0
    %2830 = vmatpush1.msra.mxu0 %v1846
    %2831 = vmatprep.subr.mxu0 0.0
    %2832 = vmatpush1.msra.mxu0 %v1849
    %2833 = vmatprep.subr.mxu0 0.0
    %2834 = vmatpush1.msra.mxu0 0.0
    %2835 = vmatprep.subr.mxu0 0.0
    %2836 = vmatpush1.msra.mxu0 0.0
    %2837 = vmatprep.subr.mxu0 0.0
    %2838 = vmatpush1.msra.mxu0 0.0
    %2839 = vmatprep.subr.mxu0 0.0
    %2840 = vmatpush1.msra.mxu0 0.0
    %2841 = vmatprep.subr.mxu0 0.0
    %2842 = vmatpush1.msra.mxu0 0.0
    %2843 = vmatprep.subr.mxu0 0.0
    %2844 = vmatpush1.msra.mxu0 0.0
    %2845 = vmatprep.subr.mxu0 0.0
    %2846 = vmatpush1.msra.mxu0 0.0
    %2847 = vmatprep.subr.mxu0 0.0
    %2848 = vmatpush1.msra.mxu0 0.0
    %2849 = vmatprep.subr.mxu0 0.0
    %2850 = vmatpush1.msra.mxu0 0.0
    %2851 = vmatprep.subr.mxu0 0.0
    %2852 = vmatpush1.msra.mxu0 0.0
    %2853 = vmatprep.subr.mxu0 0.0
    %2854 = vmatpush1.msra.mxu0 0.0
    %2855 = vmatprep.subr.mxu0 0.0
    %2856 = vmatpush1.msra.mxu0 0.0
    %2857 = vmatprep.subr.mxu0 0.0
    %2858 = vmatpush1.msra.mxu0 0.0
    %2859 = vmatprep.subr.mxu0 0.0
    %2860 = vmatpush1.msra.mxu0 0.0
    %2861 = vmatprep.subr.mxu0 0.0
    %2862 = vmatpush1.msra.mxu0 0.0
    %2863 = vmatprep.subr.mxu0 0.0
    %2864 = vmatpush1.msra.mxu0 0.0
    %2865 = vmatprep.mubr.f32.mxu0 0.0
    %2866 = vmatmul.mubr.f32.gmra.mrb[0].mxu0 %v2728
    %v2867 = vpop.f32.mrb[0].mxu0
    %v2868 = vadd.f32 0.0, %v2867
    %v2869 = vpop.f32.mrb[0].mxu0
    %2870 = vdwg.mxu0
    %v2871 = vadd.f32 %v1943, %v2797
    %v2872 = vxor.u32 %v2871, 2147483648
    %v2873 = vmul.f32 %v2872, 1.442695
    %v2874 = vpow.pop %v2873
    %v2875 = vadd.f32 %v2874, 1.0
    %v2876 = vrcp.pop %v2875
    %v2877 = vmul.f32 1.0, %v2876
    %v2878 = vadd.f32 %v1945, %v2799
    %v2879 = vxor.u32 %v2878, 2147483648
    %v2880 = vmul.f32 %v2879, 1.442695
    %v2881 = vpow.pop %v2880
    %v2882 = vadd.f32 %v2881, 1.0
    %v2883 = vrcp.pop %v2882
    %v2884 = vmul.f32 1.0, %v2883
    %v2885 = vadd.f32 %v2868, %v2181
    %v2886 = vmul.f32 %v2877, %v2885
    %v2887 = vadd.f32 %v2019, %v2886
    %v2888 = vtanh.pop %v2887
    %v2890 = vrot.slane %v2888, 2
    %v2892 = vsub.f32 %v2726, %v2890
    %v2894 = vrot.slane %v2892, 6
    %v2896 = vmul.f32 %v2884, %v2894
    %v2897 = vadd.f32 %v2888, %v2896
    %2898 = vmatprep.subr.mxu0 %v1803
    %2899 = vmatpush1.msra.mxu0 %v1802
    %2900 = vmatprep.subr.mxu0 %v1806
    %2901 = vmatpush1.msra.mxu0 %v1805
    %2902 = vmatprep.subr.mxu0 %v1809
    %2903 = vmatpush1.msra.mxu0 %v1808
    %2904 = vmatprep.subr.mxu0 %v1812
    %2905 = vmatpush1.msra.mxu0 %v1811
    %2906 = vmatprep.subr.mxu0 %v1815
    %2907 = vmatpush1.msra.mxu0 %v1814
    %2908 = vmatprep.subr.mxu0 %v1818
    %2909 = vmatpush1.msra.mxu0 %v1817
    %2910 = vmatprep.subr.mxu0 %v1821
    %2911 = vmatpush1.msra.mxu0 %v1820
    %2912 = vmatprep.subr.mxu0 %v1824
    %2913 = vmatpush1.msra.mxu0 %v1823
    %2914 = vmatprep.subr.mxu0 %v1827
    %2915 = vmatpush1.msra.mxu0 %v1826
    %2916 = vmatprep.subr.mxu0 %v1830
    %2917 = vmatpush1.msra.mxu0 %v1829
    %2918 = vmatprep.subr.mxu0 %v1833
    %2919 = vmatpush1.msra.mxu0 %v1832
    %2920 = vmatprep.subr.mxu0 %v1836
    %2921 = vmatpush1.msra.mxu0 %v1835
    %2922 = vmatprep.subr.mxu0 %v1839
    %2923 = vmatpush1.msra.mxu0 %v1838
    %2924 = vmatprep.subr.mxu0 %v1842
    %2925 = vmatpush1.msra.mxu0 %v1841
    %2926 = vmatprep.subr.mxu0 %v1845
    %2927 = vmatpush1.msra.mxu0 %v1844
    %2928 = vmatprep.subr.mxu0 %v1848
    %2929 = vmatpush1.msra.mxu0 %v1847
    %2930 = vmatprep.subr.mxu0 0.0
    %2931 = vmatpush1.msra.mxu0 0.0
    %2932 = vmatprep.subr.mxu0 0.0
    %2933 = vmatpush1.msra.mxu0 0.0
    %2934 = vmatprep.subr.mxu0 0.0
    %2935 = vmatpush1.msra.mxu0 0.0
    %2936 = vmatprep.subr.mxu0 0.0
    %2937 = vmatpush1.msra.mxu0 0.0
    %2938 = vmatprep.subr.mxu0 0.0
    %2939 = vmatpush1.msra.mxu0 0.0
    %2940 = vmatprep.subr.mxu0 0.0
    %2941 = vmatpush1.msra.mxu0 0.0
    %2942 = vmatprep.subr.mxu0 0.0
    %2943 = vmatpush1.msra.mxu0 0.0
    %2944 = vmatprep.subr.mxu0 0.0
    %2945 = vmatpush1.msra.mxu0 0.0
    %2946 = vmatprep.subr.mxu0 0.0
    %2947 = vmatpush1.msra.mxu0 0.0
    %2948 = vmatprep.subr.mxu0 0.0
    %2949 = vmatpush1.msra.mxu0 0.0
    %2950 = vmatprep.subr.mxu0 0.0
    %2951 = vmatpush1.msra.mxu0 0.0
    %2952 = vmatprep.subr.mxu0 0.0
    %2953 = vmatpush1.msra.mxu0 0.0
    %2954 = vmatprep.subr.mxu0 0.0
    %2955 = vmatpush1.msra.mxu0 0.0
    %2956 = vmatprep.subr.mxu0 0.0
    %2957 = vmatpush1.msra.mxu0 0.0
    %2958 = vmatprep.subr.mxu0 0.0
    %2959 = vmatpush1.msra.mxu0 0.0
    %2960 = vmatprep.subr.mxu0 0.0
    %2961 = vmatpush1.msra.mxu0 0.0
    %2962 = vmatprep.mubr.f32.mxu0 0.0
    %2963 = vmatmul.mubr.f32.gmra.mrb[0].mxu0 %v2897
    %v2964 = vpop.f32.mrb[0].mxu0
    %v2965 = vadd.f32 0.0, %v2964
    %v2966 = vpop.f32.mrb[0].mxu0
    %v2967 = vadd.f32 0.0, %v2966
    %2968 = vdwg.mxu0
    %2969 = vmatprep.subr.mxu0 0.0
    %2970 = vmatpush1.msra.mxu0 %v1804
    %2971 = vmatprep.subr.mxu0 0.0
    %2972 = vmatpush1.msra.mxu0 %v1807
    %2973 = vmatprep.subr.mxu0 0.0
    %2974 = vmatpush1.msra.mxu0 %v1810
    %2975 = vmatprep.subr.mxu0 0.0
    %2976 = vmatpush1.msra.mxu0 %v1813
    %2977 = vmatprep.subr.mxu0 0.0
    %2978 = vmatpush1.msra.mxu0 %v1816
    %2979 = vmatprep.subr.mxu0 0.0
    %2980 = vmatpush1.msra.mxu0 %v1819
    %2981 = vmatprep.subr.mxu0 0.0
    %2982 = vmatpush1.msra.mxu0 %v1822
    %2983 = vmatprep.subr.mxu0 0.0
    %2984 = vmatpush1.msra.mxu0 %v1825
    %2985 = vmatprep.subr.mxu0 0.0
    %2986 = vmatpush1.msra.mxu0 %v1828
    %2987 = vmatprep.subr.mxu0 0.0
    %2988 = vmatpush1.msra.mxu0 %v1831
    %2989 = vmatprep.subr.mxu0 0.0
    %2990 = vmatpush1.msra.mxu0 %v1834
    %2991 = vmatprep.subr.mxu0 0.0
    %2992 = vmatpush1.msra.mxu0 %v1837
    %2993 = vmatprep.subr.mxu0 0.0
    %2994 = vmatpush1.msra.mxu0 %v1840
    %2995 = vmatprep.subr.mxu0 0.0
    %2996 = vmatpush1.msra.mxu0 %v1843
    %2997 = vmatprep.subr.mxu0 0.0
    %2998 = vmatpush1.msra.mxu0 %v1846
    %2999 = vmatprep.subr.mxu0 0.0
    %3000 = vmatpush1.msra.mxu0 %v1849
    %3001 = vmatprep.subr.mxu0 0.0
    %3002 = vmatpush1.msra.mxu0 0.0
    %3003 = vmatprep.subr.mxu0 0.0
    %3004 = vmatpush1.msra.mxu0 0.0
    %3005 = vmatprep.subr.mxu0 0.0
    %3006 = vmatpush1.msra.mxu0 0.0
    %3007 = vmatprep.subr.mxu0 0.0
    %3008 = vmatpush1.msra.mxu0 0.0
    %3009 = vmatprep.subr.mxu0 0.0
    %3010 = vmatpush1.msra.mxu0 0.0
    %3011 = vmatprep.subr.mxu0 0.0
    %3012 = vmatpush1.msra.mxu0 0.0
    %3013 = vmatprep.subr.mxu0 0.0
    %3014 = vmatpush1.msra.mxu0 0.0
    %3015 = vmatprep.subr.mxu0 0.0
    %3016 = vmatpush1.msra.mxu0 0.0
    %3017 = vmatprep.subr.mxu0 0.0
    %3018 = vmatpush1.msra.mxu0 0.0
    %3019 = vmatprep.subr.mxu0 0.0
    %3020 = vmatpush1.msra.mxu0 0.0
    %3021 = vmatprep.subr.mxu0 0.0
    %3022 = vmatpush1.msra.mxu0 0.0
    %3023 = vmatprep.subr.mxu0 0.0
    %3024 = vmatpush1.msra.mxu0 0.0
    %3025 = vmatprep.subr.mxu0 0.0
    %3026 = vmatpush1.msra.mxu0 0.0
    %3027 = vmatprep.subr.mxu0 0.0
    %3028 = vmatpush1.msra.mxu0 0.0
    %3029 = vmatprep.subr.mxu0 0.0
    %3030 = vmatpush1.msra.mxu0 0.0
    %3031 = vmatprep.subr.mxu0 0.0
    %3032 = vmatpush1.msra.mxu0 0.0
    %3033 = vmatprep.mubr.f32.mxu0 0.0
    %3034 = vmatmul.mubr.f32.gmra.mrb[0].mxu0 %v2897
    %v3035 = vpop.f32.mrb[0].mxu0
    %v3036 = vadd.f32 0.0, %v3035
    %v3037 = vpop.f32.mrb[0].mxu0
    %3038 = vdwg.mxu0
    %v3040 = vrot.slane %v2965, 6
    %v3042 = vadd.f32 %v1943, %v3040
    %v3043 = vxor.u32 %v3042, 2147483648
    %v3044 = vmul.f32 %v3043, 1.442695
    %v3045 = vpow.pop %v3044
    %v3046 = vadd.f32 %v3045, 1.0
    %v3047 = vrcp.pop %v3046
    %v3048 = vmul.f32 1.0, %v3047
    %v3050 = vrot.slane %v2967, 6
    %v3052 = vadd.f32 %v1945, %v3050
    %v3053 = vxor.u32 %v3052, 2147483648
    %v3054 = vmul.f32 %v3053, 1.442695
    %v3055 = vpow.pop %v3054
    %v3056 = vadd.f32 %v3055, 1.0
    %v3057 = vrcp.pop %v3056
    %v3058 = vmul.f32 1.0, %v3057
    %v3059 = vadd.f32 %v3036, %v2181
    %v3061 = vrot.slane %v3059, 6
    %v3063 = vmul.f32 %v3048, %v3061
    %v3064 = vadd.f32 %v2019, %v3063
    %v3065 = vtanh.pop %v3064
    %v3067 = vrot.slane %v3065, 2
    %v3069 = vsub.f32 %v2897, %v3067
    %v3071 = vrot.slane %v3069, 6
    %v3073 = vmul.f32 %v3058, %v3071
    %v3074 = vadd.f32 %v3065, %v3073
    %v3076 = vrot.slane %v3074, 2
    %3078 = vmatprep.subr.mxu0 %v1803
    %3079 = vmatpush1.msra.mxu0 %v1802
    %3080 = vmatprep.subr.mxu0 %v1806
    %3081 = vmatpush1.msra.mxu0 %v1805
    %3082 = vmatprep.subr.mxu0 %v1809
    %3083 = vmatpush1.msra.mxu0 %v1808
    %3084 = vmatprep.subr.mxu0 %v1812
    %3085 = vmatpush1.msra.mxu0 %v1811
    %3086 = vmatprep.subr.mxu0 %v1815
    %3087 = vmatpush1.msra.mxu0 %v1814
    %3088 = vmatprep.subr.mxu0 %v1818
    %3089 = vmatpush1.msra.mxu0 %v1817
    %3090 = vmatprep.subr.mxu0 %v1821
    %3091 = vmatpush1.msra.mxu0 %v1820
    %3092 = vmatprep.subr.mxu0 %v1824
    %3093 = vmatpush1.msra.mxu0 %v1823
    %3094 = vmatprep.subr.mxu0 %v1827
    %3095 = vmatpush1.msra.mxu0 %v1826
    %3096 = vmatprep.subr.mxu0 %v1830
    %3097 = vmatpush1.msra.mxu0 %v1829
    %3098 = vmatprep.subr.mxu0 %v1833
    %3099 = vmatpush1.msra.mxu0 %v1832
    %3100 = vmatprep.subr.mxu0 %v1836
    %3101 = vmatpush1.msra.mxu0 %v1835
    %3102 = vmatprep.subr.mxu0 %v1839
    %3103 = vmatpush1.msra.mxu0 %v1838
    %3104 = vmatprep.subr.mxu0 %v1842
    %3105 = vmatpush1.msra.mxu0 %v1841
    %3106 = vmatprep.subr.mxu0 %v1845
    %3107 = vmatpush1.msra.mxu0 %v1844
    %3108 = vmatprep.subr.mxu0 %v1848
    %3109 = vmatpush1.msra.mxu0 %v1847
    %3110 = vmatprep.subr.mxu0 0.0
    %3111 = vmatpush1.msra.mxu0 0.0
    %3112 = vmatprep.subr.mxu0 0.0
    %3113 = vmatpush1.msra.mxu0 0.0
    %3114 = vmatprep.subr.mxu0 0.0
    %3115 = vmatpush1.msra.mxu0 0.0
    %3116 = vmatprep.subr.mxu0 0.0
    %3117 = vmatpush1.msra.mxu0 0.0
    %3118 = vmatprep.subr.mxu0 0.0
    %3119 = vmatpush1.msra.mxu0 0.0
    %3120 = vmatprep.subr.mxu0 0.0
    %3121 = vmatpush1.msra.mxu0 0.0
    %3122 = vmatprep.subr.mxu0 0.0
    %3123 = vmatpush1.msra.mxu0 0.0
    %3124 = vmatprep.subr.mxu0 0.0
    %3125 = vmatpush1.msra.mxu0 0.0
    %3126 = vmatprep.subr.mxu0 0.0
    %3127 = vmatpush1.msra.mxu0 0.0
    %3128 = vmatprep.subr.mxu0 0.0
    %3129 = vmatpush1.msra.mxu0 0.0
    %3130 = vmatprep.subr.mxu0 0.0
    %3131 = vmatpush1.msra.mxu0 0.0
    %3132 = vmatprep.subr.mxu0 0.0
    %3133 = vmatpush1.msra.mxu0 0.0
    %3134 = vmatprep.subr.mxu0 0.0
    %3135 = vmatpush1.msra.mxu0 0.0
    %3136 = vmatprep.subr.mxu0 0.0
    %3137 = vmatpush1.msra.mxu0 0.0
    %3138 = vmatprep.subr.mxu0 0.0
    %3139 = vmatpush1.msra.mxu0 0.0
    %3140 = vmatprep.subr.mxu0 0.0
    %3141 = vmatpush1.msra.mxu0 0.0
    %3142 = vmatprep.mubr.f32.mxu0 0.0
    %3143 = vmatmul.mubr.f32.gmra.mrb[0].mxu0 %v3076
    %v3144 = vpop.f32.mrb[0].mxu0
    %v3145 = vadd.f32 0.0, %v3144
    %v3146 = vpop.f32.mrb[0].mxu0
    %v3147 = vadd.f32 0.0, %v3146
    %3148 = vdwg.mxu0
    %3149 = vmatprep.subr.mxu0 0.0
    %3150 = vmatpush1.msra.mxu0 %v1804
    %3151 = vmatprep.subr.mxu0 0.0
    %3152 = vmatpush1.msra.mxu0 %v1807
    %3153 = vmatprep.subr.mxu0 0.0
    %3154 = vmatpush1.msra.mxu0 %v1810
    %3155 = vmatprep.subr.mxu0 0.0
    %3156 = vmatpush1.msra.mxu0 %v1813
    %3157 = vmatprep.subr.mxu0 0.0
    %3158 = vmatpush1.msra.mxu0 %v1816
    %3159 = vmatprep.subr.mxu0 0.0
    %3160 = vmatpush1.msra.mxu0 %v1819
    %3161 = vmatprep.subr.mxu0 0.0
    %3162 = vmatpush1.msra.mxu0 %v1822
    %3163 = vmatprep.subr.mxu0 0.0
    %3164 = vmatpush1.msra.mxu0 %v1825
    %3165 = vmatprep.subr.mxu0 0.0
    %3166 = vmatpush1.msra.mxu0 %v1828
    %3167 = vmatprep.subr.mxu0 0.0
    %3168 = vmatpush1.msra.mxu0 %v1831
    %3169 = vmatprep.subr.mxu0 0.0
    %3170 = vmatpush1.msra.mxu0 %v1834
    %3171 = vmatprep.subr.mxu0 0.0
    %3172 = vmatpush1.msra.mxu0 %v1837
    %3173 = vmatprep.subr.mxu0 0.0
    %3174 = vmatpush1.msra.mxu0 %v1840
    %3175 = vmatprep.subr.mxu0 0.0
    %3176 = vmatpush1.msra.mxu0 %v1843
    %3177 = vmatprep.subr.mxu0 0.0
    %3178 = vmatpush1.msra.mxu0 %v1846
    %3179 = vmatprep.subr.mxu0 0.0
    %3180 = vmatpush1.msra.mxu0 %v1849
    %3181 = vmatprep.subr.mxu0 0.0
    %3182 = vmatpush1.msra.mxu0 0.0
    %3183 = vmatprep.subr.mxu0 0.0
    %3184 = vmatpush1.msra.mxu0 0.0
    %3185 = vmatprep.subr.mxu0 0.0
    %3186 = vmatpush1.msra.mxu0 0.0
    %3187 = vmatprep.subr.mxu0 0.0
    %3188 = vmatpush1.msra.mxu0 0.0
    %3189 = vmatprep.subr.mxu0 0.0
    %3190 = vmatpush1.msra.mxu0 0.0
    %3191 = vmatprep.subr.mxu0 0.0
    %3192 = vmatpush1.msra.mxu0 0.0
    %3193 = vmatprep.subr.mxu0 0.0
    %3194 = vmatpush1.msra.mxu0 0.0
    %3195 = vmatprep.subr.mxu0 0.0
    %3196 = vmatpush1.msra.mxu0 0.0
    %3197 = vmatprep.subr.mxu0 0.0
    %3198 = vmatpush1.msra.mxu0 0.0
    %3199 = vmatprep.subr.mxu0 0.0
    %3200 = vmatpush1.msra.mxu0 0.0
    %3201 = vmatprep.subr.mxu0 0.0
    %3202 = vmatpush1.msra.mxu0 0.0
    %3203 = vmatprep.subr.mxu0 0.0
    %3204 = vmatpush1.msra.mxu0 0.0
    %3205 = vmatprep.subr.mxu0 0.0
    %3206 = vmatpush1.msra.mxu0 0.0
    %3207 = vmatprep.subr.mxu0 0.0
    %3208 = vmatpush1.msra.mxu0 0.0
    %3209 = vmatprep.subr.mxu0 0.0
    %3210 = vmatpush1.msra.mxu0 0.0
    %3211 = vmatprep.subr.mxu0 0.0
    %3212 = vmatpush1.msra.mxu0 0.0
    %3213 = vmatprep.mubr.f32.mxu0 0.0
    %3214 = vmatmul.mubr.f32.gmra.mrb[0].mxu0 %v3076
    %v3215 = vpop.f32.mrb[0].mxu0
    %v3216 = vadd.f32 0.0, %v3215
    %v3217 = vpop.f32.mrb[0].mxu0
    %3218 = vdwg.mxu0
    %v3220 = vrot.slane %v3145, 4
    %v3222 = vadd.f32 %v1943, %v3220
    %v3223 = vxor.u32 %v3222, 2147483648
    %v3224 = vmul.f32 %v3223, 1.442695
    %v3225 = vpow.pop %v3224
    %v3226 = vadd.f32 %v3225, 1.0
    %v3227 = vrcp.pop %v3226
    %v3228 = vmul.f32 1.0, %v3227
    %v3230 = vrot.slane %v3147, 4
    %v3232 = vadd.f32 %v1945, %v3230
    %v3233 = vxor.u32 %v3232, 2147483648
    %v3234 = vmul.f32 %v3233, 1.442695
    %v3235 = vpow.pop %v3234
    %v3236 = vadd.f32 %v3235, 1.0
    %v3237 = vrcp.pop %v3236
    %v3238 = vmul.f32 1.0, %v3237
    %v3239 = vadd.f32 %v3216, %v2181
    %v3241 = vrot.slane %v3239, 4
    %v3243 = vmul.f32 %v3228, %v3241
    %v3244 = vadd.f32 %v2019, %v3243
    %v3245 = vtanh.pop %v3244
    %v3247 = vrot.slane %v3245, 2
    %v3249 = vsub.f32 %v3074, %v3247
    %v3251 = vrot.slane %v3249, 6
    %v3253 = vmul.f32 %v3238, %v3251
    %v3254 = vadd.f32 %v3245, %v3253
    %v3256 = vrot.slane %v3254, 4
    %3258 = vmatprep.subr.mxu0 %v1803
    %3259 = vmatpush1.msra.mxu0 %v1802
    %3260 = vmatprep.subr.mxu0 %v1806
    %3261 = vmatpush1.msra.mxu0 %v1805
    %3262 = vmatprep.subr.mxu0 %v1809
    %3263 = vmatpush1.msra.mxu0 %v1808
    %3264 = vmatprep.subr.mxu0 %v1812
    %3265 = vmatpush1.msra.mxu0 %v1811
    %3266 = vmatprep.subr.mxu0 %v1815
    %3267 = vmatpush1.msra.mxu0 %v1814
    %3268 = vmatprep.subr.mxu0 %v1818
    %3269 = vmatpush1.msra.mxu0 %v1817
    %3270 = vmatprep.subr.mxu0 %v1821
    %3271 = vmatpush1.msra.mxu0 %v1820
    %3272 = vmatprep.subr.mxu0 %v1824
    %3273 = vmatpush1.msra.mxu0 %v1823
    %3274 = vmatprep.subr.mxu0 %v1827
    %3275 = vmatpush1.msra.mxu0 %v1826
    %3276 = vmatprep.subr.mxu0 %v1830
    %3277 = vmatpush1.msra.mxu0 %v1829
    %3278 = vmatprep.subr.mxu0 %v1833
    %3279 = vmatpush1.msra.mxu0 %v1832
    %3280 = vmatprep.subr.mxu0 %v1836
    %3281 = vmatpush1.msra.mxu0 %v1835
    %3282 = vmatprep.subr.mxu0 %v1839
    %3283 = vmatpush1.msra.mxu0 %v1838
    %3284 = vmatprep.subr.mxu0 %v1842
    %3285 = vmatpush1.msra.mxu0 %v1841
    %3286 = vmatprep.subr.mxu0 %v1845
    %3287 = vmatpush1.msra.mxu0 %v1844
    %3288 = vmatprep.subr.mxu0 %v1848
    %3289 = vmatpush1.msra.mxu0 %v1847
    %3290 = vmatprep.subr.mxu0 0.0
    %3291 = vmatpush1.msra.mxu0 0.0
    %3292 = vmatprep.subr.mxu0 0.0
    %3293 = vmatpush1.msra.mxu0 0.0
    %3294 = vmatprep.subr.mxu0 0.0
    %3295 = vmatpush1.msra.mxu0 0.0
    %3296 = vmatprep.subr.mxu0 0.0
    %3297 = vmatpush1.msra.mxu0 0.0
    %3298 = vmatprep.subr.mxu0 0.0
    %3299 = vmatpush1.msra.mxu0 0.0
    %3300 = vmatprep.subr.mxu0 0.0
    %3301 = vmatpush1.msra.mxu0 0.0
    %3302 = vmatprep.subr.mxu0 0.0
    %3303 = vmatpush1.msra.mxu0 0.0
    %3304 = vmatprep.subr.mxu0 0.0
    %3305 = vmatpush1.msra.mxu0 0.0
    %3306 = vmatprep.subr.mxu0 0.0
    %3307 = vmatpush1.msra.mxu0 0.0
    %3308 = vmatprep.subr.mxu0 0.0
    %3309 = vmatpush1.msra.mxu0 0.0
    %3310 = vmatprep.subr.mxu0 0.0
    %3311 = vmatpush1.msra.mxu0 0.0
    %3312 = vmatprep.subr.mxu0 0.0
    %3313 = vmatpush1.msra.mxu0 0.0
    %3314 = vmatprep.subr.mxu0 0.0
    %3315 = vmatpush1.msra.mxu0 0.0
    %3316 = vmatprep.subr.mxu0 0.0
    %3317 = vmatpush1.msra.mxu0 0.0
    %3318 = vmatprep.subr.mxu0 0.0
    %3319 = vmatpush1.msra.mxu0 0.0
    %3320 = vmatprep.subr.mxu0 0.0
    %3321 = vmatpush1.msra.mxu0 0.0
    %3322 = vmatprep.mubr.f32.mxu0 0.0
    %3323 = vmatmul.mubr.f32.gmra.mrb[0].mxu0 %v3256
    %v3324 = vpop.f32.mrb[0].mxu0
    %v3325 = vadd.f32 0.0, %v3324
    %v3326 = vpop.f32.mrb[0].mxu0
    %v3327 = vadd.f32 0.0, %v3326
    %3328 = vdwg.mxu0
    %3329 = vmatprep.subr.mxu0 0.0
    %3330 = vmatpush1.msra.mxu0 %v1804
    %3331 = vmatprep.subr.mxu0 0.0
    %3332 = vmatpush1.msra.mxu0 %v1807
    %3333 = vmatprep.subr.mxu0 0.0
    %3334 = vmatpush1.msra.mxu0 %v1810
    %3335 = vmatprep.subr.mxu0 0.0
    %3336 = vmatpush1.msra.mxu0 %v1813
    %3337 = vmatprep.subr.mxu0 0.0
    %3338 = vmatpush1.msra.mxu0 %v1816
    %3339 = vmatprep.subr.mxu0 0.0
    %3340 = vmatpush1.msra.mxu0 %v1819
    %3341 = vmatprep.subr.mxu0 0.0
    %3342 = vmatpush1.msra.mxu0 %v1822
    %3343 = vmatprep.subr.mxu0 0.0
    %3344 = vmatpush1.msra.mxu0 %v1825
    %3345 = vmatprep.subr.mxu0 0.0
    %3346 = vmatpush1.msra.mxu0 %v1828
    %3347 = vmatprep.subr.mxu0 0.0
    %3348 = vmatpush1.msra.mxu0 %v1831
    %3349 = vmatprep.subr.mxu0 0.0
    %3350 = vmatpush1.msra.mxu0 %v1834
    %3351 = vmatprep.subr.mxu0 0.0
    %3352 = vmatpush1.msra.mxu0 %v1837
    %3353 = vmatprep.subr.mxu0 0.0
    %3354 = vmatpush1.msra.mxu0 %v1840
    %3355 = vmatprep.subr.mxu0 0.0
    %3356 = vmatpush1.msra.mxu0 %v1843
    %3357 = vmatprep.subr.mxu0 0.0
    %3358 = vmatpush1.msra.mxu0 %v1846
    %3359 = vmatprep.subr.mxu0 0.0
    %3360 = vmatpush1.msra.mxu0 %v1849
    %3361 = vmatprep.subr.mxu0 0.0
    %3362 = vmatpush1.msra.mxu0 0.0
    %3363 = vmatprep.subr.mxu0 0.0
    %3364 = vmatpush1.msra.mxu0 0.0
    %3365 = vmatprep.subr.mxu0 0.0
    %3366 = vmatpush1.msra.mxu0 0.0
    %3367 = vmatprep.subr.mxu0 0.0
    %3368 = vmatpush1.msra.mxu0 0.0
    %3369 = vmatprep.subr.mxu0 0.0
    %3370 = vmatpush1.msra.mxu0 0.0
    %3371 = vmatprep.subr.mxu0 0.0
    %3372 = vmatpush1.msra.mxu0 0.0
    %3373 = vmatprep.subr.mxu0 0.0
    %3374 = vmatpush1.msra.mxu0 0.0
    %3375 = vmatprep.subr.mxu0 0.0
    %3376 = vmatpush1.msra.mxu0 0.0
    %3377 = vmatprep.subr.mxu0 0.0
    %3378 = vmatpush1.msra.mxu0 0.0
    %3379 = vmatprep.subr.mxu0 0.0
    %3380 = vmatpush1.msra.mxu0 0.0
    %3381 = vmatprep.subr.mxu0 0.0
    %3382 = vmatpush1.msra.mxu0 0.0
    %3383 = vmatprep.subr.mxu0 0.0
    %3384 = vmatpush1.msra.mxu0 0.0
    %3385 = vmatprep.subr.mxu0 0.0
    %3386 = vmatpush1.msra.mxu0 0.0
    %3387 = vmatprep.subr.mxu0 0.0
    %3388 = vmatpush1.msra.mxu0 0.0
    %3389 = vmatprep.subr.mxu0 0.0
    %3390 = vmatpush1.msra.mxu0 0.0
    %3391 = vmatprep.subr.mxu0 0.0
    %3392 = vmatpush1.msra.mxu0 0.0
    %3393 = vmatprep.mubr.f32.mxu0 0.0
    %3394 = vmatmul.mubr.f32.gmra.mrb[0].mxu0 %v3256
    %v3395 = vpop.f32.mrb[0].mxu0
    %v3396 = vadd.f32 0.0, %v3395
    %v3397 = vpop.f32.mrb[0].mxu0
    %3398 = vdwg.mxu0
    %v3400 = vrot.slane %v3325, 2
    %v3402 = vadd.f32 %v1943, %v3400
    %v3403 = vxor.u32 %v3402, 2147483648
    %v3404 = vmul.f32 %v3403, 1.442695
    %v3405 = vpow.pop %v3404
    %v3406 = vadd.f32 %v3405, 1.0
    %v3407 = vrcp.pop %v3406
    %v3408 = vmul.f32 1.0, %v3407
    %v3410 = vrot.slane %v3327, 2
    %v3412 = vadd.f32 %v1945, %v3410
    %v3413 = vxor.u32 %v3412, 2147483648
    %v3414 = vmul.f32 %v3413, 1.442695
    %v3415 = vpow.pop %v3414
    %v3416 = vadd.f32 %v3415, 1.0
    %v3417 = vrcp.pop %v3416
    %v3418 = vmul.f32 1.0, %v3417
    %v3419 = vadd.f32 %v3396, %v2181
    %v3421 = vrot.slane %v3419, 2
    %v3423 = vmul.f32 %v3408, %v3421
    %v3424 = vadd.f32 %v2019, %v3423
    %v3425 = vtanh.pop %v3424
    %v3427 = vrot.slane %v3425, 2
    %v3429 = vsub.f32 %v3254, %v3427
    %v3431 = vrot.slane %v3429, 6
    %v3433 = vmul.f32 %v3418, %v3431
    %v3434 = vadd.f32 %v3425, %v3433
    %v3435 = vld [vmem:[#allocation9] sm:$0xff]
    %v3436 = vld [vmem:[#allocation9 + $0x8] sm:$0xff]
    %v3437 = vld [vmem:[#allocation9 + $0x10] sm:$0xff]
    %v3438 = vld [vmem:[#allocation9 + $0x18] sm:$0xff]
    %v3439 = vld [vmem:[#allocation9 + $0x20] sm:$0xff]
    %v3440 = vld [vmem:[#allocation9 + $0x28] sm:$0xff]
    %v3441 = vld [vmem:[#allocation9 + $0x30] sm:$0xff]
    %v3442 = vld [vmem:[#allocation9 + $0x38] sm:$0xff]
    %v3443 = vld [vmem:[#allocation9 + $0x40] sm:$0xff]
    %v3444 = vld [vmem:[#allocation9 + $0x48] sm:$0xff]
    %v3445 = vld [vmem:[#allocation9 + $0x50] sm:$0xff]
    %v3446 = vld [vmem:[#allocation9 + $0x58] sm:$0xff]
    %v3447 = vld [vmem:[#allocation9 + $0x60] sm:$0xff]
    %v3448 = vld [vmem:[#allocation9 + $0x68] sm:$0xff]
    %v3449 = vld [vmem:[#allocation9 + $0x70] sm:$0xff]
    %v3450 = vld [vmem:[#allocation9 + $0x78] sm:$0xff]
    %v3451 = vld [vmem:[%s10] sm:$0x1]
    %v3453 = vlaneseq
    %v3454 = vshrl.u32 %v3453, 7
    %v3455 = vsub.s32 0, %v3454
    %v3456 = vrot.slane %v3451, %v3455
    %v3459 = vrot.slane %v3434, 6
    %3461 = vmatprep.subr.mxu0 0.0
    %3462 = vmatpush1.msra.mxu0 %v3435
    %3463 = vmatprep.subr.mxu0 0.0
    %3464 = vmatpush1.msra.mxu0 %v3436
    %3465 = vmatprep.subr.mxu0 0.0
    %3466 = vmatpush1.msra.mxu0 %v3437
    %3467 = vmatprep.subr.mxu0 0.0
    %3468 = vmatpush1.msra.mxu0 %v3438
    %3469 = vmatprep.subr.mxu0 0.0
    %3470 = vmatpush1.msra.mxu0 %v3439
    %3471 = vmatprep.subr.mxu0 0.0
    %3472 = vmatpush1.msra.mxu0 %v3440
    %3473 = vmatprep.subr.mxu0 0.0
    %3474 = vmatpush1.msra.mxu0 %v3441
    %3475 = vmatprep.subr.mxu0 0.0
    %3476 = vmatpush1.msra.mxu0 %v3442
    %3477 = vmatprep.subr.mxu0 0.0
    %3478 = vmatpush1.msra.mxu0 %v3443
    %3479 = vmatprep.subr.mxu0 0.0
    %3480 = vmatpush1.msra.mxu0 %v3444
    %3481 = vmatprep.subr.mxu0 0.0
    %3482 = vmatpush1.msra.mxu0 %v3445
    %3483 = vmatprep.subr.mxu0 0.0
    %3484 = vmatpush1.msra.mxu0 %v3446
    %3485 = vmatprep.subr.mxu0 0.0
    %3486 = vmatpush1.msra.mxu0 %v3447
    %3487 = vmatprep.subr.mxu0 0.0
    %3488 = vmatpush1.msra.mxu0 %v3448
    %3489 = vmatprep.subr.mxu0 0.0
    %3490 = vmatpush1.msra.mxu0 %v3449
    %3491 = vmatprep.subr.mxu0 0.0
    %3492 = vmatpush1.msra.mxu0 %v3450
    %3493 = vmatprep.subr.mxu0 0.0
    %3494 = vmatpush1.msra.mxu0 0.0
    %3495 = vmatprep.subr.mxu0 0.0
    %3496 = vmatpush1.msra.mxu0 0.0
    %3497 = vmatprep.subr.mxu0 0.0
    %3498 = vmatpush1.msra.mxu0 0.0
    %3499 = vmatprep.subr.mxu0 0.0
    %3500 = vmatpush1.msra.mxu0 0.0
    %3501 = vmatprep.subr.mxu0 0.0
    %3502 = vmatpush1.msra.mxu0 0.0
    %3503 = vmatprep.subr.mxu0 0.0
    %3504 = vmatpush1.msra.mxu0 0.0
    %3505 = vmatprep.subr.mxu0 0.0
    %3506 = vmatpush1.msra.mxu0 0.0
    %3507 = vmatprep.subr.mxu0 0.0
    %3508 = vmatpush1.msra.mxu0 0.0
    %3509 = vmatprep.subr.mxu0 0.0
    %3510 = vmatpush1.msra.mxu0 0.0
    %3511 = vmatprep.subr.mxu0 0.0
    %3512 = vmatpush1.msra.mxu0 0.0
    %3513 = vmatprep.subr.mxu0 0.0
    %3514 = vmatpush1.msra.mxu0 0.0
    %3515 = vmatprep.subr.mxu0 0.0
    %3516 = vmatpush1.msra.mxu0 0.0
    %3517 = vmatprep.subr.mxu0 0.0
    %3518 = vmatpush1.msra.mxu0 0.0
    %3519 = vmatprep.subr.mxu0 0.0
    %3520 = vmatpush1.msra.mxu0 0.0
    %3521 = vmatprep.subr.mxu0 0.0
    %3522 = vmatpush1.msra.mxu0 0.0
    %3523 = vmatprep.subr.mxu0 0.0
    %3524 = vmatpush1.msra.mxu0 0.0
    %3525 = vmatprep.mubr.f32.mxu0 0.0
    %3526 = vmatmul.mubr.f32.gmra.mrb[0].mxu0 %v3459
    %v3527 = vpop.f32.mrb[0].mxu0
    %v3528 = vadd.f32 %v3456, %v3527
    %v3529 = vpop.f32.mrb[0].mxu0
    %3530 = vdwg.mxu0
    %3531 = vst [vmem:[#allocation11] sm:$0x3] %v3528
    // Predicated region
    $region62: #{tpu_custom_call.1} parent=1 // pred_check
      _
    $region63: #{tpu_custom_call.1} parent=1 // pred_check_branch
      %3533 = sbr.rel (0) target = $region65
    $region64: #{tpu_custom_call.1} parent=1 // pred_region
      %s3535 = ssub.s32 32, 32
      %3536 = vsyncadd [#allocation5], %s3535
      %s3538 = sshll.u32 [#allocation11], 4
      %s3539 = int_to_ptr.vmem [resolvable:$true] %s3538
      %3541 = dma.vmem_to_hbm [thread:$0]  %s3539, 32, %s11, [#allocation5]
    $region65: #{tpu_custom_call.1} parent=1 // pred_fallthru
      _
    // Predicated region
    $region66: #{tpu_custom_call.1} parent=1 // pred_check
      _
    $region67: #{tpu_custom_call.1} parent=1 // pred_check_branch
      %3543 = sbr.rel (0) target = $region69
    $region68: #{tpu_custom_call.1} parent=1 // pred_region
      %3544 = dma.done [#allocation5], 32
    $region69: #{tpu_custom_call.1} parent=1 // pred_fallthru
      _
    %3545 = vsyncpa [#allocation4], 1
    %3546 = vsyncpa [#allocation7], 1
    %3547 = vsyncpa [#allocation10], 1
    %3548 = vsyncpa [#allocation5], 1

</llo_original>
